<compile_context>
chip_gen: v7x
topology: tpu7x:2x2x1
jax: 0.10.0
libtpu: 0.0.40
codegen_flags: <defaults>
</compile_context>

<pallas_src>
import functools

import jax
import jax.numpy as jnp
from jax.experimental import pallas as pl
from jax.experimental.pallas import tpu as pltpu

LANE = 128      # lane width  (last dim alignment)
SUBLANE = 8     # f32 sublane count (second-to-last dim alignment)


def _round_up(x, m):
    return (x + m - 1) // m * m


def _choose_chunk(T, max_chunk=16):
    """Largest time-chunk <= max_chunk that divides T (worst case 1)."""
    for c in range(min(T, max_chunk), 0, -1):
        if T % c == 0:
            return c
    return 1


# ----------------------------- Pallas LSTM layer kernel -----------------------------

def _lstm_layer_kernel(x_ref, wih_ref, whh_ref, b_ref,
                       out_ref, h_ref, c_ref, gx_ref,
                       *, hidden, batch, chunk):
    """One LSTM layer, time chunked.  Grid axis 0 = time chunks (sequential).

    h_ref / c_ref have constant block indices, so they stay VMEM resident across grid
    steps and double as the recurrent state (written back to HBM once at the end).
    """
    H, B, Tc = hidden, batch, chunk

    @pl.when(pl.program_id(0) == 0)
    def _():
        h_ref[...] = jnp.zeros_like(h_ref)
        c_ref[...] = jnp.zeros_like(c_ref)

    # Hoisted input projection for the whole chunk: one big MXU matmul
    #   gates_x = x_chunk @ W_ih^T + (b_ih + b_hh)           (Tc*B, 4H), f32 accumulation
    x_chunk = x_ref[...].reshape(Tc * B, x_ref.shape[2]).astype(wih_ref.dtype)
    gx_ref[...] = (
        jnp.dot(x_chunk, wih_ref[...], preferred_element_type=jnp.float32)
        + b_ref[...]
    ).reshape(Tc, B, 4 * H)

    def step(t, carry):
        h_prev, c_prev = carry                                    # f32 (B, H)
        # Recurrent projection: small (B, H) @ (H, 4H) matmul, bf16 in / f32 acc.
        gates = gx_ref[t] + jnp.dot(
            h_prev.astype(whh_ref.dtype), whh_ref[...],
            preferred_element_type=jnp.float32)
        # Gate slices are lane aligned because H is padded to a multiple of 128.
        i = jax.nn.sigmoid(gates[:, 0 * H:1 * H])                 # input gate
        f = jax.nn.sigmoid(gates[:, 1 * H:2 * H])                 # forget gate
        g = jnp.tanh(gates[:, 2 * H:3 * H])                       # cell candidate
        o = jax.nn.sigmoid(gates[:, 3 * H:4 * H])                 # output gate
        c_new = f * c_prev + i * g
        h_new = o * jnp.tanh(c_new)
        out_ref[t] = h_new.astype(out_ref.dtype)
        return h_new, c_new

    h_fin, c_fin = jax.lax.fori_loop(
        0, Tc, step, (h_ref[...], c_ref[...]), unroll=True)
    h_ref[...] = h_fin
    c_ref[...] = c_fin


def lstm_layer(x_seq, w_ih_t, w_hh_t, b, *, time_chunk, return_sequence):
    """Run one LSTM layer over a (padded) sequence with a Pallas kernel.

    x_seq  : (T, Bp, Ep)  f32   time-major activations (padded)
    w_ih_t : (Ep, 4*Hp)   bf16  pre-transposed input weights (per-gate padded)
    w_hh_t : (Hp, 4*Hp)   bf16  pre-transposed recurrent weights
    b      : (1, 4*Hp)    f32   b_ih + b_hh (per-gate padded)
    returns: outputs (T or Tc, Bp, Hp) f32, h_final (Bp, Hp) f32, c_final (Bp, Hp) f32
    """
    T, Bp, Ep = x_seq.shape
    Hp = w_hh_t.shape[0]
    Tc = time_chunk
    assert T % Tc == 0, "time_chunk must divide the sequence length"
    n_chunks = T // Tc

    kernel = functools.partial(_lstm_layer_kernel, hidden=Hp, batch=Bp, chunk=Tc)

    if return_sequence:
        seq_shape = (T, Bp, Hp)
        seq_index = lambda t: (t, 0, 0)
    else:
        # Encoder.forward discards the last layer's per-step outputs: keep the block
        # index constant so only one chunk-sized buffer exists (written back once).
        seq_shape = (Tc, Bp, Hp)
        seq_index = lambda t: (0, 0, 0)

    grid_spec = pltpu.PrefetchScalarGridSpec(
        num_scalar_prefetch=0,
        grid=(n_chunks,),
        in_specs=[
            pl.BlockSpec((Tc, Bp, Ep), lambda t: (t, 0, 0)),   # x chunk
            pl.BlockSpec((Ep, 4 * Hp), lambda t: (0, 0)),      # W_ih^T (resident)
            pl.BlockSpec((Hp, 4 * Hp), lambda t: (0, 0)),      # W_hh^T (resident)
            pl.BlockSpec((1, 4 * Hp), lambda t: (0, 0)),       # bias   (resident)
        ],
        out_specs=(
            pl.BlockSpec((Tc, Bp, Hp), seq_index),             # per-step hidden outputs
            pl.BlockSpec((Bp, Hp), lambda t: (0, 0)),          # final hidden (state)
            pl.BlockSpec((Bp, Hp), lambda t: (0, 0)),          # final cell   (state)
        ),
        scratch_shapes=[
            pltpu.VMEM((Tc, Bp, 4 * Hp), jnp.float32),         # hoisted input projection
        ],
    )

    return pl.pallas_call(
        kernel,
        grid_spec=grid_spec,
        out_shape=(
            jax.ShapeDtypeStruct(seq_shape, jnp.float32),
            jax.ShapeDtypeStruct((Bp, Hp), jnp.float32),
            jax.ShapeDtypeStruct((Bp, Hp), jnp.float32),
        ),
        compiler_params=pltpu.CompilerParams(
            dimension_semantics=("arbitrary",),                # time is sequential
        ),
    )(x_seq, w_ih_t, w_hh_t, b)


# ----------------------------- Parameter init & preparation -----------------------------

def init_encoder_params(key, vocab_size, embedding_size, hidden_size, num_layers):
    """Raw float32 parameters with torch.nn.Embedding / torch.nn.LSTM conventions."""
    keys = jax.random.split(key, 1 + 4 * num_layers)
    params = {
        "embedding": jax.random.normal(keys[0], (vocab_size, embedding_size), jnp.float32),
        "lstm": [],
    }
    k = 1.0 / jnp.sqrt(hidden_size)
    for layer in range(num_layers):
        in_size = embedding_size if layer == 0 else hidden_size
        kw = keys[1 + 4 * layer: 1 + 4 * (layer + 1)]
        params["lstm"].append({
            "w_ih": jax.random.uniform(kw[0], (4 * hidden_size, in_size), jnp.float32, -k, k),
            "w_hh": jax.random.uniform(kw[1], (4 * hidden_size, hidden_size), jnp.float32, -k, k),
            "b_ih": jax.random.uniform(kw[2], (4 * hidden_size,), jnp.float32, -k, k),
            "b_hh": jax.random.uniform(kw[3], (4 * hidden_size,), jnp.float32, -k, k),
        })
    return params


def _prep_layer_weights(w_ih, w_hh, b_ih, b_hh, in_pad, h_pad):
    """Pre-transpose + zero-pad one layer's weights so each gate block is 128-lane aligned.

    Returns W_ih^T (in_pad, 4*h_pad) bf16, W_hh^T (h_pad, 4*h_pad) bf16, bias (1, 4*h_pad) f32.
    """
    H4, In = w_ih.shape
    H = H4 // 4
    w4 = jnp.pad(w_ih.reshape(4, H, In), ((0, 0), (0, h_pad - H), (0, in_pad - In)))
    w_ih_t = jnp.transpose(w4, (2, 0, 1)).reshape(in_pad, 4 * h_pad).astype(jnp.bfloat16)
    w4 = jnp.pad(w_hh.reshape(4, H, H), ((0, 0), (0, h_pad - H), (0, h_pad - H)))
    w_hh_t = jnp.transpose(w4, (2, 0, 1)).reshape(h_pad, 4 * h_pad).astype(jnp.bfloat16)
    b = jnp.pad((b_ih + b_hh).reshape(4, H), ((0, 0), (0, h_pad - H)))
    b = b.reshape(1, 4 * h_pad).astype(jnp.float32)
    return w_ih_t, w_hh_t, b


def prepare_encoder_params(raw):
    """One-time preparation: pad embedding table, pre-transpose / pad / bf16-cast weights."""
    V, E = raw["embedding"].shape
    H = raw["lstm"][0]["w_hh"].shape[1]
    Ep, Hp = _round_up(E, LANE), _round_up(H, LANE)
    prepped = {
        "embedding": jnp.pad(raw["embedding"], ((0, 0), (0, Ep - E))),   # (V, Ep) f32
        "layers": [],
        "E": E, "Ep": Ep, "H": H, "Hp": Hp,
    }
    for li, lyr in enumerate(raw["lstm"]):
        in_pad = Ep if li == 0 else Hp
        prepped["layers"].append(
            _prep_layer_weights(lyr["w_ih"], lyr["w_hh"], lyr["b_ih"], lyr["b_hh"], in_pad, Hp))
    return prepped


# ----------------------------- Encoder forward (glue) -----------------------------

def encoder_forward(prepped, x, *, time_chunk=None):
    """x: (T, B) int32 token ids. Returns (hidden, cell), each (num_layers, B, H) f32."""
    T, B = x.shape
    Bp = _round_up(B, SUBLANE)
    H, Hp = prepped["H"], prepped["Hp"]
    Tc = time_chunk or _choose_chunk(T)

    x_pad = jnp.pad(x, ((0, 0), (0, Bp - B)))                   # pad batch with token 0
    emb = jnp.take(prepped["embedding"], x_pad, axis=0)         # (T, Bp, Ep) embedding gather
    # TODO(synk): nn.Dropout treated as identity (eval/inference mode); no stochastic masking.

    seq = emb
    h_list, c_list = [], []
    n_layers = len(prepped["layers"])
    for li, (w_ih_t, w_hh_t, b) in enumerate(prepped["layers"]):
        seq, h_n, c_n = lstm_layer(
            seq, w_ih_t, w_hh_t, b,
            time_chunk=Tc,
            return_sequence=(li < n_layers - 1))                # inter-layer dropout = identity
        h_list.append(h_n)
        c_list.append(c_n)

    hidden = jnp.stack(h_list, axis=0)[:, :B, :H]               # drop padding
    cell = jnp.stack(c_list, axis=0)[:, :B, :H]
    return hidden, cell


# ----------------------------- Pure-JAX reference (correctness check) -----------------------------

def encoder_reference(raw, x):
    emb = jnp.take(raw["embedding"], x, axis=0)
    layer_in = emb
    h_list, c_list = [], []
    for lyr in raw["lstm"]:
        w_ih, w_hh = lyr["w_ih"], lyr["w_hh"]
        b = lyr["b_ih"] + lyr["b_hh"]
        H = w_hh.shape[1]
        B = layer_in.shape[1]

        def step(carry, x_t, w_ih=w_ih, w_hh=w_hh, b=b, H=H):
            h_prev, c_prev = carry
            gates = x_t @ w_ih.T + h_prev @ w_hh.T + b
            i = jax.nn.sigmoid(gates[:, 0 * H:1 * H])
            f = jax.nn.sigmoid(gates[:, 1 * H:2 * H])
            g = jnp.tanh(gates[:, 2 * H:3 * H])
            o = jax.nn.sigmoid(gates[:, 3 * H:4 * H])
            c = f * c_prev + i * g
            h = o * jnp.tanh(c)
            return (h, c), h

        init = (jnp.zeros((B, H), jnp.float32), jnp.zeros((B, H), jnp.float32))
        (h_n, c_n), outs = jax.lax.scan(step, init, layer_in)
        h_list.append(h_n)
        c_list.append(c_n)
        layer_in = outs
    return jnp.stack(h_list, axis=0), jnp.stack(c_list, axis=0)


# ----------------------------- Main -----------------------------

if __name__ == "__main__":
    # Small shapes consistent with the module (spec uses hidden=1024, num_layers=2;
    # scaled down here). B=2 / E=32 / H=32 exercise the (8,128) padding path; T=32 with
    # time-chunk 16 exercises cross-chunk state carry.
    VOCAB, EMB, HID, LAYERS, T, B = 50, 32, 32, 2, 32, 2

    key = jax.random.PRNGKey(0)
    k_params, k_x = jax.random.split(key)
    raw_params = init_encoder_params(k_params, VOCAB, EMB, HID, LAYERS)
    prepped = prepare_encoder_params(raw_params)
    x = jax.random.randint(k_x, (T, B), 0, VOCAB, dtype=jnp.int32)

    hidden, cell = encoder_forward(prepped, x)
    hidden = jax.block_until_ready(hidden)
    cell = jax.block_until_ready(cell)

    # Validate against the pure-f32 JAX reference. bf16 MXU inputs => relaxed tolerance.
    h_ref, c_ref = encoder_reference(raw_params, x)
    assert hidden.shape == (LAYERS, B, HID) and cell.shape == (LAYERS, B, HID)
    assert jnp.allclose(hidden, h_ref, atol=5e-2, rtol=5e-2), \
        f"hidden max abs err {float(jnp.max(jnp.abs(hidden - h_ref)))}"
    assert jnp.allclose(cell, c_ref, atol=5e-2, rtol=5e-2), \
        f"cell max abs err {float(jnp.max(jnp.abs(cell - c_ref)))}"

    print("KERNEL_OK")
</pallas_src>

<mosaic_0001>
module attributes {stable_mosaic.version = 11 : i64} {
  func.func @_lstm_layer_kernel(%arg0: i32, %arg1: memref<16x8x128xf32, #tpu.memory_space<vmem>>, %arg2: memref<128x512xbf16, #tpu.memory_space<vmem>>, %arg3: memref<128x512xbf16, #tpu.memory_space<vmem>>, %arg4: memref<1x512xf32, #tpu.memory_space<vmem>>, %arg5: memref<16x8x128xf32, #tpu.memory_space<vmem>>, %arg6: memref<8x128xf32, #tpu.memory_space<vmem>>, %arg7: memref<8x128xf32, #tpu.memory_space<vmem>>, %arg8: memref<16x8x512xf32, #tpu.memory_space<vmem>>) attributes {dimension_semantics = [#tpu.dimension_semantics<arbitrary>], iteration_bounds = array<i64: 2>, scalar_prefetch = 0 : i64, scratch_operands = 1 : i64, tpu.core_type = #tpu.core_type<tc>, window_params = [{transform_indices = @transform_0, window_bounds = array<i64: 16, 8, 128>}, {pipeline_mode = #tpu.pipeline_mode<synchronous>, transform_indices = @transform_1, window_bounds = array<i64: 128, 512>}, {pipeline_mode = #tpu.pipeline_mode<synchronous>, transform_indices = @transform_2, window_bounds = array<i64: 128, 512>}, {pipeline_mode = #tpu.pipeline_mode<synchronous>, transform_indices = @transform_3, window_bounds = array<i64: 1, 512>}, {transform_indices = @transform_4, window_bounds = array<i64: 16, 8, 128>}, {pipeline_mode = #tpu.pipeline_mode<synchronous>, transform_indices = @transform_5, window_bounds = array<i64: 8, 128>}, {pipeline_mode = #tpu.pipeline_mode<synchronous>, transform_indices = @transform_6, window_bounds = array<i64: 8, 128>}]} {
    %c0_i32 = arith.constant 0 : i32
    %0 = arith.cmpi eq, %arg0, %c0_i32 : i32
    %1 = arith.extui %0 : i1 to i32
    %c0_i32_0 = arith.constant 0 : i32
    %2 = arith.cmpi ne, %1, %c0_i32_0 : i32
    scf.if %2 {
      %cst_179 = arith.constant 0.000000e+00 : f32
      %593 = vector.broadcast %cst_179 : f32 to vector<8x128xf32>
      %c0_180 = arith.constant 0 : index
      %c0_181 = arith.constant 0 : index
      %594 = vector.load %arg6[%c0_180, %c0_181] : memref<8x128xf32, #tpu.memory_space<vmem>>, vector<8x128xf32>
      tpu.vector_store %arg6[%c0_180, %c0_181], %593 {strides = array<i32>} : memref<8x128xf32, #tpu.memory_space<vmem>>, vector<8x128xf32>,
      %cst_182 = arith.constant 0.000000e+00 : f32
      %595 = vector.broadcast %cst_182 : f32 to vector<8x128xf32>
      %c0_183 = arith.constant 0 : index
      %c0_184 = arith.constant 0 : index
      %596 = vector.load %arg7[%c0_183, %c0_184] : memref<8x128xf32, #tpu.memory_space<vmem>>, vector<8x128xf32>
      tpu.vector_store %arg7[%c0_183, %c0_184], %595 {strides = array<i32>} : memref<8x128xf32, #tpu.memory_space<vmem>>, vector<8x128xf32>,
    } else {
    }
    %c0 = arith.constant 0 : index
    %c0_1 = arith.constant 0 : index
    %c0_2 = arith.constant 0 : index
    %3 = vector.load %arg1[%c0, %c0_1, %c0_2] : memref<16x8x128xf32, #tpu.memory_space<vmem>>, vector<16x8x128xf32>
    %4 = vector.shape_cast %3 : vector<16x8x128xf32> to vector<128x128xf32>
    %5 = arith.truncf %4 : vector<128x128xf32> to vector<128x128xbf16>
    %c0_3 = arith.constant 0 : index
    %c0_4 = arith.constant 0 : index
    %6 = vector.load %arg2[%c0_3, %c0_4] : memref<128x512xbf16, #tpu.memory_space<vmem>>, vector<128x512xbf16>
    %cst = arith.constant dense<0.000000e+00> : vector<128x512xf32>
    %7 = tpu.matmul %5, %6, %cst {dimension_numbers = #tpu.dot_dimension_numbers<[1], [0], [0], [1], [0, 0, 1, 1], [], []>} : vector<128x128xbf16>, vector<128x512xbf16>, vector<128x512xf32> -> vector<128x512xf32>
    %c0_5 = arith.constant 0 : index
    %c0_6 = arith.constant 0 : index
    %8 = vector.load %arg4[%c0_5, %c0_6] : memref<1x512xf32, #tpu.memory_space<vmem>>, vector<1x512xf32>
    %9 = vector.broadcast %8 : vector<1x512xf32> to vector<128x512xf32>
    %10 = arith.addf %7, %9 : vector<128x512xf32>
    %11 = vector.shape_cast %10 : vector<128x512xf32> to vector<16x8x512xf32>
    %c0_7 = arith.constant 0 : index
    %c0_8 = arith.constant 0 : index
    %c0_9 = arith.constant 0 : index
    %12 = vector.load %arg8[%c0_7, %c0_8, %c0_9] : memref<16x8x512xf32, #tpu.memory_space<vmem>>, vector<16x8x512xf32>
    tpu.vector_store %arg8[%c0_7, %c0_8, %c0_9], %11 {strides = array<i32>} : memref<16x8x512xf32, #tpu.memory_space<vmem>>, vector<16x8x512xf32>,
    %c0_10 = arith.constant 0 : index
    %c0_11 = arith.constant 0 : index
    %13 = vector.load %arg6[%c0_10, %c0_11] : memref<8x128xf32, #tpu.memory_space<vmem>>, vector<8x128xf32>
    %c0_12 = arith.constant 0 : index
    %c0_13 = arith.constant 0 : index
    %14 = vector.load %arg7[%c0_12, %c0_13] : memref<8x128xf32, #tpu.memory_space<vmem>>, vector<8x128xf32>
    %c0_i32_14 = arith.constant 0 : i32
    %15 = arith.index_cast %c0_i32_14 : i32 to index
    %c0_15 = arith.constant 0 : index
    %c0_16 = arith.constant 0 : index
    %16 = vector.load %arg8[%15, %c0_15, %c0_16] : memref<16x8x512xf32, #tpu.memory_space<vmem>>, vector<1x8x512xf32>
    %17 = vector.shape_cast %16 : vector<1x8x512xf32> to vector<8x512xf32>
    %18 = arith.truncf %13 : vector<8x128xf32> to vector<8x128xbf16>
    %c0_17 = arith.constant 0 : index
    %c0_18 = arith.constant 0 : index
    %19 = vector.load %arg3[%c0_17, %c0_18] : memref<128x512xbf16, #tpu.memory_space<vmem>>, vector<128x512xbf16>
    %cst_19 = arith.constant dense<0.000000e+00> : vector<8x512xf32>
    %20 = tpu.matmul %18, %19, %cst_19 {dimension_numbers = #tpu.dot_dimension_numbers<[1], [0], [0], [1], [0, 0, 1, 1], [], []>} : vector<8x128xbf16>, vector<128x512xbf16>, vector<8x512xf32> -> vector<8x512xf32>
    %21 = arith.addf %17, %20 : vector<8x512xf32>
    %22 = vector.extract_strided_slice %21 {offsets = [0, 0], sizes = [8, 128], strides = [1, 1]} : vector<8x512xf32> to vector<8x128xf32>
    %23 = arith.negf %22 : vector<8x128xf32>
    %24 = math.exp %23 : vector<8x128xf32>
    %cst_20 = arith.constant 1.000000e+00 : f32
    %25 = vector.broadcast %cst_20 : f32 to vector<8x128xf32>
    %26 = arith.addf %25, %24 : vector<8x128xf32>
    %27 = arith.divf %25, %26 : vector<8x128xf32>
    %28 = vector.extract_strided_slice %21 {offsets = [0, 128], sizes = [8, 128], strides = [1, 1]} : vector<8x512xf32> to vector<8x128xf32>
    %29 = arith.negf %28 : vector<8x128xf32>
    %30 = math.exp %29 : vector<8x128xf32>
    %cst_21 = arith.constant 1.000000e+00 : f32
    %31 = vector.broadcast %cst_21 : f32 to vector<8x128xf32>
    %32 = arith.addf %31, %30 : vector<8x128xf32>
    %33 = arith.divf %31, %32 : vector<8x128xf32>
    %34 = vector.extract_strided_slice %21 {offsets = [0, 256], sizes = [8, 128], strides = [1, 1]} : vector<8x512xf32> to vector<8x128xf32>
    %35 = math.tanh %34 : vector<8x128xf32>
    %36 = vector.extract_strided_slice %21 {offsets = [0, 384], sizes = [8, 128], strides = [1, 1]} : vector<8x512xf32> to vector<8x128xf32>
    %37 = arith.negf %36 : vector<8x128xf32>
    %38 = math.exp %37 : vector<8x128xf32>
    %cst_22 = arith.constant 1.000000e+00 : f32
    %39 = vector.broadcast %cst_22 : f32 to vector<8x128xf32>
    %40 = arith.addf %39, %38 : vector<8x128xf32>
    %41 = arith.divf %39, %40 : vector<8x128xf32>
    %42 = arith.mulf %33, %14 : vector<8x128xf32>
    %43 = arith.mulf %27, %35 : vector<8x128xf32>
    %44 = arith.addf %42, %43 : vector<8x128xf32>
    %45 = math.tanh %44 : vector<8x128xf32>
    %46 = arith.mulf %41, %45 : vector<8x128xf32>
    %47 = arith.index_cast %c0_i32_14 : i32 to index
    %c0_23 = arith.constant 0 : index
    %c0_24 = arith.constant 0 : index
    %48 = vector.load %arg5[%47, %c0_23, %c0_24] : memref<16x8x128xf32, #tpu.memory_space<vmem>>, vector<1x8x128xf32>
    %49 = vector.shape_cast %48 : vector<1x8x128xf32> to vector<8x128xf32>
    %50 = vector.shape_cast %46 : vector<8x128xf32> to vector<1x8x128xf32>
    tpu.vector_store %arg5[%47, %c0_23, %c0_24], %50 {strides = array<i32>} : memref<16x8x128xf32, #tpu.memory_space<vmem>>, vector<1x8x128xf32>,
    %c1_i32 = arith.constant 1 : i32
    %51 = arith.index_cast %c1_i32 : i32 to index
    %c0_25 = arith.constant 0 : index
    %c0_26 = arith.constant 0 : index
    %52 = vector.load %arg8[%51, %c0_25, %c0_26] : memref<16x8x512xf32, #tpu.memory_space<vmem>>, vector<1x8x512xf32>
    %53 = vector.shape_cast %52 : vector<1x8x512xf32> to vector<8x512xf32>
    %54 = arith.truncf %46 : vector<8x128xf32> to vector<8x128xbf16>
    %c0_27 = arith.constant 0 : index
    %c0_28 = arith.constant 0 : index
    %55 = vector.load %arg3[%c0_27, %c0_28] : memref<128x512xbf16, #tpu.memory_space<vmem>>, vector<128x512xbf16>
    %cst_29 = arith.constant dense<0.000000e+00> : vector<8x512xf32>
    %56 = tpu.matmul %54, %55, %cst_29 {dimension_numbers = #tpu.dot_dimension_numbers<[1], [0], [0], [1], [0, 0, 1, 1], [], []>} : vector<8x128xbf16>, vector<128x512xbf16>, vector<8x512xf32> -> vector<8x512xf32>
    %57 = arith.addf %53, %56 : vector<8x512xf32>
    %58 = vector.extract_strided_slice %57 {offsets = [0, 0], sizes = [8, 128], strides = [1, 1]} : vector<8x512xf32> to vector<8x128xf32>
    %59 = arith.negf %58 : vector<8x128xf32>
    %60 = math.exp %59 : vector<8x128xf32>
    %cst_30 = arith.constant 1.000000e+00 : f32
    %61 = vector.broadcast %cst_30 : f32 to vector<8x128xf32>
    %62 = arith.addf %61, %60 : vector<8x128xf32>
    %63 = arith.divf %61, %62 : vector<8x128xf32>
    %64 = vector.extract_strided_slice %57 {offsets = [0, 128], sizes = [8, 128], strides = [1, 1]} : vector<8x512xf32> to vector<8x128xf32>
    %65 = arith.negf %64 : vector<8x128xf32>
    %66 = math.exp %65 : vector<8x128xf32>
    %cst_31 = arith.constant 1.000000e+00 : f32
    %67 = vector.broadcast %cst_31 : f32 to vector<8x128xf32>
    %68 = arith.addf %67, %66 : vector<8x128xf32>
    %69 = arith.divf %67, %68 : vector<8x128xf32>
    %70 = vector.extract_strided_slice %57 {offsets = [0, 256], sizes = [8, 128], strides = [1, 1]} : vector<8x512xf32> to vector<8x128xf32>
    %71 = math.tanh %70 : vector<8x128xf32>
    %72 = vector.extract_strided_slice %57 {offsets = [0, 384], sizes = [8, 128], strides = [1, 1]} : vector<8x512xf32> to vector<8x128xf32>
    %73 = arith.negf %72 : vector<8x128xf32>
    %74 = math.exp %73 : vector<8x128xf32>
    %cst_32 = arith.constant 1.000000e+00 : f32
    %75 = vector.broadcast %cst_32 : f32 to vector<8x128xf32>
    %76 = arith.addf %75, %74 : vector<8x128xf32>
    %77 = arith.divf %75, %76 : vector<8x128xf32>
    %78 = arith.mulf %69, %44 : vector<8x128xf32>
    %79 = arith.mulf %63, %71 : vector<8x128xf32>
    %80 = arith.addf %78, %79 : vector<8x128xf32>
    %81 = math.tanh %80 : vector<8x128xf32>
    %82 = arith.mulf %77, %81 : vector<8x128xf32>
    %83 = arith.index_cast %c1_i32 : i32 to index
    %c0_33 = arith.constant 0 : index
    %c0_34 = arith.constant 0 : index
    %84 = vector.load %arg5[%83, %c0_33, %c0_34] : memref<16x8x128xf32, #tpu.memory_space<vmem>>, vector<1x8x128xf32>
    %85 = vector.shape_cast %84 : vector<1x8x128xf32> to vector<8x128xf32>
    %86 = vector.shape_cast %82 : vector<8x128xf32> to vector<1x8x128xf32>
    tpu.vector_store %arg5[%83, %c0_33, %c0_34], %86 {strides = array<i32>} : memref<16x8x128xf32, #tpu.memory_space<vmem>>, vector<1x8x128xf32>,
    %c2_i32 = arith.constant 2 : i32
    %87 = arith.index_cast %c2_i32 : i32 to index
    %c0_35 = arith.constant 0 : index
    %c0_36 = arith.constant 0 : index
    %88 = vector.load %arg8[%87, %c0_35, %c0_36] : memref<16x8x512xf32, #tpu.memory_space<vmem>>, vector<1x8x512xf32>
    %89 = vector.shape_cast %88 : vector<1x8x512xf32> to vector<8x512xf32>
    %90 = arith.truncf %82 : vector<8x128xf32> to vector<8x128xbf16>
    %c0_37 = arith.constant 0 : index
    %c0_38 = arith.constant 0 : index
    %91 = vector.load %arg3[%c0_37, %c0_38] : memref<128x512xbf16, #tpu.memory_space<vmem>>, vector<128x512xbf16>
    %cst_39 = arith.constant dense<0.000000e+00> : vector<8x512xf32>
    %92 = tpu.matmul %90, %91, %cst_39 {dimension_numbers = #tpu.dot_dimension_numbers<[1], [0], [0], [1], [0, 0, 1, 1], [], []>} : vector<8x128xbf16>, vector<128x512xbf16>, vector<8x512xf32> -> vector<8x512xf32>
    %93 = arith.addf %89, %92 : vector<8x512xf32>
    %94 = vector.extract_strided_slice %93 {offsets = [0, 0], sizes = [8, 128], strides = [1, 1]} : vector<8x512xf32> to vector<8x128xf32>
    %95 = arith.negf %94 : vector<8x128xf32>
    %96 = math.exp %95 : vector<8x128xf32>
    %cst_40 = arith.constant 1.000000e+00 : f32
    %97 = vector.broadcast %cst_40 : f32 to vector<8x128xf32>
    %98 = arith.addf %97, %96 : vector<8x128xf32>
    %99 = arith.divf %97, %98 : vector<8x128xf32>
    %100 = vector.extract_strided_slice %93 {offsets = [0, 128], sizes = [8, 128], strides = [1, 1]} : vector<8x512xf32> to vector<8x128xf32>
    %101 = arith.negf %100 : vector<8x128xf32>
    %102 = math.exp %101 : vector<8x128xf32>
    %cst_41 = arith.constant 1.000000e+00 : f32
    %103 = vector.broadcast %cst_41 : f32 to vector<8x128xf32>
    %104 = arith.addf %103, %102 : vector<8x128xf32>
    %105 = arith.divf %103, %104 : vector<8x128xf32>
    %106 = vector.extract_strided_slice %93 {offsets = [0, 256], sizes = [8, 128], strides = [1, 1]} : vector<8x512xf32> to vector<8x128xf32>
    %107 = math.tanh %106 : vector<8x128xf32>
    %108 = vector.extract_strided_slice %93 {offsets = [0, 384], sizes = [8, 128], strides = [1, 1]} : vector<8x512xf32> to vector<8x128xf32>
    %109 = arith.negf %108 : vector<8x128xf32>
    %110 = math.exp %109 : vector<8x128xf32>
    %cst_42 = arith.constant 1.000000e+00 : f32
    %111 = vector.broadcast %cst_42 : f32 to vector<8x128xf32>
    %112 = arith.addf %111, %110 : vector<8x128xf32>
    %113 = arith.divf %111, %112 : vector<8x128xf32>
    %114 = arith.mulf %105, %80 : vector<8x128xf32>
    %115 = arith.mulf %99, %107 : vector<8x128xf32>
    %116 = arith.addf %114, %115 : vector<8x128xf32>
    %117 = math.tanh %116 : vector<8x128xf32>
    %118 = arith.mulf %113, %117 : vector<8x128xf32>
    %119 = arith.index_cast %c2_i32 : i32 to index
    %c0_43 = arith.constant 0 : index
    %c0_44 = arith.constant 0 : index
    %120 = vector.load %arg5[%119, %c0_43, %c0_44] : memref<16x8x128xf32, #tpu.memory_space<vmem>>, vector<1x8x128xf32>
    %121 = vector.shape_cast %120 : vector<1x8x128xf32> to vector<8x128xf32>
    %122 = vector.shape_cast %118 : vector<8x128xf32> to vector<1x8x128xf32>
    tpu.vector_store %arg5[%119, %c0_43, %c0_44], %122 {strides = array<i32>} : memref<16x8x128xf32, #tpu.memory_space<vmem>>, vector<1x8x128xf32>,
    %c3_i32 = arith.constant 3 : i32
    %123 = arith.index_cast %c3_i32 : i32 to index
    %c0_45 = arith.constant 0 : index
    %c0_46 = arith.constant 0 : index
    %124 = vector.load %arg8[%123, %c0_45, %c0_46] : memref<16x8x512xf32, #tpu.memory_space<vmem>>, vector<1x8x512xf32>
    %125 = vector.shape_cast %124 : vector<1x8x512xf32> to vector<8x512xf32>
    %126 = arith.truncf %118 : vector<8x128xf32> to vector<8x128xbf16>
    %c0_47 = arith.constant 0 : index
    %c0_48 = arith.constant 0 : index
    %127 = vector.load %arg3[%c0_47, %c0_48] : memref<128x512xbf16, #tpu.memory_space<vmem>>, vector<128x512xbf16>
    %cst_49 = arith.constant dense<0.000000e+00> : vector<8x512xf32>
    %128 = tpu.matmul %126, %127, %cst_49 {dimension_numbers = #tpu.dot_dimension_numbers<[1], [0], [0], [1], [0, 0, 1, 1], [], []>} : vector<8x128xbf16>, vector<128x512xbf16>, vector<8x512xf32> -> vector<8x512xf32>
    %129 = arith.addf %125, %128 : vector<8x512xf32>
    %130 = vector.extract_strided_slice %129 {offsets = [0, 0], sizes = [8, 128], strides = [1, 1]} : vector<8x512xf32> to vector<8x128xf32>
    %131 = arith.negf %130 : vector<8x128xf32>
    %132 = math.exp %131 : vector<8x128xf32>
    %cst_50 = arith.constant 1.000000e+00 : f32
    %133 = vector.broadcast %cst_50 : f32 to vector<8x128xf32>
    %134 = arith.addf %133, %132 : vector<8x128xf32>
    %135 = arith.divf %133, %134 : vector<8x128xf32>
    %136 = vector.extract_strided_slice %129 {offsets = [0, 128], sizes = [8, 128], strides = [1, 1]} : vector<8x512xf32> to vector<8x128xf32>
    %137 = arith.negf %136 : vector<8x128xf32>
    %138 = math.exp %137 : vector<8x128xf32>
    %cst_51 = arith.constant 1.000000e+00 : f32
    %139 = vector.broadcast %cst_51 : f32 to vector<8x128xf32>
    %140 = arith.addf %139, %138 : vector<8x128xf32>
    %141 = arith.divf %139, %140 : vector<8x128xf32>
    %142 = vector.extract_strided_slice %129 {offsets = [0, 256], sizes = [8, 128], strides = [1, 1]} : vector<8x512xf32> to vector<8x128xf32>
    %143 = math.tanh %142 : vector<8x128xf32>
    %144 = vector.extract_strided_slice %129 {offsets = [0, 384], sizes = [8, 128], strides = [1, 1]} : vector<8x512xf32> to vector<8x128xf32>
    %145 = arith.negf %144 : vector<8x128xf32>
    %146 = math.exp %145 : vector<8x128xf32>
    %cst_52 = arith.constant 1.000000e+00 : f32
    %147 = vector.broadcast %cst_52 : f32 to vector<8x128xf32>
    %148 = arith.addf %147, %146 : vector<8x128xf32>
    %149 = arith.divf %147, %148 : vector<8x128xf32>
    %150 = arith.mulf %141, %116 : vector<8x128xf32>
    %151 = arith.mulf %135, %143 : vector<8x128xf32>
    %152 = arith.addf %150, %151 : vector<8x128xf32>
    %153 = math.tanh %152 : vector<8x128xf32>
    %154 = arith.mulf %149, %153 : vector<8x128xf32>
    %155 = arith.index_cast %c3_i32 : i32 to index
    %c0_53 = arith.constant 0 : index
    %c0_54 = arith.constant 0 : index
    %156 = vector.load %arg5[%155, %c0_53, %c0_54] : memref<16x8x128xf32, #tpu.memory_space<vmem>>, vector<1x8x128xf32>
    %157 = vector.shape_cast %156 : vector<1x8x128xf32> to vector<8x128xf32>
    %158 = vector.shape_cast %154 : vector<8x128xf32> to vector<1x8x128xf32>
    tpu.vector_store %arg5[%155, %c0_53, %c0_54], %158 {strides = array<i32>} : memref<16x8x128xf32, #tpu.memory_space<vmem>>, vector<1x8x128xf32>,
    %c4_i32 = arith.constant 4 : i32
    %159 = arith.index_cast %c4_i32 : i32 to index
    %c0_55 = arith.constant 0 : index
    %c0_56 = arith.constant 0 : index
    %160 = vector.load %arg8[%159, %c0_55, %c0_56] : memref<16x8x512xf32, #tpu.memory_space<vmem>>, vector<1x8x512xf32>
    %161 = vector.shape_cast %160 : vector<1x8x512xf32> to vector<8x512xf32>
    %162 = arith.truncf %154 : vector<8x128xf32> to vector<8x128xbf16>
    %c0_57 = arith.constant 0 : index
    %c0_58 = arith.constant 0 : index
    %163 = vector.load %arg3[%c0_57, %c0_58] : memref<128x512xbf16, #tpu.memory_space<vmem>>, vector<128x512xbf16>
    %cst_59 = arith.constant dense<0.000000e+00> : vector<8x512xf32>
    %164 = tpu.matmul %162, %163, %cst_59 {dimension_numbers = #tpu.dot_dimension_numbers<[1], [0], [0], [1], [0, 0, 1, 1], [], []>} : vector<8x128xbf16>, vector<128x512xbf16>, vector<8x512xf32> -> vector<8x512xf32>
    %165 = arith.addf %161, %164 : vector<8x512xf32>
    %166 = vector.extract_strided_slice %165 {offsets = [0, 0], sizes = [8, 128], strides = [1, 1]} : vector<8x512xf32> to vector<8x128xf32>
    %167 = arith.negf %166 : vector<8x128xf32>
    %168 = math.exp %167 : vector<8x128xf32>
    %cst_60 = arith.constant 1.000000e+00 : f32
    %169 = vector.broadcast %cst_60 : f32 to vector<8x128xf32>
    %170 = arith.addf %169, %168 : vector<8x128xf32>
    %171 = arith.divf %169, %170 : vector<8x128xf32>
    %172 = vector.extract_strided_slice %165 {offsets = [0, 128], sizes = [8, 128], strides = [1, 1]} : vector<8x512xf32> to vector<8x128xf32>
    %173 = arith.negf %172 : vector<8x128xf32>
    %174 = math.exp %173 : vector<8x128xf32>
    %cst_61 = arith.constant 1.000000e+00 : f32
    %175 = vector.broadcast %cst_61 : f32 to vector<8x128xf32>
    %176 = arith.addf %175, %174 : vector<8x128xf32>
    %177 = arith.divf %175, %176 : vector<8x128xf32>
    %178 = vector.extract_strided_slice %165 {offsets = [0, 256], sizes = [8, 128], strides = [1, 1]} : vector<8x512xf32> to vector<8x128xf32>
    %179 = math.tanh %178 : vector<8x128xf32>
    %180 = vector.extract_strided_slice %165 {offsets = [0, 384], sizes = [8, 128], strides = [1, 1]} : vector<8x512xf32> to vector<8x128xf32>
    %181 = arith.negf %180 : vector<8x128xf32>
    %182 = math.exp %181 : vector<8x128xf32>
    %cst_62 = arith.constant 1.000000e+00 : f32
    %183 = vector.broadcast %cst_62 : f32 to vector<8x128xf32>
    %184 = arith.addf %183, %182 : vector<8x128xf32>
    %185 = arith.divf %183, %184 : vector<8x128xf32>
    %186 = arith.mulf %177, %152 : vector<8x128xf32>
    %187 = arith.mulf %171, %179 : vector<8x128xf32>
    %188 = arith.addf %186, %187 : vector<8x128xf32>
    %189 = math.tanh %188 : vector<8x128xf32>
    %190 = arith.mulf %185, %189 : vector<8x128xf32>
    %191 = arith.index_cast %c4_i32 : i32 to index
    %c0_63 = arith.constant 0 : index
    %c0_64 = arith.constant 0 : index
    %192 = vector.load %arg5[%191, %c0_63, %c0_64] : memref<16x8x128xf32, #tpu.memory_space<vmem>>, vector<1x8x128xf32>
    %193 = vector.shape_cast %192 : vector<1x8x128xf32> to vector<8x128xf32>
    %194 = vector.shape_cast %190 : vector<8x128xf32> to vector<1x8x128xf32>
    tpu.vector_store %arg5[%191, %c0_63, %c0_64], %194 {strides = array<i32>} : memref<16x8x128xf32, #tpu.memory_space<vmem>>, vector<1x8x128xf32>,
    %c5_i32 = arith.constant 5 : i32
    %195 = arith.index_cast %c5_i32 : i32 to index
    %c0_65 = arith.constant 0 : index
    %c0_66 = arith.constant 0 : index
    %196 = vector.load %arg8[%195, %c0_65, %c0_66] : memref<16x8x512xf32, #tpu.memory_space<vmem>>, vector<1x8x512xf32>
    %197 = vector.shape_cast %196 : vector<1x8x512xf32> to vector<8x512xf32>
    %198 = arith.truncf %190 : vector<8x128xf32> to vector<8x128xbf16>
    %c0_67 = arith.constant 0 : index
    %c0_68 = arith.constant 0 : index
    %199 = vector.load %arg3[%c0_67, %c0_68] : memref<128x512xbf16, #tpu.memory_space<vmem>>, vector<128x512xbf16>
    %cst_69 = arith.constant dense<0.000000e+00> : vector<8x512xf32>
    %200 = tpu.matmul %198, %199, %cst_69 {dimension_numbers = #tpu.dot_dimension_numbers<[1], [0], [0], [1], [0, 0, 1, 1], [], []>} : vector<8x128xbf16>, vector<128x512xbf16>, vector<8x512xf32> -> vector<8x512xf32>
    %201 = arith.addf %197, %200 : vector<8x512xf32>
    %202 = vector.extract_strided_slice %201 {offsets = [0, 0], sizes = [8, 128], strides = [1, 1]} : vector<8x512xf32> to vector<8x128xf32>
    %203 = arith.negf %202 : vector<8x128xf32>
    %204 = math.exp %203 : vector<8x128xf32>
    %cst_70 = arith.constant 1.000000e+00 : f32
    %205 = vector.broadcast %cst_70 : f32 to vector<8x128xf32>
    %206 = arith.addf %205, %204 : vector<8x128xf32>
    %207 = arith.divf %205, %206 : vector<8x128xf32>
    %208 = vector.extract_strided_slice %201 {offsets = [0, 128], sizes = [8, 128], strides = [1, 1]} : vector<8x512xf32> to vector<8x128xf32>
    %209 = arith.negf %208 : vector<8x128xf32>
    %210 = math.exp %209 : vector<8x128xf32>
    %cst_71 = arith.constant 1.000000e+00 : f32
    %211 = vector.broadcast %cst_71 : f32 to vector<8x128xf32>
    %212 = arith.addf %211, %210 : vector<8x128xf32>
    %213 = arith.divf %211, %212 : vector<8x128xf32>
    %214 = vector.extract_strided_slice %201 {offsets = [0, 256], sizes = [8, 128], strides = [1, 1]} : vector<8x512xf32> to vector<8x128xf32>
    %215 = math.tanh %214 : vector<8x128xf32>
    %216 = vector.extract_strided_slice %201 {offsets = [0, 384], sizes = [8, 128], strides = [1, 1]} : vector<8x512xf32> to vector<8x128xf32>
    %217 = arith.negf %216 : vector<8x128xf32>
    %218 = math.exp %217 : vector<8x128xf32>
    %cst_72 = arith.constant 1.000000e+00 : f32
    %219 = vector.broadcast %cst_72 : f32 to vector<8x128xf32>
    %220 = arith.addf %219, %218 : vector<8x128xf32>
    %221 = arith.divf %219, %220 : vector<8x128xf32>
    %222 = arith.mulf %213, %188 : vector<8x128xf32>
    %223 = arith.mulf %207, %215 : vector<8x128xf32>
    %224 = arith.addf %222, %223 : vector<8x128xf32>
    %225 = math.tanh %224 : vector<8x128xf32>
    %226 = arith.mulf %221, %225 : vector<8x128xf32>
    %227 = arith.index_cast %c5_i32 : i32 to index
    %c0_73 = arith.constant 0 : index
    %c0_74 = arith.constant 0 : index
    %228 = vector.load %arg5[%227, %c0_73, %c0_74] : memref<16x8x128xf32, #tpu.memory_space<vmem>>, vector<1x8x128xf32>
    %229 = vector.shape_cast %228 : vector<1x8x128xf32> to vector<8x128xf32>
    %230 = vector.shape_cast %226 : vector<8x128xf32> to vector<1x8x128xf32>
    tpu.vector_store %arg5[%227, %c0_73, %c0_74], %230 {strides = array<i32>} : memref<16x8x128xf32, #tpu.memory_space<vmem>>, vector<1x8x128xf32>,
    %c6_i32 = arith.constant 6 : i32
    %231 = arith.index_cast %c6_i32 : i32 to index
    %c0_75 = arith.constant 0 : index
    %c0_76 = arith.constant 0 : index
    %232 = vector.load %arg8[%231, %c0_75, %c0_76] : memref<16x8x512xf32, #tpu.memory_space<vmem>>, vector<1x8x512xf32>
    %233 = vector.shape_cast %232 : vector<1x8x512xf32> to vector<8x512xf32>
    %234 = arith.truncf %226 : vector<8x128xf32> to vector<8x128xbf16>
    %c0_77 = arith.constant 0 : index
    %c0_78 = arith.constant 0 : index
    %235 = vector.load %arg3[%c0_77, %c0_78] : memref<128x512xbf16, #tpu.memory_space<vmem>>, vector<128x512xbf16>
    %cst_79 = arith.constant dense<0.000000e+00> : vector<8x512xf32>
    %236 = tpu.matmul %234, %235, %cst_79 {dimension_numbers = #tpu.dot_dimension_numbers<[1], [0], [0], [1], [0, 0, 1, 1], [], []>} : vector<8x128xbf16>, vector<128x512xbf16>, vector<8x512xf32> -> vector<8x512xf32>
    %237 = arith.addf %233, %236 : vector<8x512xf32>
    %238 = vector.extract_strided_slice %237 {offsets = [0, 0], sizes = [8, 128], strides = [1, 1]} : vector<8x512xf32> to vector<8x128xf32>
    %239 = arith.negf %238 : vector<8x128xf32>
    %240 = math.exp %239 : vector<8x128xf32>
    %cst_80 = arith.constant 1.000000e+00 : f32
    %241 = vector.broadcast %cst_80 : f32 to vector<8x128xf32>
    %242 = arith.addf %241, %240 : vector<8x128xf32>
    %243 = arith.divf %241, %242 : vector<8x128xf32>
    %244 = vector.extract_strided_slice %237 {offsets = [0, 128], sizes = [8, 128], strides = [1, 1]} : vector<8x512xf32> to vector<8x128xf32>
    %245 = arith.negf %244 : vector<8x128xf32>
    %246 = math.exp %245 : vector<8x128xf32>
    %cst_81 = arith.constant 1.000000e+00 : f32
    %247 = vector.broadcast %cst_81 : f32 to vector<8x128xf32>
    %248 = arith.addf %247, %246 : vector<8x128xf32>
    %249 = arith.divf %247, %248 : vector<8x128xf32>
    %250 = vector.extract_strided_slice %237 {offsets = [0, 256], sizes = [8, 128], strides = [1, 1]} : vector<8x512xf32> to vector<8x128xf32>
    %251 = math.tanh %250 : vector<8x128xf32>
    %252 = vector.extract_strided_slice %237 {offsets = [0, 384], sizes = [8, 128], strides = [1, 1]} : vector<8x512xf32> to vector<8x128xf32>
    %253 = arith.negf %252 : vector<8x128xf32>
    %254 = math.exp %253 : vector<8x128xf32>
    %cst_82 = arith.constant 1.000000e+00 : f32
    %255 = vector.broadcast %cst_82 : f32 to vector<8x128xf32>
    %256 = arith.addf %255, %254 : vector<8x128xf32>
    %257 = arith.divf %255, %256 : vector<8x128xf32>
    %258 = arith.mulf %249, %224 : vector<8x128xf32>
    %259 = arith.mulf %243, %251 : vector<8x128xf32>
    %260 = arith.addf %258, %259 : vector<8x128xf32>
    %261 = math.tanh %260 : vector<8x128xf32>
    %262 = arith.mulf %257, %261 : vector<8x128xf32>
    %263 = arith.index_cast %c6_i32 : i32 to index
    %c0_83 = arith.constant 0 : index
    %c0_84 = arith.constant 0 : index
    %264 = vector.load %arg5[%263, %c0_83, %c0_84] : memref<16x8x128xf32, #tpu.memory_space<vmem>>, vector<1x8x128xf32>
    %265 = vector.shape_cast %264 : vector<1x8x128xf32> to vector<8x128xf32>
    %266 = vector.shape_cast %262 : vector<8x128xf32> to vector<1x8x128xf32>
    tpu.vector_store %arg5[%263, %c0_83, %c0_84], %266 {strides = array<i32>} : memref<16x8x128xf32, #tpu.memory_space<vmem>>, vector<1x8x128xf32>,
    %c7_i32 = arith.constant 7 : i32
    %267 = arith.index_cast %c7_i32 : i32 to index
    %c0_85 = arith.constant 0 : index
    %c0_86 = arith.constant 0 : index
    %268 = vector.load %arg8[%267, %c0_85, %c0_86] : memref<16x8x512xf32, #tpu.memory_space<vmem>>, vector<1x8x512xf32>
    %269 = vector.shape_cast %268 : vector<1x8x512xf32> to vector<8x512xf32>
    %270 = arith.truncf %262 : vector<8x128xf32> to vector<8x128xbf16>
    %c0_87 = arith.constant 0 : index
    %c0_88 = arith.constant 0 : index
    %271 = vector.load %arg3[%c0_87, %c0_88] : memref<128x512xbf16, #tpu.memory_space<vmem>>, vector<128x512xbf16>
    %cst_89 = arith.constant dense<0.000000e+00> : vector<8x512xf32>
    %272 = tpu.matmul %270, %271, %cst_89 {dimension_numbers = #tpu.dot_dimension_numbers<[1], [0], [0], [1], [0, 0, 1, 1], [], []>} : vector<8x128xbf16>, vector<128x512xbf16>, vector<8x512xf32> -> vector<8x512xf32>
    %273 = arith.addf %269, %272 : vector<8x512xf32>
    %274 = vector.extract_strided_slice %273 {offsets = [0, 0], sizes = [8, 128], strides = [1, 1]} : vector<8x512xf32> to vector<8x128xf32>
    %275 = arith.negf %274 : vector<8x128xf32>
    %276 = math.exp %275 : vector<8x128xf32>
    %cst_90 = arith.constant 1.000000e+00 : f32
    %277 = vector.broadcast %cst_90 : f32 to vector<8x128xf32>
    %278 = arith.addf %277, %276 : vector<8x128xf32>
    %279 = arith.divf %277, %278 : vector<8x128xf32>
    %280 = vector.extract_strided_slice %273 {offsets = [0, 128], sizes = [8, 128], strides = [1, 1]} : vector<8x512xf32> to vector<8x128xf32>
    %281 = arith.negf %280 : vector<8x128xf32>
    %282 = math.exp %281 : vector<8x128xf32>
    %cst_91 = arith.constant 1.000000e+00 : f32
    %283 = vector.broadcast %cst_91 : f32 to vector<8x128xf32>
    %284 = arith.addf %283, %282 : vector<8x128xf32>
    %285 = arith.divf %283, %284 : vector<8x128xf32>
    %286 = vector.extract_strided_slice %273 {offsets = [0, 256], sizes = [8, 128], strides = [1, 1]} : vector<8x512xf32> to vector<8x128xf32>
    %287 = math.tanh %286 : vector<8x128xf32>
    %288 = vector.extract_strided_slice %273 {offsets = [0, 384], sizes = [8, 128], strides = [1, 1]} : vector<8x512xf32> to vector<8x128xf32>
    %289 = arith.negf %288 : vector<8x128xf32>
    %290 = math.exp %289 : vector<8x128xf32>
    %cst_92 = arith.constant 1.000000e+00 : f32
    %291 = vector.broadcast %cst_92 : f32 to vector<8x128xf32>
    %292 = arith.addf %291, %290 : vector<8x128xf32>
    %293 = arith.divf %291, %292 : vector<8x128xf32>
    %294 = arith.mulf %285, %260 : vector<8x128xf32>
    %295 = arith.mulf %279, %287 : vector<8x128xf32>
    %296 = arith.addf %294, %295 : vector<8x128xf32>
    %297 = math.tanh %296 : vector<8x128xf32>
    %298 = arith.mulf %293, %297 : vector<8x128xf32>
    %299 = arith.index_cast %c7_i32 : i32 to index
    %c0_93 = arith.constant 0 : index
    %c0_94 = arith.constant 0 : index
    %300 = vector.load %arg5[%299, %c0_93, %c0_94] : memref<16x8x128xf32, #tpu.memory_space<vmem>>, vector<1x8x128xf32>
    %301 = vector.shape_cast %300 : vector<1x8x128xf32> to vector<8x128xf32>
    %302 = vector.shape_cast %298 : vector<8x128xf32> to vector<1x8x128xf32>
    tpu.vector_store %arg5[%299, %c0_93, %c0_94], %302 {strides = array<i32>} : memref<16x8x128xf32, #tpu.memory_space<vmem>>, vector<1x8x128xf32>,
    %c8_i32 = arith.constant 8 : i32
    %303 = arith.index_cast %c8_i32 : i32 to index
    %c0_95 = arith.constant 0 : index
    %c0_96 = arith.constant 0 : index
    %304 = vector.load %arg8[%303, %c0_95, %c0_96] : memref<16x8x512xf32, #tpu.memory_space<vmem>>, vector<1x8x512xf32>
    %305 = vector.shape_cast %304 : vector<1x8x512xf32> to vector<8x512xf32>
    %306 = arith.truncf %298 : vector<8x128xf32> to vector<8x128xbf16>
    %c0_97 = arith.constant 0 : index
    %c0_98 = arith.constant 0 : index
    %307 = vector.load %arg3[%c0_97, %c0_98] : memref<128x512xbf16, #tpu.memory_space<vmem>>, vector<128x512xbf16>
    %cst_99 = arith.constant dense<0.000000e+00> : vector<8x512xf32>
    %308 = tpu.matmul %306, %307, %cst_99 {dimension_numbers = #tpu.dot_dimension_numbers<[1], [0], [0], [1], [0, 0, 1, 1], [], []>} : vector<8x128xbf16>, vector<128x512xbf16>, vector<8x512xf32> -> vector<8x512xf32>
    %309 = arith.addf %305, %308 : vector<8x512xf32>
    %310 = vector.extract_strided_slice %309 {offsets = [0, 0], sizes = [8, 128], strides = [1, 1]} : vector<8x512xf32> to vector<8x128xf32>
    %311 = arith.negf %310 : vector<8x128xf32>
    %312 = math.exp %311 : vector<8x128xf32>
    %cst_100 = arith.constant 1.000000e+00 : f32
    %313 = vector.broadcast %cst_100 : f32 to vector<8x128xf32>
    %314 = arith.addf %313, %312 : vector<8x128xf32>
    %315 = arith.divf %313, %314 : vector<8x128xf32>
    %316 = vector.extract_strided_slice %309 {offsets = [0, 128], sizes = [8, 128], strides = [1, 1]} : vector<8x512xf32> to vector<8x128xf32>
    %317 = arith.negf %316 : vector<8x128xf32>
    %318 = math.exp %317 : vector<8x128xf32>
    %cst_101 = arith.constant 1.000000e+00 : f32
    %319 = vector.broadcast %cst_101 : f32 to vector<8x128xf32>
    %320 = arith.addf %319, %318 : vector<8x128xf32>
    %321 = arith.divf %319, %320 : vector<8x128xf32>
    %322 = vector.extract_strided_slice %309 {offsets = [0, 256], sizes = [8, 128], strides = [1, 1]} : vector<8x512xf32> to vector<8x128xf32>
    %323 = math.tanh %322 : vector<8x128xf32>
    %324 = vector.extract_strided_slice %309 {offsets = [0, 384], sizes = [8, 128], strides = [1, 1]} : vector<8x512xf32> to vector<8x128xf32>
    %325 = arith.negf %324 : vector<8x128xf32>
    %326 = math.exp %325 : vector<8x128xf32>
    %cst_102 = arith.constant 1.000000e+00 : f32
    %327 = vector.broadcast %cst_102 : f32 to vector<8x128xf32>
    %328 = arith.addf %327, %326 : vector<8x128xf32>
    %329 = arith.divf %327, %328 : vector<8x128xf32>
    %330 = arith.mulf %321, %296 : vector<8x128xf32>
    %331 = arith.mulf %315, %323 : vector<8x128xf32>
    %332 = arith.addf %330, %331 : vector<8x128xf32>
    %333 = math.tanh %332 : vector<8x128xf32>
    %334 = arith.mulf %329, %333 : vector<8x128xf32>
    %335 = arith.index_cast %c8_i32 : i32 to index
    %c0_103 = arith.constant 0 : index
    %c0_104 = arith.constant 0 : index
    %336 = vector.load %arg5[%335, %c0_103, %c0_104] : memref<16x8x128xf32, #tpu.memory_space<vmem>>, vector<1x8x128xf32>
    %337 = vector.shape_cast %336 : vector<1x8x128xf32> to vector<8x128xf32>
    %338 = vector.shape_cast %334 : vector<8x128xf32> to vector<1x8x128xf32>
    tpu.vector_store %arg5[%335, %c0_103, %c0_104], %338 {strides = array<i32>} : memref<16x8x128xf32, #tpu.memory_space<vmem>>, vector<1x8x128xf32>,
    %c9_i32 = arith.constant 9 : i32
    %339 = arith.index_cast %c9_i32 : i32 to index
    %c0_105 = arith.constant 0 : index
    %c0_106 = arith.constant 0 : index
    %340 = vector.load %arg8[%339, %c0_105, %c0_106] : memref<16x8x512xf32, #tpu.memory_space<vmem>>, vector<1x8x512xf32>
    %341 = vector.shape_cast %340 : vector<1x8x512xf32> to vector<8x512xf32>
    %342 = arith.truncf %334 : vector<8x128xf32> to vector<8x128xbf16>
    %c0_107 = arith.constant 0 : index
    %c0_108 = arith.constant 0 : index
    %343 = vector.load %arg3[%c0_107, %c0_108] : memref<128x512xbf16, #tpu.memory_space<vmem>>, vector<128x512xbf16>
    %cst_109 = arith.constant dense<0.000000e+00> : vector<8x512xf32>
    %344 = tpu.matmul %342, %343, %cst_109 {dimension_numbers = #tpu.dot_dimension_numbers<[1], [0], [0], [1], [0, 0, 1, 1], [], []>} : vector<8x128xbf16>, vector<128x512xbf16>, vector<8x512xf32> -> vector<8x512xf32>
    %345 = arith.addf %341, %344 : vector<8x512xf32>
    %346 = vector.extract_strided_slice %345 {offsets = [0, 0], sizes = [8, 128], strides = [1, 1]} : vector<8x512xf32> to vector<8x128xf32>
    %347 = arith.negf %346 : vector<8x128xf32>
    %348 = math.exp %347 : vector<8x128xf32>
    %cst_110 = arith.constant 1.000000e+00 : f32
    %349 = vector.broadcast %cst_110 : f32 to vector<8x128xf32>
    %350 = arith.addf %349, %348 : vector<8x128xf32>
    %351 = arith.divf %349, %350 : vector<8x128xf32>
    %352 = vector.extract_strided_slice %345 {offsets = [0, 128], sizes = [8, 128], strides = [1, 1]} : vector<8x512xf32> to vector<8x128xf32>
    %353 = arith.negf %352 : vector<8x128xf32>
    %354 = math.exp %353 : vector<8x128xf32>
    %cst_111 = arith.constant 1.000000e+00 : f32
    %355 = vector.broadcast %cst_111 : f32 to vector<8x128xf32>
    %356 = arith.addf %355, %354 : vector<8x128xf32>
    %357 = arith.divf %355, %356 : vector<8x128xf32>
    %358 = vector.extract_strided_slice %345 {offsets = [0, 256], sizes = [8, 128], strides = [1, 1]} : vector<8x512xf32> to vector<8x128xf32>
    %359 = math.tanh %358 : vector<8x128xf32>
    %360 = vector.extract_strided_slice %345 {offsets = [0, 384], sizes = [8, 128], strides = [1, 1]} : vector<8x512xf32> to vector<8x128xf32>
    %361 = arith.negf %360 : vector<8x128xf32>
    %362 = math.exp %361 : vector<8x128xf32>
    %cst_112 = arith.constant 1.000000e+00 : f32
    %363 = vector.broadcast %cst_112 : f32 to vector<8x128xf32>
    %364 = arith.addf %363, %362 : vector<8x128xf32>
    %365 = arith.divf %363, %364 : vector<8x128xf32>
    %366 = arith.mulf %357, %332 : vector<8x128xf32>
    %367 = arith.mulf %351, %359 : vector<8x128xf32>
    %368 = arith.addf %366, %367 : vector<8x128xf32>
    %369 = math.tanh %368 : vector<8x128xf32>
    %370 = arith.mulf %365, %369 : vector<8x128xf32>
    %371 = arith.index_cast %c9_i32 : i32 to index
    %c0_113 = arith.constant 0 : index
    %c0_114 = arith.constant 0 : index
    %372 = vector.load %arg5[%371, %c0_113, %c0_114] : memref<16x8x128xf32, #tpu.memory_space<vmem>>, vector<1x8x128xf32>
    %373 = vector.shape_cast %372 : vector<1x8x128xf32> to vector<8x128xf32>
    %374 = vector.shape_cast %370 : vector<8x128xf32> to vector<1x8x128xf32>
    tpu.vector_store %arg5[%371, %c0_113, %c0_114], %374 {strides = array<i32>} : memref<16x8x128xf32, #tpu.memory_space<vmem>>, vector<1x8x128xf32>,
    %c10_i32 = arith.constant 10 : i32
    %375 = arith.index_cast %c10_i32 : i32 to index
    %c0_115 = arith.constant 0 : index
    %c0_116 = arith.constant 0 : index
    %376 = vector.load %arg8[%375, %c0_115, %c0_116] : memref<16x8x512xf32, #tpu.memory_space<vmem>>, vector<1x8x512xf32>
    %377 = vector.shape_cast %376 : vector<1x8x512xf32> to vector<8x512xf32>
    %378 = arith.truncf %370 : vector<8x128xf32> to vector<8x128xbf16>
    %c0_117 = arith.constant 0 : index
    %c0_118 = arith.constant 0 : index
    %379 = vector.load %arg3[%c0_117, %c0_118] : memref<128x512xbf16, #tpu.memory_space<vmem>>, vector<128x512xbf16>
    %cst_119 = arith.constant dense<0.000000e+00> : vector<8x512xf32>
    %380 = tpu.matmul %378, %379, %cst_119 {dimension_numbers = #tpu.dot_dimension_numbers<[1], [0], [0], [1], [0, 0, 1, 1], [], []>} : vector<8x128xbf16>, vector<128x512xbf16>, vector<8x512xf32> -> vector<8x512xf32>
    %381 = arith.addf %377, %380 : vector<8x512xf32>
    %382 = vector.extract_strided_slice %381 {offsets = [0, 0], sizes = [8, 128], strides = [1, 1]} : vector<8x512xf32> to vector<8x128xf32>
    %383 = arith.negf %382 : vector<8x128xf32>
    %384 = math.exp %383 : vector<8x128xf32>
    %cst_120 = arith.constant 1.000000e+00 : f32
    %385 = vector.broadcast %cst_120 : f32 to vector<8x128xf32>
    %386 = arith.addf %385, %384 : vector<8x128xf32>
    %387 = arith.divf %385, %386 : vector<8x128xf32>
    %388 = vector.extract_strided_slice %381 {offsets = [0, 128], sizes = [8, 128], strides = [1, 1]} : vector<8x512xf32> to vector<8x128xf32>
    %389 = arith.negf %388 : vector<8x128xf32>
    %390 = math.exp %389 : vector<8x128xf32>
    %cst_121 = arith.constant 1.000000e+00 : f32
    %391 = vector.broadcast %cst_121 : f32 to vector<8x128xf32>
    %392 = arith.addf %391, %390 : vector<8x128xf32>
    %393 = arith.divf %391, %392 : vector<8x128xf32>
    %394 = vector.extract_strided_slice %381 {offsets = [0, 256], sizes = [8, 128], strides = [1, 1]} : vector<8x512xf32> to vector<8x128xf32>
    %395 = math.tanh %394 : vector<8x128xf32>
    %396 = vector.extract_strided_slice %381 {offsets = [0, 384], sizes = [8, 128], strides = [1, 1]} : vector<8x512xf32> to vector<8x128xf32>
    %397 = arith.negf %396 : vector<8x128xf32>
    %398 = math.exp %397 : vector<8x128xf32>
    %cst_122 = arith.constant 1.000000e+00 : f32
    %399 = vector.broadcast %cst_122 : f32 to vector<8x128xf32>
    %400 = arith.addf %399, %398 : vector<8x128xf32>
    %401 = arith.divf %399, %400 : vector<8x128xf32>
    %402 = arith.mulf %393, %368 : vector<8x128xf32>
    %403 = arith.mulf %387, %395 : vector<8x128xf32>
    %404 = arith.addf %402, %403 : vector<8x128xf32>
    %405 = math.tanh %404 : vector<8x128xf32>
    %406 = arith.mulf %401, %405 : vector<8x128xf32>
    %407 = arith.index_cast %c10_i32 : i32 to index
    %c0_123 = arith.constant 0 : index
    %c0_124 = arith.constant 0 : index
    %408 = vector.load %arg5[%407, %c0_123, %c0_124] : memref<16x8x128xf32, #tpu.memory_space<vmem>>, vector<1x8x128xf32>
    %409 = vector.shape_cast %408 : vector<1x8x128xf32> to vector<8x128xf32>
    %410 = vector.shape_cast %406 : vector<8x128xf32> to vector<1x8x128xf32>
    tpu.vector_store %arg5[%407, %c0_123, %c0_124], %410 {strides = array<i32>} : memref<16x8x128xf32, #tpu.memory_space<vmem>>, vector<1x8x128xf32>,
    %c11_i32 = arith.constant 11 : i32
    %411 = arith.index_cast %c11_i32 : i32 to index
    %c0_125 = arith.constant 0 : index
    %c0_126 = arith.constant 0 : index
    %412 = vector.load %arg8[%411, %c0_125, %c0_126] : memref<16x8x512xf32, #tpu.memory_space<vmem>>, vector<1x8x512xf32>
    %413 = vector.shape_cast %412 : vector<1x8x512xf32> to vector<8x512xf32>
    %414 = arith.truncf %406 : vector<8x128xf32> to vector<8x128xbf16>
    %c0_127 = arith.constant 0 : index
    %c0_128 = arith.constant 0 : index
    %415 = vector.load %arg3[%c0_127, %c0_128] : memref<128x512xbf16, #tpu.memory_space<vmem>>, vector<128x512xbf16>
    %cst_129 = arith.constant dense<0.000000e+00> : vector<8x512xf32>
    %416 = tpu.matmul %414, %415, %cst_129 {dimension_numbers = #tpu.dot_dimension_numbers<[1], [0], [0], [1], [0, 0, 1, 1], [], []>} : vector<8x128xbf16>, vector<128x512xbf16>, vector<8x512xf32> -> vector<8x512xf32>
    %417 = arith.addf %413, %416 : vector<8x512xf32>
    %418 = vector.extract_strided_slice %417 {offsets = [0, 0], sizes = [8, 128], strides = [1, 1]} : vector<8x512xf32> to vector<8x128xf32>
    %419 = arith.negf %418 : vector<8x128xf32>
    %420 = math.exp %419 : vector<8x128xf32>
    %cst_130 = arith.constant 1.000000e+00 : f32
    %421 = vector.broadcast %cst_130 : f32 to vector<8x128xf32>
    %422 = arith.addf %421, %420 : vector<8x128xf32>
    %423 = arith.divf %421, %422 : vector<8x128xf32>
    %424 = vector.extract_strided_slice %417 {offsets = [0, 128], sizes = [8, 128], strides = [1, 1]} : vector<8x512xf32> to vector<8x128xf32>
    %425 = arith.negf %424 : vector<8x128xf32>
    %426 = math.exp %425 : vector<8x128xf32>
    %cst_131 = arith.constant 1.000000e+00 : f32
    %427 = vector.broadcast %cst_131 : f32 to vector<8x128xf32>
    %428 = arith.addf %427, %426 : vector<8x128xf32>
    %429 = arith.divf %427, %428 : vector<8x128xf32>
    %430 = vector.extract_strided_slice %417 {offsets = [0, 256], sizes = [8, 128], strides = [1, 1]} : vector<8x512xf32> to vector<8x128xf32>
    %431 = math.tanh %430 : vector<8x128xf32>
    %432 = vector.extract_strided_slice %417 {offsets = [0, 384], sizes = [8, 128], strides = [1, 1]} : vector<8x512xf32> to vector<8x128xf32>
    %433 = arith.negf %432 : vector<8x128xf32>
    %434 = math.exp %433 : vector<8x128xf32>
    %cst_132 = arith.constant 1.000000e+00 : f32
    %435 = vector.broadcast %cst_132 : f32 to vector<8x128xf32>
    %436 = arith.addf %435, %434 : vector<8x128xf32>
    %437 = arith.divf %435, %436 : vector<8x128xf32>
    %438 = arith.mulf %429, %404 : vector<8x128xf32>
    %439 = arith.mulf %423, %431 : vector<8x128xf32>
    %440 = arith.addf %438, %439 : vector<8x128xf32>
    %441 = math.tanh %440 : vector<8x128xf32>
    %442 = arith.mulf %437, %441 : vector<8x128xf32>
    %443 = arith.index_cast %c11_i32 : i32 to index
    %c0_133 = arith.constant 0 : index
    %c0_134 = arith.constant 0 : index
    %444 = vector.load %arg5[%443, %c0_133, %c0_134] : memref<16x8x128xf32, #tpu.memory_space<vmem>>, vector<1x8x128xf32>
    %445 = vector.shape_cast %444 : vector<1x8x128xf32> to vector<8x128xf32>
    %446 = vector.shape_cast %442 : vector<8x128xf32> to vector<1x8x128xf32>
    tpu.vector_store %arg5[%443, %c0_133, %c0_134], %446 {strides = array<i32>} : memref<16x8x128xf32, #tpu.memory_space<vmem>>, vector<1x8x128xf32>,
    %c12_i32 = arith.constant 12 : i32
    %447 = arith.index_cast %c12_i32 : i32 to index
    %c0_135 = arith.constant 0 : index
    %c0_136 = arith.constant 0 : index
    %448 = vector.load %arg8[%447, %c0_135, %c0_136] : memref<16x8x512xf32, #tpu.memory_space<vmem>>, vector<1x8x512xf32>
    %449 = vector.shape_cast %448 : vector<1x8x512xf32> to vector<8x512xf32>
    %450 = arith.truncf %442 : vector<8x128xf32> to vector<8x128xbf16>
    %c0_137 = arith.constant 0 : index
    %c0_138 = arith.constant 0 : index
    %451 = vector.load %arg3[%c0_137, %c0_138] : memref<128x512xbf16, #tpu.memory_space<vmem>>, vector<128x512xbf16>
    %cst_139 = arith.constant dense<0.000000e+00> : vector<8x512xf32>
    %452 = tpu.matmul %450, %451, %cst_139 {dimension_numbers = #tpu.dot_dimension_numbers<[1], [0], [0], [1], [0, 0, 1, 1], [], []>} : vector<8x128xbf16>, vector<128x512xbf16>, vector<8x512xf32> -> vector<8x512xf32>
    %453 = arith.addf %449, %452 : vector<8x512xf32>
    %454 = vector.extract_strided_slice %453 {offsets = [0, 0], sizes = [8, 128], strides = [1, 1]} : vector<8x512xf32> to vector<8x128xf32>
    %455 = arith.negf %454 : vector<8x128xf32>
    %456 = math.exp %455 : vector<8x128xf32>
    %cst_140 = arith.constant 1.000000e+00 : f32
    %457 = vector.broadcast %cst_140 : f32 to vector<8x128xf32>
    %458 = arith.addf %457, %456 : vector<8x128xf32>
    %459 = arith.divf %457, %458 : vector<8x128xf32>
    %460 = vector.extract_strided_slice %453 {offsets = [0, 128], sizes = [8, 128], strides = [1, 1]} : vector<8x512xf32> to vector<8x128xf32>
    %461 = arith.negf %460 : vector<8x128xf32>
    %462 = math.exp %461 : vector<8x128xf32>
    %cst_141 = arith.constant 1.000000e+00 : f32
    %463 = vector.broadcast %cst_141 : f32 to vector<8x128xf32>
    %464 = arith.addf %463, %462 : vector<8x128xf32>
    %465 = arith.divf %463, %464 : vector<8x128xf32>
    %466 = vector.extract_strided_slice %453 {offsets = [0, 256], sizes = [8, 128], strides = [1, 1]} : vector<8x512xf32> to vector<8x128xf32>
    %467 = math.tanh %466 : vector<8x128xf32>
    %468 = vector.extract_strided_slice %453 {offsets = [0, 384], sizes = [8, 128], strides = [1, 1]} : vector<8x512xf32> to vector<8x128xf32>
    %469 = arith.negf %468 : vector<8x128xf32>
    %470 = math.exp %469 : vector<8x128xf32>
    %cst_142 = arith.constant 1.000000e+00 : f32
    %471 = vector.broadcast %cst_142 : f32 to vector<8x128xf32>
    %472 = arith.addf %471, %470 : vector<8x128xf32>
    %473 = arith.divf %471, %472 : vector<8x128xf32>
    %474 = arith.mulf %465, %440 : vector<8x128xf32>
    %475 = arith.mulf %459, %467 : vector<8x128xf32>
    %476 = arith.addf %474, %475 : vector<8x128xf32>
    %477 = math.tanh %476 : vector<8x128xf32>
    %478 = arith.mulf %473, %477 : vector<8x128xf32>
    %479 = arith.index_cast %c12_i32 : i32 to index
    %c0_143 = arith.constant 0 : index
    %c0_144 = arith.constant 0 : index
    %480 = vector.load %arg5[%479, %c0_143, %c0_144] : memref<16x8x128xf32, #tpu.memory_space<vmem>>, vector<1x8x128xf32>
    %481 = vector.shape_cast %480 : vector<1x8x128xf32> to vector<8x128xf32>
    %482 = vector.shape_cast %478 : vector<8x128xf32> to vector<1x8x128xf32>
    tpu.vector_store %arg5[%479, %c0_143, %c0_144], %482 {strides = array<i32>} : memref<16x8x128xf32, #tpu.memory_space<vmem>>, vector<1x8x128xf32>,
    %c13_i32 = arith.constant 13 : i32
    %483 = arith.index_cast %c13_i32 : i32 to index
    %c0_145 = arith.constant 0 : index
    %c0_146 = arith.constant 0 : index
    %484 = vector.load %arg8[%483, %c0_145, %c0_146] : memref<16x8x512xf32, #tpu.memory_space<vmem>>, vector<1x8x512xf32>
    %485 = vector.shape_cast %484 : vector<1x8x512xf32> to vector<8x512xf32>
    %486 = arith.truncf %478 : vector<8x128xf32> to vector<8x128xbf16>
    %c0_147 = arith.constant 0 : index
    %c0_148 = arith.constant 0 : index
    %487 = vector.load %arg3[%c0_147, %c0_148] : memref<128x512xbf16, #tpu.memory_space<vmem>>, vector<128x512xbf16>
    %cst_149 = arith.constant dense<0.000000e+00> : vector<8x512xf32>
    %488 = tpu.matmul %486, %487, %cst_149 {dimension_numbers = #tpu.dot_dimension_numbers<[1], [0], [0], [1], [0, 0, 1, 1], [], []>} : vector<8x128xbf16>, vector<128x512xbf16>, vector<8x512xf32> -> vector<8x512xf32>
    %489 = arith.addf %485, %488 : vector<8x512xf32>
    %490 = vector.extract_strided_slice %489 {offsets = [0, 0], sizes = [8, 128], strides = [1, 1]} : vector<8x512xf32> to vector<8x128xf32>
    %491 = arith.negf %490 : vector<8x128xf32>
    %492 = math.exp %491 : vector<8x128xf32>
    %cst_150 = arith.constant 1.000000e+00 : f32
    %493 = vector.broadcast %cst_150 : f32 to vector<8x128xf32>
    %494 = arith.addf %493, %492 : vector<8x128xf32>
    %495 = arith.divf %493, %494 : vector<8x128xf32>
    %496 = vector.extract_strided_slice %489 {offsets = [0, 128], sizes = [8, 128], strides = [1, 1]} : vector<8x512xf32> to vector<8x128xf32>
    %497 = arith.negf %496 : vector<8x128xf32>
    %498 = math.exp %497 : vector<8x128xf32>
    %cst_151 = arith.constant 1.000000e+00 : f32
    %499 = vector.broadcast %cst_151 : f32 to vector<8x128xf32>
    %500 = arith.addf %499, %498 : vector<8x128xf32>
    %501 = arith.divf %499, %500 : vector<8x128xf32>
    %502 = vector.extract_strided_slice %489 {offsets = [0, 256], sizes = [8, 128], strides = [1, 1]} : vector<8x512xf32> to vector<8x128xf32>
    %503 = math.tanh %502 : vector<8x128xf32>
    %504 = vector.extract_strided_slice %489 {offsets = [0, 384], sizes = [8, 128], strides = [1, 1]} : vector<8x512xf32> to vector<8x128xf32>
    %505 = arith.negf %504 : vector<8x128xf32>
    %506 = math.exp %505 : vector<8x128xf32>
    %cst_152 = arith.constant 1.000000e+00 : f32
    %507 = vector.broadcast %cst_152 : f32 to vector<8x128xf32>
    %508 = arith.addf %507, %506 : vector<8x128xf32>
    %509 = arith.divf %507, %508 : vector<8x128xf32>
    %510 = arith.mulf %501, %476 : vector<8x128xf32>
    %511 = arith.mulf %495, %503 : vector<8x128xf32>
    %512 = arith.addf %510, %511 : vector<8x128xf32>
    %513 = math.tanh %512 : vector<8x128xf32>
    %514 = arith.mulf %509, %513 : vector<8x128xf32>
    %515 = arith.index_cast %c13_i32 : i32 to index
    %c0_153 = arith.constant 0 : index
    %c0_154 = arith.constant 0 : index
    %516 = vector.load %arg5[%515, %c0_153, %c0_154] : memref<16x8x128xf32, #tpu.memory_space<vmem>>, vector<1x8x128xf32>
    %517 = vector.shape_cast %516 : vector<1x8x128xf32> to vector<8x128xf32>
    %518 = vector.shape_cast %514 : vector<8x128xf32> to vector<1x8x128xf32>
    tpu.vector_store %arg5[%515, %c0_153, %c0_154], %518 {strides = array<i32>} : memref<16x8x128xf32, #tpu.memory_space<vmem>>, vector<1x8x128xf32>,
    %c14_i32 = arith.constant 14 : i32
    %519 = arith.index_cast %c14_i32 : i32 to index
    %c0_155 = arith.constant 0 : index
    %c0_156 = arith.constant 0 : index
    %520 = vector.load %arg8[%519, %c0_155, %c0_156] : memref<16x8x512xf32, #tpu.memory_space<vmem>>, vector<1x8x512xf32>
    %521 = vector.shape_cast %520 : vector<1x8x512xf32> to vector<8x512xf32>
    %522 = arith.truncf %514 : vector<8x128xf32> to vector<8x128xbf16>
    %c0_157 = arith.constant 0 : index
    %c0_158 = arith.constant 0 : index
    %523 = vector.load %arg3[%c0_157, %c0_158] : memref<128x512xbf16, #tpu.memory_space<vmem>>, vector<128x512xbf16>
    %cst_159 = arith.constant dense<0.000000e+00> : vector<8x512xf32>
    %524 = tpu.matmul %522, %523, %cst_159 {dimension_numbers = #tpu.dot_dimension_numbers<[1], [0], [0], [1], [0, 0, 1, 1], [], []>} : vector<8x128xbf16>, vector<128x512xbf16>, vector<8x512xf32> -> vector<8x512xf32>
    %525 = arith.addf %521, %524 : vector<8x512xf32>
    %526 = vector.extract_strided_slice %525 {offsets = [0, 0], sizes = [8, 128], strides = [1, 1]} : vector<8x512xf32> to vector<8x128xf32>
    %527 = arith.negf %526 : vector<8x128xf32>
    %528 = math.exp %527 : vector<8x128xf32>
    %cst_160 = arith.constant 1.000000e+00 : f32
    %529 = vector.broadcast %cst_160 : f32 to vector<8x128xf32>
    %530 = arith.addf %529, %528 : vector<8x128xf32>
    %531 = arith.divf %529, %530 : vector<8x128xf32>
    %532 = vector.extract_strided_slice %525 {offsets = [0, 128], sizes = [8, 128], strides = [1, 1]} : vector<8x512xf32> to vector<8x128xf32>
    %533 = arith.negf %532 : vector<8x128xf32>
    %534 = math.exp %533 : vector<8x128xf32>
    %cst_161 = arith.constant 1.000000e+00 : f32
    %535 = vector.broadcast %cst_161 : f32 to vector<8x128xf32>
    %536 = arith.addf %535, %534 : vector<8x128xf32>
    %537 = arith.divf %535, %536 : vector<8x128xf32>
    %538 = vector.extract_strided_slice %525 {offsets = [0, 256], sizes = [8, 128], strides = [1, 1]} : vector<8x512xf32> to vector<8x128xf32>
    %539 = math.tanh %538 : vector<8x128xf32>
    %540 = vector.extract_strided_slice %525 {offsets = [0, 384], sizes = [8, 128], strides = [1, 1]} : vector<8x512xf32> to vector<8x128xf32>
    %541 = arith.negf %540 : vector<8x128xf32>
    %542 = math.exp %541 : vector<8x128xf32>
    %cst_162 = arith.constant 1.000000e+00 : f32
    %543 = vector.broadcast %cst_162 : f32 to vector<8x128xf32>
    %544 = arith.addf %543, %542 : vector<8x128xf32>
    %545 = arith.divf %543, %544 : vector<8x128xf32>
    %546 = arith.mulf %537, %512 : vector<8x128xf32>
    %547 = arith.mulf %531, %539 : vector<8x128xf32>
    %548 = arith.addf %546, %547 : vector<8x128xf32>
    %549 = math.tanh %548 : vector<8x128xf32>
    %550 = arith.mulf %545, %549 : vector<8x128xf32>
    %551 = arith.index_cast %c14_i32 : i32 to index
    %c0_163 = arith.constant 0 : index
    %c0_164 = arith.constant 0 : index
    %552 = vector.load %arg5[%551, %c0_163, %c0_164] : memref<16x8x128xf32, #tpu.memory_space<vmem>>, vector<1x8x128xf32>
    %553 = vector.shape_cast %552 : vector<1x8x128xf32> to vector<8x128xf32>
    %554 = vector.shape_cast %550 : vector<8x128xf32> to vector<1x8x128xf32>
    tpu.vector_store %arg5[%551, %c0_163, %c0_164], %554 {strides = array<i32>} : memref<16x8x128xf32, #tpu.memory_space<vmem>>, vector<1x8x128xf32>,
    %c15_i32 = arith.constant 15 : i32
    %555 = arith.index_cast %c15_i32 : i32 to index
    %c0_165 = arith.constant 0 : index
    %c0_166 = arith.constant 0 : index
    %556 = vector.load %arg8[%555, %c0_165, %c0_166] : memref<16x8x512xf32, #tpu.memory_space<vmem>>, vector<1x8x512xf32>
    %557 = vector.shape_cast %556 : vector<1x8x512xf32> to vector<8x512xf32>
    %558 = arith.truncf %550 : vector<8x128xf32> to vector<8x128xbf16>
    %c0_167 = arith.constant 0 : index
    %c0_168 = arith.constant 0 : index
    %559 = vector.load %arg3[%c0_167, %c0_168] : memref<128x512xbf16, #tpu.memory_space<vmem>>, vector<128x512xbf16>
    %cst_169 = arith.constant dense<0.000000e+00> : vector<8x512xf32>
    %560 = tpu.matmul %558, %559, %cst_169 {dimension_numbers = #tpu.dot_dimension_numbers<[1], [0], [0], [1], [0, 0, 1, 1], [], []>} : vector<8x128xbf16>, vector<128x512xbf16>, vector<8x512xf32> -> vector<8x512xf32>
    %561 = arith.addf %557, %560 : vector<8x512xf32>
    %562 = vector.extract_strided_slice %561 {offsets = [0, 0], sizes = [8, 128], strides = [1, 1]} : vector<8x512xf32> to vector<8x128xf32>
    %563 = arith.negf %562 : vector<8x128xf32>
    %564 = math.exp %563 : vector<8x128xf32>
    %cst_170 = arith.constant 1.000000e+00 : f32
    %565 = vector.broadcast %cst_170 : f32 to vector<8x128xf32>
    %566 = arith.addf %565, %564 : vector<8x128xf32>
    %567 = arith.divf %565, %566 : vector<8x128xf32>
    %568 = vector.extract_strided_slice %561 {offsets = [0, 128], sizes = [8, 128], strides = [1, 1]} : vector<8x512xf32> to vector<8x128xf32>
    %569 = arith.negf %568 : vector<8x128xf32>
    %570 = math.exp %569 : vector<8x128xf32>
    %cst_171 = arith.constant 1.000000e+00 : f32
    %571 = vector.broadcast %cst_171 : f32 to vector<8x128xf32>
    %572 = arith.addf %571, %570 : vector<8x128xf32>
    %573 = arith.divf %571, %572 : vector<8x128xf32>
    %574 = vector.extract_strided_slice %561 {offsets = [0, 256], sizes = [8, 128], strides = [1, 1]} : vector<8x512xf32> to vector<8x128xf32>
    %575 = math.tanh %574 : vector<8x128xf32>
    %576 = vector.extract_strided_slice %561 {offsets = [0, 384], sizes = [8, 128], strides = [1, 1]} : vector<8x512xf32> to vector<8x128xf32>
    %577 = arith.negf %576 : vector<8x128xf32>
    %578 = math.exp %577 : vector<8x128xf32>
    %cst_172 = arith.constant 1.000000e+00 : f32
    %579 = vector.broadcast %cst_172 : f32 to vector<8x128xf32>
    %580 = arith.addf %579, %578 : vector<8x128xf32>
    %581 = arith.divf %579, %580 : vector<8x128xf32>
    %582 = arith.mulf %573, %548 : vector<8x128xf32>
    %583 = arith.mulf %567, %575 : vector<8x128xf32>
    %584 = arith.addf %582, %583 : vector<8x128xf32>
    %585 = math.tanh %584 : vector<8x128xf32>
    %586 = arith.mulf %581, %585 : vector<8x128xf32>
    %587 = arith.index_cast %c15_i32 : i32 to index
    %c0_173 = arith.constant 0 : index
    %c0_174 = arith.constant 0 : index
    %588 = vector.load %arg5[%587, %c0_173, %c0_174] : memref<16x8x128xf32, #tpu.memory_space<vmem>>, vector<1x8x128xf32>
    %589 = vector.shape_cast %588 : vector<1x8x128xf32> to vector<8x128xf32>
    %590 = vector.shape_cast %586 : vector<8x128xf32> to vector<1x8x128xf32>
    tpu.vector_store %arg5[%587, %c0_173, %c0_174], %590 {strides = array<i32>} : memref<16x8x128xf32, #tpu.memory_space<vmem>>, vector<1x8x128xf32>,
    %c16_i32 = arith.constant 16 : i32
    %c0_175 = arith.constant 0 : index
    %c0_176 = arith.constant 0 : index
    %591 = vector.load %arg6[%c0_175, %c0_176] : memref<8x128xf32, #tpu.memory_space<vmem>>, vector<8x128xf32>
    tpu.vector_store %arg6[%c0_175, %c0_176], %586 {strides = array<i32>} : memref<8x128xf32, #tpu.memory_space<vmem>>, vector<8x128xf32>,
    %c0_177 = arith.constant 0 : index
    %c0_178 = arith.constant 0 : index
    %592 = vector.load %arg7[%c0_177, %c0_178] : memref<8x128xf32, #tpu.memory_space<vmem>>, vector<8x128xf32>
    tpu.vector_store %arg7[%c0_177, %c0_178], %584 {strides = array<i32>} : memref<8x128xf32, #tpu.memory_space<vmem>>, vector<8x128xf32>,
    return
  }
  func.func @transform_0(%arg0: i32) -> (i32, i32, i32) {
    %c0_i32 = arith.constant 0 : i32
    %c0_i32_0 = arith.constant 0 : i32
    %c0_i32_1 = arith.constant 0 : i32
    return %arg0, %c0_i32, %c0_i32_0 : i32, i32, i32
  }
  func.func @transform_1(%arg0: i32) -> (i32, i32) {
    %c0_i32 = arith.constant 0 : i32
    %c0_i32_0 = arith.constant 0 : i32
    %c0_i32_1 = arith.constant 0 : i32
    return %c0_i32, %c0_i32_0 : i32, i32
  }
  func.func @transform_2(%arg0: i32) -> (i32, i32) {
    %c0_i32 = arith.constant 0 : i32
    %c0_i32_0 = arith.constant 0 : i32
    %c0_i32_1 = arith.constant 0 : i32
    return %c0_i32, %c0_i32_0 : i32, i32
  }
  func.func @transform_3(%arg0: i32) -> (i32, i32) {
    %c0_i32 = arith.constant 0 : i32
    %c0_i32_0 = arith.constant 0 : i32
    %c0_i32_1 = arith.constant 0 : i32
    return %c0_i32, %c0_i32_0 : i32, i32
  }
  func.func @transform_4(%arg0: i32) -> (i32, i32, i32) {
    %c0_i32 = arith.constant 0 : i32
    %c0_i32_0 = arith.constant 0 : i32
    %c0_i32_1 = arith.constant 0 : i32
    return %arg0, %c0_i32, %c0_i32_0 : i32, i32, i32
  }
  func.func @transform_5(%arg0: i32) -> (i32, i32) {
    %c0_i32 = arith.constant 0 : i32
    %c0_i32_0 = arith.constant 0 : i32
    %c0_i32_1 = arith.constant 0 : i32
    return %c0_i32, %c0_i32_0 : i32, i32
  }
  func.func @transform_6(%arg0: i32) -> (i32, i32) {
    %c0_i32 = arith.constant 0 : i32
    %c0_i32_0 = arith.constant 0 : i32
    %c0_i32_1 = arith.constant 0 : i32
    return %c0_i32, %c0_i32_0 : i32, i32
  }
}

</mosaic_0001>

<llo_original>
// kernel: tpu_custom_call.1
$region0: #{tpu_custom_call.1}
  #allocation0 [shape = 'u32[]', space=smem, size = 0x4, offset = 0x4, fixed_abs, tag = 'smem constant byte address 0x4 - core index']
  #allocation1 [shape = 'u32[144,128]{1,0:T(1,128)}', space=vmem, size = 0x12000, scoped, tag = 'internal scratch']
  #allocation2 [shape = 'f32[16,8,512]{2,1,0:T(8,128)}', space=vmem, size = 0x40000, scoped, tag = 'scratch operand']
  %s0 = inlined_call_operand.hbm [shape: f32[32,8,128], index: 0, kind: input, shape index: {}]
  %s1 = inlined_call_operand.hbm [shape: bf16[128,512], index: 1, kind: input, shape index: {}]
  %s2 = inlined_call_operand.hbm [shape: bf16[128,512], index: 2, kind: input, shape index: {}]
  %s3 = inlined_call_operand.vmem [shape: f32[1,512], index: 3, kind: input, shape index: {}]
  %s4 = inlined_call_operand.hbm [shape: f32[32,8,128], index: 4, kind: output, shape index: {0}]
  %s5 = inlined_call_operand.hbm [shape: f32[8,128], index: 5, kind: output, shape index: {1}]
  %s6 = inlined_call_operand.hbm [shape: f32[8,128], index: 6, kind: output, shape index: {2}]
  %7 = xla_tuple %s4, %s5, %s6
  %s8 = sld [smem:[#allocation0]]
  $region81: #{tpu_custom_call.1} parent=0
    _
  %s10 = ssub.s32 1, %s8
  %s11 = scalar_select 0, %s10, %s8
  $region1: #{tpu_custom_call.1} parent=0
    #allocation3 [shape = 'u8[131072]{0}', space=vmem, size = 0x20000, scoped, tag = 'input window, operand 0']
    #allocation4 [shape = 's32[2]{0}', space=sflag, size = 0x8, scoped, tag = 'scoped memory for tpu_custom_call.1']
    #allocation5 [shape = 's32[2]{0}', space=sflag, size = 0x8, scoped, tag = 'scoped memory for tpu_custom_call.1']
    #allocation6 [shape = 'u8[131072]{0}', space=vmem, size = 0x20000, scoped, tag = 'input window, operand 1, single buffered']
    #allocation7 [shape = 's32[1]{0}', space=sflag, size = 0x4, scoped, tag = 'scoped memory for tpu_custom_call.1']
    #allocation8 [shape = 'u8[131072]{0}', space=vmem, size = 0x20000, scoped, tag = 'input window, operand 2, single buffered']
    #allocation9 [shape = 'u8[131072]{0}', space=vmem, size = 0x20000, scoped, tag = 'output window, operand 0']
    #allocation10 [shape = 'u8[4096]{0}', space=vmem, size = 0x1000, scoped, tag = 'output window, operand 1, single buffered']
    #allocation11 [shape = 's32[1]{0}', space=sflag, size = 0x4, scoped, tag = 'scoped memory for tpu_custom_call.1']
    #allocation12 [shape = 'u8[4096]{0}', space=vmem, size = 0x1000, scoped, tag = 'output window, operand 2, single buffered']
    %12 = vsyncpa [#allocation4], 0
    %s13 = scalar_lea.sflag [#allocation4], 1
    %14 = vsyncpa %s13, 0
    %15 = vsyncpa [#allocation7], 0
    %16 = vsyncpa [#allocation5], 0
    %s17 = scalar_lea.sflag [#allocation5], 1
    %18 = vsyncpa %s17, 0
    %19 = vsyncpa [#allocation11], 0
    loop: start=0, step=1, limit=4
    $region2: #{tpu_custom_call.1} parent=1 // loop_pre_header
      _
    $region3: #{tpu_custom_call.1} parent=1 // loop_header
      %s21 = sphi 0, %s25
      %p22 = scmp.ge.s32.totalorder %s21, 4
      %s31 = sphi 0, %s33
      %s34 = sphi 0, %s31
      %s35 = sphi 0, %s34
      %s51 = sphi 0, %s35
      %s55 = sphi 0, %s55
      %s57 = sphi 0, %s55
      %s58 = sphi 0, %s57
      %s72 = sphi 0, %s58
      %s76 = sphi 0, %s76
      %s78 = sphi 0, %s76
      %s79 = sphi 0, %s78
      %s93 = sphi 0, %s79
      %s97 = sphi 0, %s97
      %s99 = sphi 0, %s97
      %s100 = sphi 0, %s99
      %s114 = sphi 0, %s100
      %s120 = sphi 0, %s122
      %s123 = sphi 0, %s120
      %s124 = sphi 0, %s123
      %s140 = sphi 0, %s124
      %s144 = sphi 0, %s144
      %s146 = sphi 0, %s144
      %s147 = sphi 0, %s146
      %s161 = sphi 0, %s147
      %s165 = sphi 0, %s165
      %s167 = sphi 0, %s165
      %s168 = sphi 0, %s167
      %s182 = sphi 0, %s168
    $region4: #{tpu_custom_call.1} parent=1 // loop_header_branch
      %24 = sbr.rel (%p22) target = $region8
    $region5: #{tpu_custom_call.1} parent=1 // loop_body
      %s26 = ssub.s32 %s21, 1
      %s27 = ssub.s32 %s21, 2
      %s28 = sadd.s32 %s21, 1
      %s29 = ssub.s32 %s21, %s28
      %p30 = scmp.eq.s32.totalorder %s29, 0
      %s32 = sadd.s32 %s31, 1
      %s33 = scalar_select %p30, %s31, %s32
      %p36 = pneg %p30
      %p37 = scmp.eq.s32.totalorder %s21, 1
      %p38 = por %p36, %p37
      %p39 = scmp.ne.s32.totalorder %s31, %s34
      %p40 = scmp.eq.s32.totalorder %s21, 0
      %p41 = por %p39, %p40
      %p42 = scmp.ne.s32.totalorder %s31, %s34
      %p43 = scmp.eq.s32.totalorder %s26, 1
      %p44 = por %p42, %p43
      %p45 = scmp.ne.s32.totalorder %s34, %s35
      %p46 = scmp.eq.s32.totalorder %s26, 0
      %p47 = por %p45, %p46
      %p48 = scmp.ne.s32.totalorder %s34, %s35
      %p49 = scmp.eq.s32.totalorder %s27, 1
      %p50 = por %p48, %p49
      %p52 = scmp.ne.s32.totalorder %s35, %s51
      %p53 = scmp.eq.s32.totalorder %s27, 0
      %p54 = por %p52, %p53
      %s56 = sadd.s32 %s55, 1
      %p59 = scmp.eq.s32.totalorder %s21, 1
      %p60 = scmp.ne.s32.totalorder %s55, %s57
      %p61 = scmp.eq.s32.totalorder %s21, 0
      %p62 = por %p60, %p61
      %p63 = scmp.ne.s32.totalorder %s55, %s57
      %p64 = scmp.eq.s32.totalorder %s26, 1
      %p65 = por %p63, %p64
      %p66 = scmp.ne.s32.totalorder %s57, %s58
      %p67 = scmp.eq.s32.totalorder %s26, 0
      %p68 = por %p66, %p67
      %p69 = scmp.ne.s32.totalorder %s57, %s58
      %p70 = scmp.eq.s32.totalorder %s27, 1
      %p71 = por %p69, %p70
      %p73 = scmp.ne.s32.totalorder %s58, %s72
      %p74 = scmp.eq.s32.totalorder %s27, 0
      %p75 = por %p73, %p74
      %s77 = sadd.s32 %s76, 1
      %p80 = scmp.eq.s32.totalorder %s21, 1
      %p81 = scmp.ne.s32.totalorder %s76, %s78
      %p82 = scmp.eq.s32.totalorder %s21, 0
      %p83 = por %p81, %p82
      %p84 = scmp.ne.s32.totalorder %s76, %s78
      %p85 = scmp.eq.s32.totalorder %s26, 1
      %p86 = por %p84, %p85
      %p87 = scmp.ne.s32.totalorder %s78, %s79
      %p88 = scmp.eq.s32.totalorder %s26, 0
      %p89 = por %p87, %p88
      %p90 = scmp.ne.s32.totalorder %s78, %s79
      %p91 = scmp.eq.s32.totalorder %s27, 1
      %p92 = por %p90, %p91
      %p94 = scmp.ne.s32.totalorder %s79, %s93
      %p95 = scmp.eq.s32.totalorder %s27, 0
      %p96 = por %p94, %p95
      %s98 = sadd.s32 %s97, 1
      %p101 = scmp.eq.s32.totalorder %s21, 1
      %p102 = scmp.ne.s32.totalorder %s97, %s99
      %p103 = scmp.eq.s32.totalorder %s21, 0
      %p104 = por %p102, %p103
      %p105 = scmp.ne.s32.totalorder %s97, %s99
      %p106 = scmp.eq.s32.totalorder %s26, 1
      %p107 = por %p105, %p106
      %p108 = scmp.ne.s32.totalorder %s99, %s100
      %p109 = scmp.eq.s32.totalorder %s26, 0
      %p110 = por %p108, %p109
      %p111 = scmp.ne.s32.totalorder %s99, %s100
      %p112 = scmp.eq.s32.totalorder %s27, 1
      %p113 = por %p111, %p112
      %p115 = scmp.ne.s32.totalorder %s100, %s114
      %p116 = scmp.eq.s32.totalorder %s27, 0
      %p117 = por %p115, %p116
      %s118 = ssub.s32 %s21, %s28
      %p119 = scmp.eq.s32.totalorder %s118, 0
      %s121 = sadd.s32 %s120, 1
      %s122 = scalar_select %p119, %s120, %s121
      %p125 = pneg %p119
      %p126 = scmp.eq.s32.totalorder %s21, 1
      %p127 = por %p125, %p126
      %p128 = scmp.ne.s32.totalorder %s120, %s123
      %p129 = scmp.eq.s32.totalorder %s21, 0
      %p130 = por %p128, %p129
      %p131 = scmp.ne.s32.totalorder %s120, %s123
      %p132 = scmp.eq.s32.totalorder %s26, 1
      %p133 = por %p131, %p132
      %p134 = scmp.ne.s32.totalorder %s123, %s124
      %p135 = scmp.eq.s32.totalorder %s26, 0
      %p136 = por %p134, %p135
      %p137 = scmp.ne.s32.totalorder %s123, %s124
      %p138 = scmp.eq.s32.totalorder %s27, 1
      %p139 = por %p137, %p138
      %p141 = scmp.ne.s32.totalorder %s124, %s140
      %p142 = scmp.eq.s32.totalorder %s27, 0
      %p143 = por %p141, %p142
      %s145 = sadd.s32 %s144, 1
      %p148 = scmp.eq.s32.totalorder %s21, 1
      %p149 = scmp.ne.s32.totalorder %s144, %s146
      %p150 = scmp.eq.s32.totalorder %s21, 0
      %p151 = por %p149, %p150
      %p152 = scmp.ne.s32.totalorder %s144, %s146
      %p153 = scmp.eq.s32.totalorder %s26, 1
      %p154 = por %p152, %p153
      %p155 = scmp.ne.s32.totalorder %s146, %s147
      %p156 = scmp.eq.s32.totalorder %s26, 0
      %p157 = por %p155, %p156
      %p158 = scmp.ne.s32.totalorder %s146, %s147
      %p159 = scmp.eq.s32.totalorder %s27, 1
      %p160 = por %p158, %p159
      %p162 = scmp.ne.s32.totalorder %s147, %s161
      %p163 = scmp.eq.s32.totalorder %s27, 0
      %p164 = por %p162, %p163
      %s166 = sadd.s32 %s165, 1
      %p169 = scmp.eq.s32.totalorder %s21, 1
      %p170 = scmp.ne.s32.totalorder %s165, %s167
      %p171 = scmp.eq.s32.totalorder %s21, 0
      %p172 = por %p170, %p171
      %p173 = scmp.ne.s32.totalorder %s165, %s167
      %p174 = scmp.eq.s32.totalorder %s26, 1
      %p175 = por %p173, %p174
      %p176 = scmp.ne.s32.totalorder %s167, %s168
      %p177 = scmp.eq.s32.totalorder %s26, 0
      %p178 = por %p176, %p177
      %p179 = scmp.ne.s32.totalorder %s167, %s168
      %p180 = scmp.eq.s32.totalorder %s27, 1
      %p181 = por %p179, %p180
      %p183 = scmp.ne.s32.totalorder %s168, %s182
      %p184 = scmp.eq.s32.totalorder %s27, 0
      %p185 = por %p183, %p184
      %p186 = scmp.le.s32.totalorder 1, %s21
      %p187 = scmp.lt.s32.totalorder %s21, 3
      %p188 = pnand %p186, %p187
      %p189 = pneg %p188
      // Predicated region
      $region9: #{tpu_custom_call.1} parent=5 // pred_check
        _
      $region10: #{tpu_custom_call.1} parent=5 // pred_check_branch
        %191 = sbr.rel (%p188) target = $region12
      $region11: #{tpu_custom_call.1} parent=5 // pred_region
        %s192 = ssub.s32 %s21, 1
        // Predicated region
        $region13: #{tpu_custom_call.1} parent=11 // pred_check
          %p193 = pneg %p68
        $region14: #{tpu_custom_call.1} parent=11 // pred_check_branch
          %195 = sbr.rel (%p193) target = $region16
        $region15: #{tpu_custom_call.1} parent=11 // pred_region
          %s197 = ssub.s32 4096, 4096
          %198 = vsyncadd [#allocation7], %s197
          %s199 = sshll.u32 [#allocation6], 4
          %s200 = int_to_ptr.vmem [resolvable:$true] %s199
          %205 = dma.hbm_to_vmem [thread:$0]  %s1, 4096, %s200, [#allocation7], 256, 256, 16
        $region16: #{tpu_custom_call.1} parent=11 // pred_fallthru
          _
        // Predicated region
        $region17: #{tpu_custom_call.1} parent=11 // pred_check
          %p206 = pneg %p89
        $region18: #{tpu_custom_call.1} parent=11 // pred_check_branch
          %208 = sbr.rel (%p206) target = $region20
        $region19: #{tpu_custom_call.1} parent=11 // pred_region
          %s210 = ssub.s32 4096, 4096
          %211 = vsyncadd [#allocation7], %s210
          %s212 = sshll.u32 [#allocation8], 4
          %s213 = int_to_ptr.vmem [resolvable:$true] %s212
          %218 = dma.hbm_to_vmem [thread:$0]  %s2, 4096, %s213, [#allocation7], 256, 256, 16
        $region20: #{tpu_custom_call.1} parent=11 // pred_fallthru
          _
        // Predicated region
        $region21: #{tpu_custom_call.1} parent=11 // pred_check
          %p219 = pneg %p110
        $region22: #{tpu_custom_call.1} parent=11 // pred_check_branch
          %221 = sbr.rel (%p219) target = $region24
        $region23: #{tpu_custom_call.1} parent=11 // pred_region
          _
        $region24: #{tpu_custom_call.1} parent=11 // pred_fallthru
          _
      $region12: #{tpu_custom_call.1} parent=5 // pred_fallthru
        _
      %p222 = scmp.lt.s32.totalorder %s21, 2
      // Predicated region
      $region25: #{tpu_custom_call.1} parent=5 // pred_check
        %p223 = pneg %p222
      $region26: #{tpu_custom_call.1} parent=5 // pred_check_branch
        %225 = sbr.rel (%p223) target = $region28
      $region27: #{tpu_custom_call.1} parent=5 // pred_region
        // Predicated region
        $region29: #{tpu_custom_call.1} parent=27 // pred_check
          %p226 = pneg %p41
        $region30: #{tpu_custom_call.1} parent=27 // pred_check_branch
          %228 = sbr.rel (%p226) target = $region32
        $region31: #{tpu_custom_call.1} parent=27 // pred_region
          %s229 = sand.u32 %s31, 1
          %s230 = scalar_lea.sflag [#allocation4], %s229
          %s231 = sand.u32 %s31, 1
          %s232 = smul.addr %s231, 128
          %s233 = scalar_lea.vmem [#allocation3], %s232
          %s234 = smul.u32 16, %s21
          %s236 = ssub.s32 2048, 2048
          %237 = vsyncadd %s230, %s236
          %s238 = smul.addr %s234, 128
          %s239 = scalar_lea.hbm %s0, %s238
          %s240 = sshll.u32 %s233, 4
          %s241 = int_to_ptr.vmem [resolvable:$true] %s240
          %246 = dma.hbm_to_vmem [thread:$0]  %s239, 2048, %s241, %s230, 128, 128, 8
        $region32: #{tpu_custom_call.1} parent=27 // pred_fallthru
          _
      $region28: #{tpu_custom_call.1} parent=5 // pred_fallthru
        _
      %p247 = scmp.le.s32.totalorder 1, %s21
      %p248 = scmp.lt.s32.totalorder %s21, 3
      %p249 = pnand %p247, %p248
      %p250 = pneg %p249
      // Predicated region
      $region33: #{tpu_custom_call.1} parent=5 // pred_check
        _
      $region34: #{tpu_custom_call.1} parent=5 // pred_check_branch
        %252 = sbr.rel (%p249) target = $region36
      $region35: #{tpu_custom_call.1} parent=5 // pred_region
        %s253 = ssub.s32 %s21, 1
        %s254 = sand.u32 %s34, 1
        %s255 = scalar_lea.sflag [#allocation4], %s254
        %s256 = sand.u32 %s34, 1
        %s257 = smul.addr %s256, 128
        %s258 = scalar_lea.vmem [#allocation3], %s257
        // Predicated region
        $region37: #{tpu_custom_call.1} parent=35 // pred_check
          %p259 = pneg %p47
        $region38: #{tpu_custom_call.1} parent=35 // pred_check_branch
          %261 = sbr.rel (%p259) target = $region40
        $region39: #{tpu_custom_call.1} parent=35 // pred_region
          %262 = dma.done %s255, 2048
        $region40: #{tpu_custom_call.1} parent=35 // pred_fallthru
          _
        // Predicated region
        $region41: #{tpu_custom_call.1} parent=35 // pred_check
          %p263 = pneg %p68
        $region42: #{tpu_custom_call.1} parent=35 // pred_check_branch
          %265 = sbr.rel (%p263) target = $region44
        $region43: #{tpu_custom_call.1} parent=35 // pred_region
          %266 = dma.done [#allocation7], 4096
        $region44: #{tpu_custom_call.1} parent=35 // pred_fallthru
          _
        // Predicated region
        $region45: #{tpu_custom_call.1} parent=35 // pred_check
          %p267 = pneg %p89
        $region46: #{tpu_custom_call.1} parent=35 // pred_check_branch
          %269 = sbr.rel (%p267) target = $region48
        $region47: #{tpu_custom_call.1} parent=35 // pred_region
          %270 = dma.done [#allocation7], 4096
        $region48: #{tpu_custom_call.1} parent=35 // pred_fallthru
          _
        %s271 = sand.u32 %s34, 1
        %s272 = scalar_lea.sflag [#allocation4], %s271
        %s273 = sand.u32 %s34, 1
        %s274 = smul.addr %s273, 128
        %s275 = scalar_lea.vmem [#allocation3], %s274
        %p276 = pneg %p47
        %p277 = pneg %p44
        %p278 = pneg %p68
        %p279 = pneg %p65
        %p280 = pneg %p89
        %p281 = pneg %p86
        %p282 = pneg %p110
        %p283 = pneg %p107
        %p284 = pneg %p136
        %p285 = pneg %p133
        %s286 = sand.u32 %s123, 1
        %s287 = scalar_lea.sflag [#allocation5], %s286
        %s288 = sand.u32 %s123, 1
        %s289 = smul.addr %s288, 128
        %s290 = scalar_lea.vmem [#allocation9], %s289
        %p291 = pneg %p157
        %p292 = pneg %p154
        %p293 = pneg %p178
        %p294 = pneg %p175
        %s295 = smul.u32 16, %s26
        %s296 = smul.u32 16, %s26
        %p298 = scmp.eq.s32.totalorder %s26, 0
        // Predicated region
        $region49: #{tpu_custom_call.1} parent=35 // pred_check
          %p299 = pneg %p298
        $region50: #{tpu_custom_call.1} parent=35 // pred_check_branch
          %301 = sbr.rel (%p299) target = $region52
        $region51: #{tpu_custom_call.1} parent=35 // pred_region
          %302 = vst [vmem:[#allocation10] sm:$0xff] 0.0
          %303 = vst [vmem:[#allocation12] sm:$0xff] 0.0
        $region52: #{tpu_custom_call.1} parent=35 // pred_fallthru
          _
        %v304 = vld [vmem:[%s258] sm:$0xff]
        %v305 = vld [vmem:[%s258 + $0x8] sm:$0xff]
        %v306 = vld [vmem:[%s258 + $0x10] sm:$0xff]
        %v307 = vld [vmem:[%s258 + $0x18] sm:$0xff]
        %v308 = vld [vmem:[%s258 + $0x20] sm:$0xff]
        %v309 = vld [vmem:[%s258 + $0x28] sm:$0xff]
        %v310 = vld [vmem:[%s258 + $0x30] sm:$0xff]
        %v311 = vld [vmem:[%s258 + $0x38] sm:$0xff]
        %v312 = vld [vmem:[%s258 + $0x40] sm:$0xff]
        %v313 = vld [vmem:[%s258 + $0x48] sm:$0xff]
        %v314 = vld [vmem:[%s258 + $0x50] sm:$0xff]
        %v315 = vld [vmem:[%s258 + $0x58] sm:$0xff]
        %v316 = vld [vmem:[%s258 + $0x60] sm:$0xff]
        %v317 = vld [vmem:[%s258 + $0x68] sm:$0xff]
        %v318 = vld [vmem:[%s258 + $0x70] sm:$0xff]
        %v319 = vld [vmem:[%s258 + $0x78] sm:$0xff]
        %v320 = vpack.c.bf16 %v305, %v304
        %v321 = vpack.c.bf16 %v307, %v306
        %v322 = vpack.c.bf16 %v309, %v308
        %v323 = vpack.c.bf16 %v311, %v310
        %v324 = vpack.c.bf16 %v313, %v312
        %v325 = vpack.c.bf16 %v315, %v314
        %v326 = vpack.c.bf16 %v317, %v316
        %v327 = vpack.c.bf16 %v319, %v318
        %v328 = vld [vmem:[#allocation6] sm:$0xff]
        %v329 = vld [vmem:[#allocation6 + $0x8] sm:$0xff]
        %v330 = vld [vmem:[#allocation6 + $0x10] sm:$0xff]
        %v331 = vld [vmem:[#allocation6 + $0x18] sm:$0xff]
        %v332 = vld [vmem:[#allocation6 + $0x20] sm:$0xff]
        %v333 = vld [vmem:[#allocation6 + $0x28] sm:$0xff]
        %v334 = vld [vmem:[#allocation6 + $0x30] sm:$0xff]
        %v335 = vld [vmem:[#allocation6 + $0x38] sm:$0xff]
        %v336 = vld [vmem:[#allocation6 + $0x40] sm:$0xff]
        %v337 = vld [vmem:[#allocation6 + $0x48] sm:$0xff]
        %v338 = vld [vmem:[#allocation6 + $0x50] sm:$0xff]
        %v339 = vld [vmem:[#allocation6 + $0x58] sm:$0xff]
        %v340 = vld [vmem:[#allocation6 + $0x60] sm:$0xff]
        %v341 = vld [vmem:[#allocation6 + $0x68] sm:$0xff]
        %v342 = vld [vmem:[#allocation6 + $0x70] sm:$0xff]
        %v343 = vld [vmem:[#allocation6 + $0x78] sm:$0xff]
        %v344 = vld [vmem:[#allocation6 + $0x80] sm:$0xff]
        %v345 = vld [vmem:[#allocation6 + $0x88] sm:$0xff]
        %v346 = vld [vmem:[#allocation6 + $0x90] sm:$0xff]
        %v347 = vld [vmem:[#allocation6 + $0x98] sm:$0xff]
        %v348 = vld [vmem:[#allocation6 + $0xa0] sm:$0xff]
        %v349 = vld [vmem:[#allocation6 + $0xa8] sm:$0xff]
        %v350 = vld [vmem:[#allocation6 + $0xb0] sm:$0xff]
        %v351 = vld [vmem:[#allocation6 + $0xb8] sm:$0xff]
        %v352 = vld [vmem:[#allocation6 + $0xc0] sm:$0xff]
        %v353 = vld [vmem:[#allocation6 + $0xc8] sm:$0xff]
        %v354 = vld [vmem:[#allocation6 + $0xd0] sm:$0xff]
        %v355 = vld [vmem:[#allocation6 + $0xd8] sm:$0xff]
        %v356 = vld [vmem:[#allocation6 + $0xe0] sm:$0xff]
        %v357 = vld [vmem:[#allocation6 + $0xe8] sm:$0xff]
        %v358 = vld [vmem:[#allocation6 + $0xf0] sm:$0xff]
        %v359 = vld [vmem:[#allocation6 + $0xf8] sm:$0xff]
        %v360 = vld [vmem:[%s3] sm:$0xf]
        %v362 = vlaneseq
        %v363 = vshrl.u32 %v362, 7
        %v364 = vsub.s32 0, %v363
        %v365 = vrot.slane %v360, %v364
        %v366 = vlaneseq
        %v367 = vshrl.u32 %v366, 7
        %v368 = vsub.s32 1, %v367
        %v369 = vrot.slane %v360, %v368
        %v370 = vlaneseq
        %v371 = vshrl.u32 %v370, 7
        %v372 = vsub.s32 2, %v371
        %v373 = vrot.slane %v360, %v372
        %v374 = vlaneseq
        %v375 = vshrl.u32 %v374, 7
        %v376 = vsub.s32 3, %v375
        %v377 = vrot.slane %v360, %v376
        %v414 = vunpack.c.l.b16 %v328
        %v415 = vunpack.c.h.b16 %v328
        %v416 = vunpack.c.l.b16 %v329
        %v417 = vunpack.c.h.b16 %v329
        %v418 = vunpack.c.l.b16 %v330
        %v419 = vunpack.c.h.b16 %v330
        %v420 = vunpack.c.l.b16 %v331
        %v421 = vunpack.c.h.b16 %v331
        %v422 = vunpack.c.l.b16 %v332
        %v423 = vunpack.c.h.b16 %v332
        %v424 = vunpack.c.l.b16 %v333
        %v425 = vunpack.c.h.b16 %v333
        %v426 = vunpack.c.l.b16 %v334
        %v427 = vunpack.c.h.b16 %v334
        %v428 = vunpack.c.l.b16 %v335
        %v429 = vunpack.c.h.b16 %v335
        %v430 = vunpack.c.l.b16 %v336
        %v431 = vunpack.c.h.b16 %v336
        %v432 = vunpack.c.l.b16 %v337
        %v433 = vunpack.c.h.b16 %v337
        %v434 = vunpack.c.l.b16 %v338
        %v435 = vunpack.c.h.b16 %v338
        %v436 = vunpack.c.l.b16 %v339
        %v437 = vunpack.c.h.b16 %v339
        %v438 = vunpack.c.l.b16 %v340
        %v439 = vunpack.c.h.b16 %v340
        %v440 = vunpack.c.l.b16 %v341
        %v441 = vunpack.c.h.b16 %v341
        %v442 = vunpack.c.l.b16 %v342
        %v443 = vunpack.c.h.b16 %v342
        %v444 = vunpack.c.l.b16 %v343
        %v445 = vunpack.c.h.b16 %v343
        %v446 = vunpack.c.l.b16 %v344
        %v447 = vunpack.c.h.b16 %v344
        %v448 = vunpack.c.l.b16 %v345
        %v449 = vunpack.c.h.b16 %v345
        %v450 = vunpack.c.l.b16 %v346
        %v451 = vunpack.c.h.b16 %v346
        %v452 = vunpack.c.l.b16 %v347
        %v453 = vunpack.c.h.b16 %v347
        %v454 = vunpack.c.l.b16 %v348
        %v455 = vunpack.c.h.b16 %v348
        %v456 = vunpack.c.l.b16 %v349
        %v457 = vunpack.c.h.b16 %v349
        %v458 = vunpack.c.l.b16 %v350
        %v459 = vunpack.c.h.b16 %v350
        %v460 = vunpack.c.l.b16 %v351
        %v461 = vunpack.c.h.b16 %v351
        %v462 = vunpack.c.l.b16 %v352
        %v463 = vunpack.c.h.b16 %v352
        %v464 = vunpack.c.l.b16 %v353
        %v465 = vunpack.c.h.b16 %v353
        %v466 = vunpack.c.l.b16 %v354
        %v467 = vunpack.c.h.b16 %v354
        %v468 = vunpack.c.l.b16 %v355
        %v469 = vunpack.c.h.b16 %v355
        %v470 = vunpack.c.l.b16 %v356
        %v471 = vunpack.c.h.b16 %v356
        %v472 = vunpack.c.l.b16 %v357
        %v473 = vunpack.c.h.b16 %v357
        %v474 = vunpack.c.l.b16 %v358
        %v475 = vunpack.c.h.b16 %v358
        %v476 = vunpack.c.l.b16 %v359
        %v477 = vunpack.c.h.b16 %v359
        %v478 = vpack.c.b16 %v418, %v414
        %v479 = vpack.c.b16 %v419, %v415
        %v480 = vpack.c.b16 %v420, %v416
        %v481 = vpack.c.b16 %v421, %v417
        %v482 = vpack.c.b16 %v426, %v422
        %v483 = vpack.c.b16 %v427, %v423
        %v484 = vpack.c.b16 %v428, %v424
        %v485 = vpack.c.b16 %v429, %v425
        %v486 = vpack.c.b16 %v434, %v430
        %v487 = vpack.c.b16 %v435, %v431
        %v488 = vpack.c.b16 %v436, %v432
        %v489 = vpack.c.b16 %v437, %v433
        %v490 = vpack.c.b16 %v442, %v438
        %v491 = vpack.c.b16 %v443, %v439
        %v492 = vpack.c.b16 %v444, %v440
        %v493 = vpack.c.b16 %v445, %v441
        %v494 = vpack.c.b16 %v450, %v446
        %v495 = vpack.c.b16 %v451, %v447
        %v496 = vpack.c.b16 %v452, %v448
        %v497 = vpack.c.b16 %v453, %v449
        %v498 = vpack.c.b16 %v458, %v454
        %v499 = vpack.c.b16 %v459, %v455
        %v500 = vpack.c.b16 %v460, %v456
        %v501 = vpack.c.b16 %v461, %v457
        %v502 = vpack.c.b16 %v466, %v462
        %v503 = vpack.c.b16 %v467, %v463
        %v504 = vpack.c.b16 %v468, %v464
        %v505 = vpack.c.b16 %v469, %v465
        %v506 = vpack.c.b16 %v474, %v470
        %v507 = vpack.c.b16 %v475, %v471
        %v508 = vpack.c.b16 %v476, %v472
        %v509 = vpack.c.b16 %v477, %v473
        %542 = vmatprep.subr.bf16.mxu0 %v479
        %543 = vmatpush1.bf16.msra.mxu0 %v478
        %544 = vmatprep.subr.bf16.mxu0 %v483
        %545 = vmatpush1.bf16.msra.mxu0 %v482
        %546 = vmatprep.subr.bf16.mxu0 %v487
        %547 = vmatpush1.bf16.msra.mxu0 %v486
        %548 = vmatprep.subr.bf16.mxu0 %v491
        %549 = vmatpush1.bf16.msra.mxu0 %v490
        %550 = vmatprep.subr.bf16.mxu0 %v495
        %551 = vmatpush1.bf16.msra.mxu0 %v494
        %552 = vmatprep.subr.bf16.mxu0 %v499
        %553 = vmatpush1.bf16.msra.mxu0 %v498
        %554 = vmatprep.subr.bf16.mxu0 %v503
        %555 = vmatpush1.bf16.msra.mxu0 %v502
        %556 = vmatprep.subr.bf16.mxu0 %v507
        %557 = vmatpush1.bf16.msra.mxu0 %v506
        %558 = vmatprep.subr.bf16.mxu0 0
        %559 = vmatpush1.bf16.msra.mxu0 0
        %560 = vmatprep.subr.bf16.mxu0 0
        %561 = vmatpush1.bf16.msra.mxu0 0
        %562 = vmatprep.subr.bf16.mxu0 0
        %563 = vmatpush1.bf16.msra.mxu0 0
        %564 = vmatprep.subr.bf16.mxu0 0
        %565 = vmatpush1.bf16.msra.mxu0 0
        %566 = vmatprep.subr.bf16.mxu0 0
        %567 = vmatpush1.bf16.msra.mxu0 0
        %568 = vmatprep.subr.bf16.mxu0 0
        %569 = vmatpush1.bf16.msra.mxu0 0
        %570 = vmatprep.subr.bf16.mxu0 0
        %571 = vmatpush1.bf16.msra.mxu0 0
        %572 = vmatprep.subr.bf16.mxu0 0
        %573 = vmatpush1.bf16.msra.mxu0 0
        %574 = vmatprep.mubr.bf16.mxu0 0
        %575 = vmatmul.mubr.bf16.gmra.mrb[0].mxu0 %v320
        %v576 = vpop.f32.mrb[0].mxu0
        %v577 = vadd.f32 %v365, %v576
        %v578 = vpop.f32.mrb[0].mxu0
        %v579 = vadd.f32 %v369, %v578
        %v580 = vpop.f32.mrb[0].mxu0
        %v581 = vadd.f32 %v365, %v580
        %v582 = vpop.f32.mrb[0].mxu0
        %v583 = vadd.f32 %v369, %v582
        %584 = vmatprep.mubr.bf16.mxu0 0
        %585 = vmatmul.mubr.bf16.gmra.mrb[0].mxu0 %v321
        %v586 = vpop.f32.mrb[0].mxu0
        %v587 = vadd.f32 %v365, %v586
        %v588 = vpop.f32.mrb[0].mxu0
        %v589 = vadd.f32 %v369, %v588
        %v590 = vpop.f32.mrb[0].mxu0
        %v591 = vadd.f32 %v365, %v590
        %v592 = vpop.f32.mrb[0].mxu0
        %v593 = vadd.f32 %v369, %v592
        %594 = vmatprep.mubr.bf16.mxu0 0
        %595 = vmatmul.mubr.bf16.gmra.mrb[0].mxu0 %v322
        %v596 = vpop.f32.mrb[0].mxu0
        %v597 = vadd.f32 %v365, %v596
        %v598 = vpop.f32.mrb[0].mxu0
        %v599 = vadd.f32 %v369, %v598
        %v600 = vpop.f32.mrb[0].mxu0
        %v601 = vadd.f32 %v365, %v600
        %v602 = vpop.f32.mrb[0].mxu0
        %v603 = vadd.f32 %v369, %v602
        %604 = vmatprep.mubr.bf16.mxu0 0
        %605 = vmatmul.mubr.bf16.gmra.mrb[0].mxu0 %v323
        %v606 = vpop.f32.mrb[0].mxu0
        %v607 = vadd.f32 %v365, %v606
        %v608 = vpop.f32.mrb[0].mxu0
        %v609 = vadd.f32 %v369, %v608
        %v610 = vpop.f32.mrb[0].mxu0
        %v611 = vadd.f32 %v365, %v610
        %v612 = vpop.f32.mrb[0].mxu0
        %v613 = vadd.f32 %v369, %v612
        %614 = vmatprep.mubr.bf16.mxu0 0
        %615 = vmatmul.mubr.bf16.gmra.mrb[0].mxu0 %v324
        %v616 = vpop.f32.mrb[0].mxu0
        %v617 = vadd.f32 %v365, %v616
        %v618 = vpop.f32.mrb[0].mxu0
        %v619 = vadd.f32 %v369, %v618
        %v620 = vpop.f32.mrb[0].mxu0
        %v621 = vadd.f32 %v365, %v620
        %v622 = vpop.f32.mrb[0].mxu0
        %v623 = vadd.f32 %v369, %v622
        %624 = vmatprep.mubr.bf16.mxu0 0
        %625 = vmatmul.mubr.bf16.gmra.mrb[0].mxu0 %v325
        %v626 = vpop.f32.mrb[0].mxu0
        %v627 = vadd.f32 %v365, %v626
        %v628 = vpop.f32.mrb[0].mxu0
        %v629 = vadd.f32 %v369, %v628
        %v630 = vpop.f32.mrb[0].mxu0
        %v631 = vadd.f32 %v365, %v630
        %v632 = vpop.f32.mrb[0].mxu0
        %v633 = vadd.f32 %v369, %v632
        %634 = vmatprep.mubr.bf16.mxu0 0
        %635 = vmatmul.mubr.bf16.gmra.mrb[0].mxu0 %v326
        %v636 = vpop.f32.mrb[0].mxu0
        %v637 = vadd.f32 %v365, %v636
        %v638 = vpop.f32.mrb[0].mxu0
        %v639 = vadd.f32 %v369, %v638
        %v640 = vpop.f32.mrb[0].mxu0
        %v641 = vadd.f32 %v365, %v640
        %v642 = vpop.f32.mrb[0].mxu0
        %v643 = vadd.f32 %v369, %v642
        %644 = vmatprep.mubr.bf16.mxu0 0
        %645 = vmatmul.mubr.bf16.gmra.mrb[0].mxu0 %v327
        %v646 = vpop.f32.mrb[0].mxu0
        %v647 = vadd.f32 %v365, %v646
        %v648 = vpop.f32.mrb[0].mxu0
        %v649 = vadd.f32 %v369, %v648
        %v650 = vpop.f32.mrb[0].mxu0
        %v651 = vadd.f32 %v365, %v650
        %v652 = vpop.f32.mrb[0].mxu0
        %v653 = vadd.f32 %v369, %v652
        %654 = vdwg.mxu0
        %655 = vmatprep.subr.bf16.mxu0 %v481
        %656 = vmatpush1.bf16.msra.mxu0 %v480
        %657 = vmatprep.subr.bf16.mxu0 %v485
        %658 = vmatpush1.bf16.msra.mxu0 %v484
        %659 = vmatprep.subr.bf16.mxu0 %v489
        %660 = vmatpush1.bf16.msra.mxu0 %v488
        %661 = vmatprep.subr.bf16.mxu0 %v493
        %662 = vmatpush1.bf16.msra.mxu0 %v492
        %663 = vmatprep.subr.bf16.mxu0 %v497
        %664 = vmatpush1.bf16.msra.mxu0 %v496
        %665 = vmatprep.subr.bf16.mxu0 %v501
        %666 = vmatpush1.bf16.msra.mxu0 %v500
        %667 = vmatprep.subr.bf16.mxu0 %v505
        %668 = vmatpush1.bf16.msra.mxu0 %v504
        %669 = vmatprep.subr.bf16.mxu0 %v509
        %670 = vmatpush1.bf16.msra.mxu0 %v508
        %671 = vmatprep.subr.bf16.mxu0 0
        %672 = vmatpush1.bf16.msra.mxu0 0
        %673 = vmatprep.subr.bf16.mxu0 0
        %674 = vmatpush1.bf16.msra.mxu0 0
        %675 = vmatprep.subr.bf16.mxu0 0
        %676 = vmatpush1.bf16.msra.mxu0 0
        %677 = vmatprep.subr.bf16.mxu0 0
        %678 = vmatpush1.bf16.msra.mxu0 0
        %679 = vmatprep.subr.bf16.mxu0 0
        %680 = vmatpush1.bf16.msra.mxu0 0
        %681 = vmatprep.subr.bf16.mxu0 0
        %682 = vmatpush1.bf16.msra.mxu0 0
        %683 = vmatprep.subr.bf16.mxu0 0
        %684 = vmatpush1.bf16.msra.mxu0 0
        %685 = vmatprep.subr.bf16.mxu0 0
        %686 = vmatpush1.bf16.msra.mxu0 0
        %687 = vmatprep.mubr.bf16.mxu0 0
        %688 = vmatmul.mubr.bf16.gmra.mrb[0].mxu0 %v320
        %v689 = vpop.f32.mrb[0].mxu0
        %v690 = vadd.f32 %v373, %v689
        %v691 = vpop.f32.mrb[0].mxu0
        %v692 = vadd.f32 %v377, %v691
        %v693 = vpop.f32.mrb[0].mxu0
        %v694 = vadd.f32 %v373, %v693
        %v695 = vpop.f32.mrb[0].mxu0
        %v696 = vadd.f32 %v377, %v695
        %697 = vmatprep.mubr.bf16.mxu0 0
        %698 = vmatmul.mubr.bf16.gmra.mrb[0].mxu0 %v321
        %v699 = vpop.f32.mrb[0].mxu0
        %v700 = vadd.f32 %v373, %v699
        %v701 = vpop.f32.mrb[0].mxu0
        %v702 = vadd.f32 %v377, %v701
        %v703 = vpop.f32.mrb[0].mxu0
        %v704 = vadd.f32 %v373, %v703
        %v705 = vpop.f32.mrb[0].mxu0
        %v706 = vadd.f32 %v377, %v705
        %707 = vmatprep.mubr.bf16.mxu0 0
        %708 = vmatmul.mubr.bf16.gmra.mrb[0].mxu0 %v322
        %v709 = vpop.f32.mrb[0].mxu0
        %v710 = vadd.f32 %v373, %v709
        %v711 = vpop.f32.mrb[0].mxu0
        %v712 = vadd.f32 %v377, %v711
        %v713 = vpop.f32.mrb[0].mxu0
        %v714 = vadd.f32 %v373, %v713
        %v715 = vpop.f32.mrb[0].mxu0
        %v716 = vadd.f32 %v377, %v715
        %717 = vmatprep.mubr.bf16.mxu0 0
        %718 = vmatmul.mubr.bf16.gmra.mrb[0].mxu0 %v323
        %v719 = vpop.f32.mrb[0].mxu0
        %v720 = vadd.f32 %v373, %v719
        %v721 = vpop.f32.mrb[0].mxu0
        %v722 = vadd.f32 %v377, %v721
        %v723 = vpop.f32.mrb[0].mxu0
        %v724 = vadd.f32 %v373, %v723
        %v725 = vpop.f32.mrb[0].mxu0
        %v726 = vadd.f32 %v377, %v725
        %727 = vmatprep.mubr.bf16.mxu0 0
        %728 = vmatmul.mubr.bf16.gmra.mrb[0].mxu0 %v324
        %v729 = vpop.f32.mrb[0].mxu0
        %v730 = vadd.f32 %v373, %v729
        %v731 = vpop.f32.mrb[0].mxu0
        %v732 = vadd.f32 %v377, %v731
        %v733 = vpop.f32.mrb[0].mxu0
        %v734 = vadd.f32 %v373, %v733
        %v735 = vpop.f32.mrb[0].mxu0
        %v736 = vadd.f32 %v377, %v735
        %737 = vmatprep.mubr.bf16.mxu0 0
        %738 = vmatmul.mubr.bf16.gmra.mrb[0].mxu0 %v325
        %v739 = vpop.f32.mrb[0].mxu0
        %v740 = vadd.f32 %v373, %v739
        %v741 = vpop.f32.mrb[0].mxu0
        %v742 = vadd.f32 %v377, %v741
        %v743 = vpop.f32.mrb[0].mxu0
        %v744 = vadd.f32 %v373, %v743
        %v745 = vpop.f32.mrb[0].mxu0
        %v746 = vadd.f32 %v377, %v745
        %747 = vmatprep.mubr.bf16.mxu0 0
        %748 = vmatmul.mubr.bf16.gmra.mrb[0].mxu0 %v326
        %v749 = vpop.f32.mrb[0].mxu0
        %v750 = vadd.f32 %v373, %v749
        %v751 = vpop.f32.mrb[0].mxu0
        %v752 = vadd.f32 %v377, %v751
        %v753 = vpop.f32.mrb[0].mxu0
        %v754 = vadd.f32 %v373, %v753
        %v755 = vpop.f32.mrb[0].mxu0
        %v756 = vadd.f32 %v377, %v755
        %757 = vmatprep.mubr.bf16.mxu0 0
        %758 = vmatmul.mubr.bf16.gmra.mrb[0].mxu0 %v327
        %v759 = vpop.f32.mrb[0].mxu0
        %v760 = vadd.f32 %v373, %v759
        %v761 = vpop.f32.mrb[0].mxu0
        %v762 = vadd.f32 %v377, %v761
        %v763 = vpop.f32.mrb[0].mxu0
        %v764 = vadd.f32 %v373, %v763
        %v765 = vpop.f32.mrb[0].mxu0
        %v766 = vadd.f32 %v377, %v765
        %767 = vdwg.mxu0
        %768 = vst [vmem:[#allocation2] sm:$0xff] %v577
        %769 = vst [vmem:[#allocation2 + $0x8] sm:$0xff] %v579
        %770 = vst [vmem:[#allocation2 + $0x10] sm:$0xff] %v690
        %771 = vst [vmem:[#allocation2 + $0x18] sm:$0xff] %v692
        %772 = vst [vmem:[#allocation2 + $0x20] sm:$0xff] %v581
        %773 = vst [vmem:[#allocation2 + $0x28] sm:$0xff] %v583
        %774 = vst [vmem:[#allocation2 + $0x30] sm:$0xff] %v694
        %775 = vst [vmem:[#allocation2 + $0x38] sm:$0xff] %v696
        %776 = vst [vmem:[#allocation2 + $0x40] sm:$0xff] %v587
        %777 = vst [vmem:[#allocation2 + $0x48] sm:$0xff] %v589
        %778 = vst [vmem:[#allocation2 + $0x50] sm:$0xff] %v700
        %779 = vst [vmem:[#allocation2 + $0x58] sm:$0xff] %v702
        %780 = vst [vmem:[#allocation2 + $0x60] sm:$0xff] %v591
        %781 = vst [vmem:[#allocation2 + $0x68] sm:$0xff] %v593
        %782 = vst [vmem:[#allocation2 + $0x70] sm:$0xff] %v704
        %783 = vst [vmem:[#allocation2 + $0x78] sm:$0xff] %v706
        %784 = vst [vmem:[#allocation2 + $0x80] sm:$0xff] %v597
        %785 = vst [vmem:[#allocation2 + $0x88] sm:$0xff] %v599
        %786 = vst [vmem:[#allocation2 + $0x90] sm:$0xff] %v710
        %787 = vst [vmem:[#allocation2 + $0x98] sm:$0xff] %v712
        %788 = vst [vmem:[#allocation2 + $0xa0] sm:$0xff] %v601
        %789 = vst [vmem:[#allocation2 + $0xa8] sm:$0xff] %v603
        %790 = vst [vmem:[#allocation2 + $0xb0] sm:$0xff] %v714
        %791 = vst [vmem:[#allocation2 + $0xb8] sm:$0xff] %v716
        %792 = vst [vmem:[#allocation2 + $0xc0] sm:$0xff] %v607
        %793 = vst [vmem:[#allocation2 + $0xc8] sm:$0xff] %v609
        %794 = vst [vmem:[#allocation2 + $0xd0] sm:$0xff] %v720
        %795 = vst [vmem:[#allocation2 + $0xd8] sm:$0xff] %v722
        %796 = vst [vmem:[#allocation2 + $0xe0] sm:$0xff] %v611
        %797 = vst [vmem:[#allocation2 + $0xe8] sm:$0xff] %v613
        %798 = vst [vmem:[#allocation2 + $0xf0] sm:$0xff] %v724
        %799 = vst [vmem:[#allocation2 + $0xf8] sm:$0xff] %v726
        %800 = vst [vmem:[#allocation2 + $0x100] sm:$0xff] %v617
        %801 = vst [vmem:[#allocation2 + $0x108] sm:$0xff] %v619
        %802 = vst [vmem:[#allocation2 + $0x110] sm:$0xff] %v730
        %803 = vst [vmem:[#allocation2 + $0x118] sm:$0xff] %v732
        %804 = vst [vmem:[#allocation2 + $0x120] sm:$0xff] %v621
        %805 = vst [vmem:[#allocation2 + $0x128] sm:$0xff] %v623
        %806 = vst [vmem:[#allocation2 + $0x130] sm:$0xff] %v734
        %807 = vst [vmem:[#allocation2 + $0x138] sm:$0xff] %v736
        %808 = vst [vmem:[#allocation2 + $0x140] sm:$0xff] %v627
        %809 = vst [vmem:[#allocation2 + $0x148] sm:$0xff] %v629
        %810 = vst [vmem:[#allocation2 + $0x150] sm:$0xff] %v740
        %811 = vst [vmem:[#allocation2 + $0x158] sm:$0xff] %v742
        %812 = vst [vmem:[#allocation2 + $0x160] sm:$0xff] %v631
        %813 = vst [vmem:[#allocation2 + $0x168] sm:$0xff] %v633
        %814 = vst [vmem:[#allocation2 + $0x170] sm:$0xff] %v744
        %815 = vst [vmem:[#allocation2 + $0x178] sm:$0xff] %v746
        %816 = vst [vmem:[#allocation2 + $0x180] sm:$0xff] %v637
        %817 = vst [vmem:[#allocation2 + $0x188] sm:$0xff] %v639
        %818 = vst [vmem:[#allocation2 + $0x190] sm:$0xff] %v750
        %819 = vst [vmem:[#allocation2 + $0x198] sm:$0xff] %v752
        %820 = vst [vmem:[#allocation2 + $0x1a0] sm:$0xff] %v641
        %821 = vst [vmem:[#allocation2 + $0x1a8] sm:$0xff] %v643
        %822 = vst [vmem:[#allocation2 + $0x1b0] sm:$0xff] %v754
        %823 = vst [vmem:[#allocation2 + $0x1b8] sm:$0xff] %v756
        %824 = vst [vmem:[#allocation2 + $0x1c0] sm:$0xff] %v647
        %825 = vst [vmem:[#allocation2 + $0x1c8] sm:$0xff] %v649
        %826 = vst [vmem:[#allocation2 + $0x1d0] sm:$0xff] %v760
        %827 = vst [vmem:[#allocation2 + $0x1d8] sm:$0xff] %v762
        %828 = vst [vmem:[#allocation2 + $0x1e0] sm:$0xff] %v651
        %829 = vst [vmem:[#allocation2 + $0x1e8] sm:$0xff] %v653
        %830 = vst [vmem:[#allocation2 + $0x1f0] sm:$0xff] %v764
        %831 = vst [vmem:[#allocation2 + $0x1f8] sm:$0xff] %v766
        %v832 = vld [vmem:[#allocation10] sm:$0xff]
        %v833 = vld [vmem:[#allocation12] sm:$0xff]
        %v834 = vld [vmem:[#allocation2] sm:$0xff]
        %v835 = vld [vmem:[#allocation2 + $0x8] sm:$0xff]
        %v836 = vld [vmem:[#allocation2 + $0x10] sm:$0xff]
        %v837 = vld [vmem:[#allocation2 + $0x18] sm:$0xff]
        %v838 = vpack.c.bf16 %v832, %v832
        %v839 = vld [vmem:[#allocation8] sm:$0xff]
        %v840 = vld [vmem:[#allocation8 + $0x8] sm:$0xff]
        %v841 = vld [vmem:[#allocation8 + $0x10] sm:$0xff]
        %v842 = vld [vmem:[#allocation8 + $0x18] sm:$0xff]
        %v843 = vld [vmem:[#allocation8 + $0x20] sm:$0xff]
        %v844 = vld [vmem:[#allocation8 + $0x28] sm:$0xff]
        %v845 = vld [vmem:[#allocation8 + $0x30] sm:$0xff]
        %v846 = vld [vmem:[#allocation8 + $0x38] sm:$0xff]
        %v847 = vld [vmem:[#allocation8 + $0x40] sm:$0xff]
        %v848 = vld [vmem:[#allocation8 + $0x48] sm:$0xff]
        %v849 = vld [vmem:[#allocation8 + $0x50] sm:$0xff]
        %v850 = vld [vmem:[#allocation8 + $0x58] sm:$0xff]
        %v851 = vld [vmem:[#allocation8 + $0x60] sm:$0xff]
        %v852 = vld [vmem:[#allocation8 + $0x68] sm:$0xff]
        %v853 = vld [vmem:[#allocation8 + $0x70] sm:$0xff]
        %v854 = vld [vmem:[#allocation8 + $0x78] sm:$0xff]
        %v855 = vld [vmem:[#allocation8 + $0x80] sm:$0xff]
        %v856 = vld [vmem:[#allocation8 + $0x88] sm:$0xff]
        %v857 = vld [vmem:[#allocation8 + $0x90] sm:$0xff]
        %v858 = vld [vmem:[#allocation8 + $0x98] sm:$0xff]
        %v859 = vld [vmem:[#allocation8 + $0xa0] sm:$0xff]
        %v860 = vld [vmem:[#allocation8 + $0xa8] sm:$0xff]
        %v861 = vld [vmem:[#allocation8 + $0xb0] sm:$0xff]
        %v862 = vld [vmem:[#allocation8 + $0xb8] sm:$0xff]
        %v863 = vld [vmem:[#allocation8 + $0xc0] sm:$0xff]
        %v864 = vld [vmem:[#allocation8 + $0xc8] sm:$0xff]
        %v865 = vld [vmem:[#allocation8 + $0xd0] sm:$0xff]
        %v866 = vld [vmem:[#allocation8 + $0xd8] sm:$0xff]
        %v867 = vld [vmem:[#allocation8 + $0xe0] sm:$0xff]
        %v868 = vld [vmem:[#allocation8 + $0xe8] sm:$0xff]
        %v869 = vld [vmem:[#allocation8 + $0xf0] sm:$0xff]
        %v870 = vld [vmem:[#allocation8 + $0xf8] sm:$0xff]
        %v903 = vunpack.c.l.b16 %v839
        %v904 = vunpack.c.h.b16 %v839
        %v905 = vunpack.c.l.b16 %v840
        %v906 = vunpack.c.h.b16 %v840
        %v907 = vunpack.c.l.b16 %v841
        %v908 = vunpack.c.h.b16 %v841
        %v909 = vunpack.c.l.b16 %v842
        %v910 = vunpack.c.h.b16 %v842
        %v911 = vunpack.c.l.b16 %v843
        %v912 = vunpack.c.h.b16 %v843
        %v913 = vunpack.c.l.b16 %v844
        %v914 = vunpack.c.h.b16 %v844
        %v915 = vunpack.c.l.b16 %v845
        %v916 = vunpack.c.h.b16 %v845
        %v917 = vunpack.c.l.b16 %v846
        %v918 = vunpack.c.h.b16 %v846
        %v919 = vunpack.c.l.b16 %v847
        %v920 = vunpack.c.h.b16 %v847
        %v921 = vunpack.c.l.b16 %v848
        %v922 = vunpack.c.h.b16 %v848
        %v923 = vunpack.c.l.b16 %v849
        %v924 = vunpack.c.h.b16 %v849
        %v925 = vunpack.c.l.b16 %v850
        %v926 = vunpack.c.h.b16 %v850
        %v927 = vunpack.c.l.b16 %v851
        %v928 = vunpack.c.h.b16 %v851
        %v929 = vunpack.c.l.b16 %v852
        %v930 = vunpack.c.h.b16 %v852
        %v931 = vunpack.c.l.b16 %v853
        %v932 = vunpack.c.h.b16 %v853
        %v933 = vunpack.c.l.b16 %v854
        %v934 = vunpack.c.h.b16 %v854
        %v935 = vunpack.c.l.b16 %v855
        %v936 = vunpack.c.h.b16 %v855
        %v937 = vunpack.c.l.b16 %v856
        %v938 = vunpack.c.h.b16 %v856
        %v939 = vunpack.c.l.b16 %v857
        %v940 = vunpack.c.h.b16 %v857
        %v941 = vunpack.c.l.b16 %v858
        %v942 = vunpack.c.h.b16 %v858
        %v943 = vunpack.c.l.b16 %v859
        %v944 = vunpack.c.h.b16 %v859
        %v945 = vunpack.c.l.b16 %v860
        %v946 = vunpack.c.h.b16 %v860
        %v947 = vunpack.c.l.b16 %v861
        %v948 = vunpack.c.h.b16 %v861
        %v949 = vunpack.c.l.b16 %v862
        %v950 = vunpack.c.h.b16 %v862
        %v951 = vunpack.c.l.b16 %v863
        %v952 = vunpack.c.h.b16 %v863
        %v953 = vunpack.c.l.b16 %v864
        %v954 = vunpack.c.h.b16 %v864
        %v955 = vunpack.c.l.b16 %v865
        %v956 = vunpack.c.h.b16 %v865
        %v957 = vunpack.c.l.b16 %v866
        %v958 = vunpack.c.h.b16 %v866
        %v959 = vunpack.c.l.b16 %v867
        %v960 = vunpack.c.h.b16 %v867
        %v961 = vunpack.c.l.b16 %v868
        %v962 = vunpack.c.h.b16 %v868
        %v963 = vunpack.c.l.b16 %v869
        %v964 = vunpack.c.h.b16 %v869
        %v965 = vunpack.c.l.b16 %v870
        %v966 = vunpack.c.h.b16 %v870
        %v967 = vpack.c.b16 %v907, %v903
        %v968 = vpack.c.b16 %v908, %v904
        %v969 = vpack.c.b16 %v909, %v905
        %v970 = vpack.c.b16 %v910, %v906
        %v971 = vpack.c.b16 %v915, %v911
        %v972 = vpack.c.b16 %v916, %v912
        %v973 = vpack.c.b16 %v917, %v913
        %v974 = vpack.c.b16 %v918, %v914
        %v975 = vpack.c.b16 %v923, %v919
        %v976 = vpack.c.b16 %v924, %v920
        %v977 = vpack.c.b16 %v925, %v921
        %v978 = vpack.c.b16 %v926, %v922
        %v979 = vpack.c.b16 %v931, %v927
        %v980 = vpack.c.b16 %v932, %v928
        %v981 = vpack.c.b16 %v933, %v929
        %v982 = vpack.c.b16 %v934, %v930
        %v983 = vpack.c.b16 %v939, %v935
        %v984 = vpack.c.b16 %v940, %v936
        %v985 = vpack.c.b16 %v941, %v937
        %v986 = vpack.c.b16 %v942, %v938
        %v987 = vpack.c.b16 %v947, %v943
        %v988 = vpack.c.b16 %v948, %v944
        %v989 = vpack.c.b16 %v949, %v945
        %v990 = vpack.c.b16 %v950, %v946
        %v991 = vpack.c.b16 %v955, %v951
        %v992 = vpack.c.b16 %v956, %v952
        %v993 = vpack.c.b16 %v957, %v953
        %v994 = vpack.c.b16 %v958, %v954
        %v995 = vpack.c.b16 %v963, %v959
        %v996 = vpack.c.b16 %v964, %v960
        %v997 = vpack.c.b16 %v965, %v961
        %v998 = vpack.c.b16 %v966, %v962
        %1031 = vmatprep.subr.bf16.mxu0 %v968
        %1032 = vmatpush1.bf16.msra.mxu0 %v967
        %1033 = vmatprep.subr.bf16.mxu0 %v972
        %1034 = vmatpush1.bf16.msra.mxu0 %v971
        %1035 = vmatprep.subr.bf16.mxu0 %v976
        %1036 = vmatpush1.bf16.msra.mxu0 %v975
        %1037 = vmatprep.subr.bf16.mxu0 %v980
        %1038 = vmatpush1.bf16.msra.mxu0 %v979
        %1039 = vmatprep.subr.bf16.mxu0 %v984
        %1040 = vmatpush1.bf16.msra.mxu0 %v983
        %1041 = vmatprep.subr.bf16.mxu0 %v988
        %1042 = vmatpush1.bf16.msra.mxu0 %v987
        %1043 = vmatprep.subr.bf16.mxu0 %v992
        %1044 = vmatpush1.bf16.msra.mxu0 %v991
        %1045 = vmatprep.subr.bf16.mxu0 %v996
        %1046 = vmatpush1.bf16.msra.mxu0 %v995
        %1047 = vmatprep.subr.bf16.mxu0 0
        %1048 = vmatpush1.bf16.msra.mxu0 0
        %1049 = vmatprep.subr.bf16.mxu0 0
        %1050 = vmatpush1.bf16.msra.mxu0 0
        %1051 = vmatprep.subr.bf16.mxu0 0
        %1052 = vmatpush1.bf16.msra.mxu0 0
        %1053 = vmatprep.subr.bf16.mxu0 0
        %1054 = vmatpush1.bf16.msra.mxu0 0
        %1055 = vmatprep.subr.bf16.mxu0 0
        %1056 = vmatpush1.bf16.msra.mxu0 0
        %1057 = vmatprep.subr.bf16.mxu0 0
        %1058 = vmatpush1.bf16.msra.mxu0 0
        %1059 = vmatprep.subr.bf16.mxu0 0
        %1060 = vmatpush1.bf16.msra.mxu0 0
        %1061 = vmatprep.subr.bf16.mxu0 0
        %1062 = vmatpush1.bf16.msra.mxu0 0
        %1063 = vmatprep.mubr.bf16.mxu0 0
        %1064 = vmatmul.mubr.bf16.gmra.mrb[0].mxu0 %v838
        %v1065 = vpop.f32.mrb[0].mxu0
        %v1066 = vadd.f32 0.0, %v1065
        %v1067 = vpop.f32.mrb[0].mxu0
        %v1068 = vadd.f32 0.0, %v1067
        %v1069 = vpop.f32.mrb[0].mxu0
        %v1070 = vpop.f32.mrb[0].mxu0
        %1071 = vdwg.mxu0
        %1072 = vmatprep.subr.bf16.mxu0 %v970
        %1073 = vmatpush1.bf16.msra.mxu0 %v969
        %1074 = vmatprep.subr.bf16.mxu0 %v974
        %1075 = vmatpush1.bf16.msra.mxu0 %v973
        %1076 = vmatprep.subr.bf16.mxu0 %v978
        %1077 = vmatpush1.bf16.msra.mxu0 %v977
        %1078 = vmatprep.subr.bf16.mxu0 %v982
        %1079 = vmatpush1.bf16.msra.mxu0 %v981
        %1080 = vmatprep.subr.bf16.mxu0 %v986
        %1081 = vmatpush1.bf16.msra.mxu0 %v985
        %1082 = vmatprep.subr.bf16.mxu0 %v990
        %1083 = vmatpush1.bf16.msra.mxu0 %v989
        %1084 = vmatprep.subr.bf16.mxu0 %v994
        %1085 = vmatpush1.bf16.msra.mxu0 %v993
        %1086 = vmatprep.subr.bf16.mxu0 %v998
        %1087 = vmatpush1.bf16.msra.mxu0 %v997
        %1088 = vmatprep.subr.bf16.mxu0 0
        %1089 = vmatpush1.bf16.msra.mxu0 0
        %1090 = vmatprep.subr.bf16.mxu0 0
        %1091 = vmatpush1.bf16.msra.mxu0 0
        %1092 = vmatprep.subr.bf16.mxu0 0
        %1093 = vmatpush1.bf16.msra.mxu0 0
        %1094 = vmatprep.subr.bf16.mxu0 0
        %1095 = vmatpush1.bf16.msra.mxu0 0
        %1096 = vmatprep.subr.bf16.mxu0 0
        %1097 = vmatpush1.bf16.msra.mxu0 0
        %1098 = vmatprep.subr.bf16.mxu0 0
        %1099 = vmatpush1.bf16.msra.mxu0 0
        %1100 = vmatprep.subr.bf16.mxu0 0
        %1101 = vmatpush1.bf16.msra.mxu0 0
        %1102 = vmatprep.subr.bf16.mxu0 0
        %1103 = vmatpush1.bf16.msra.mxu0 0
        %1104 = vmatprep.mubr.bf16.mxu0 0
        %1105 = vmatmul.mubr.bf16.gmra.mrb[0].mxu0 %v838
        %v1106 = vpop.f32.mrb[0].mxu0
        %v1107 = vadd.f32 0.0, %v1106
        %v1108 = vpop.f32.mrb[0].mxu0
        %v1109 = vadd.f32 0.0, %v1108
        %v1110 = vpop.f32.mrb[0].mxu0
        %v1111 = vpop.f32.mrb[0].mxu0
        %1112 = vdwg.mxu0
        %v1113 = vadd.f32 %v834, %v1066
        %v1114 = vadd.f32 %v835, %v1068
        %v1115 = vadd.f32 %v836, %v1107
        %v1116 = vadd.f32 %v837, %v1109
        %v1117 = vxor.u32 %v1113, 2147483648
        %v1118 = vmul.f32 %v1117, 1.442695
        %v1119 = vpow.pop %v1118
        %v1120 = vadd.f32 %v1119, 1.0
        %v1121 = vrcp.pop %v1120
        %v1122 = vmul.f32 1.0, %v1121
        %v1123 = vxor.u32 %v1114, 2147483648
        %v1124 = vmul.f32 %v1123, 1.442695
        %v1125 = vpow.pop %v1124
        %v1126 = vadd.f32 %v1125, 1.0
        %v1127 = vrcp.pop %v1126
        %v1128 = vmul.f32 1.0, %v1127
        %v1129 = vtanh.pop %v1115
        %v1130 = vxor.u32 %v1116, 2147483648
        %v1131 = vmul.f32 %v1130, 1.442695
        %v1132 = vpow.pop %v1131
        %v1133 = vadd.f32 %v1132, 1.0
        %v1134 = vrcp.pop %v1133
        %v1135 = vmul.f32 1.0, %v1134
        %v1136 = vmul.f32 %v1128, %v833
        %v1137 = vmul.f32 %v1122, %v1129
        %v1138 = vadd.f32 %v1136, %v1137
        %v1139 = vtanh.pop %v1138
        %v1140 = vmul.f32 %v1135, %v1139
        %1141 = vst [vmem:[%s290] sm:$0xff] %v1140
        %s1142 = scalar_lea.vmem [#allocation2], 32
        %v1143 = vld [vmem:[%s1142] sm:$0xff]
        %v1144 = vld [vmem:[%s1142 + $0x8] sm:$0xff]
        %v1145 = vld [vmem:[%s1142 + $0x10] sm:$0xff]
        %v1146 = vld [vmem:[%s1142 + $0x18] sm:$0xff]
        %v1147 = vpack.c.bf16 %v1140, %v1140
        %v1148 = vld [vmem:[#allocation8] sm:$0xff]
        %v1149 = vld [vmem:[#allocation8 + $0x8] sm:$0xff]
        %v1150 = vld [vmem:[#allocation8 + $0x10] sm:$0xff]
        %v1151 = vld [vmem:[#allocation8 + $0x18] sm:$0xff]
        %v1152 = vld [vmem:[#allocation8 + $0x20] sm:$0xff]
        %v1153 = vld [vmem:[#allocation8 + $0x28] sm:$0xff]
        %v1154 = vld [vmem:[#allocation8 + $0x30] sm:$0xff]
        %v1155 = vld [vmem:[#allocation8 + $0x38] sm:$0xff]
        %v1156 = vld [vmem:[#allocation8 + $0x40] sm:$0xff]
        %v1157 = vld [vmem:[#allocation8 + $0x48] sm:$0xff]
        %v1158 = vld [vmem:[#allocation8 + $0x50] sm:$0xff]
        %v1159 = vld [vmem:[#allocation8 + $0x58] sm:$0xff]
        %v1160 = vld [vmem:[#allocation8 + $0x60] sm:$0xff]
        %v1161 = vld [vmem:[#allocation8 + $0x68] sm:$0xff]
        %v1162 = vld [vmem:[#allocation8 + $0x70] sm:$0xff]
        %v1163 = vld [vmem:[#allocation8 + $0x78] sm:$0xff]
        %v1164 = vld [vmem:[#allocation8 + $0x80] sm:$0xff]
        %v1165 = vld [vmem:[#allocation8 + $0x88] sm:$0xff]
        %v1166 = vld [vmem:[#allocation8 + $0x90] sm:$0xff]
        %v1167 = vld [vmem:[#allocation8 + $0x98] sm:$0xff]
        %v1168 = vld [vmem:[#allocation8 + $0xa0] sm:$0xff]
        %v1169 = vld [vmem:[#allocation8 + $0xa8] sm:$0xff]
        %v1170 = vld [vmem:[#allocation8 + $0xb0] sm:$0xff]
        %v1171 = vld [vmem:[#allocation8 + $0xb8] sm:$0xff]
        %v1172 = vld [vmem:[#allocation8 + $0xc0] sm:$0xff]
        %v1173 = vld [vmem:[#allocation8 + $0xc8] sm:$0xff]
        %v1174 = vld [vmem:[#allocation8 + $0xd0] sm:$0xff]
        %v1175 = vld [vmem:[#allocation8 + $0xd8] sm:$0xff]
        %v1176 = vld [vmem:[#allocation8 + $0xe0] sm:$0xff]
        %v1177 = vld [vmem:[#allocation8 + $0xe8] sm:$0xff]
        %v1178 = vld [vmem:[#allocation8 + $0xf0] sm:$0xff]
        %v1179 = vld [vmem:[#allocation8 + $0xf8] sm:$0xff]
        %v1212 = vunpack.c.l.b16 %v1148
        %v1213 = vunpack.c.h.b16 %v1148
        %v1214 = vunpack.c.l.b16 %v1149
        %v1215 = vunpack.c.h.b16 %v1149
        %v1216 = vunpack.c.l.b16 %v1150
        %v1217 = vunpack.c.h.b16 %v1150
        %v1218 = vunpack.c.l.b16 %v1151
        %v1219 = vunpack.c.h.b16 %v1151
        %v1220 = vunpack.c.l.b16 %v1152
        %v1221 = vunpack.c.h.b16 %v1152
        %v1222 = vunpack.c.l.b16 %v1153
        %v1223 = vunpack.c.h.b16 %v1153
        %v1224 = vunpack.c.l.b16 %v1154
        %v1225 = vunpack.c.h.b16 %v1154
        %v1226 = vunpack.c.l.b16 %v1155
        %v1227 = vunpack.c.h.b16 %v1155
        %v1228 = vunpack.c.l.b16 %v1156
        %v1229 = vunpack.c.h.b16 %v1156
        %v1230 = vunpack.c.l.b16 %v1157
        %v1231 = vunpack.c.h.b16 %v1157
        %v1232 = vunpack.c.l.b16 %v1158
        %v1233 = vunpack.c.h.b16 %v1158
        %v1234 = vunpack.c.l.b16 %v1159
        %v1235 = vunpack.c.h.b16 %v1159
        %v1236 = vunpack.c.l.b16 %v1160
        %v1237 = vunpack.c.h.b16 %v1160
        %v1238 = vunpack.c.l.b16 %v1161
        %v1239 = vunpack.c.h.b16 %v1161
        %v1240 = vunpack.c.l.b16 %v1162
        %v1241 = vunpack.c.h.b16 %v1162
        %v1242 = vunpack.c.l.b16 %v1163
        %v1243 = vunpack.c.h.b16 %v1163
        %v1244 = vunpack.c.l.b16 %v1164
        %v1245 = vunpack.c.h.b16 %v1164
        %v1246 = vunpack.c.l.b16 %v1165
        %v1247 = vunpack.c.h.b16 %v1165
        %v1248 = vunpack.c.l.b16 %v1166
        %v1249 = vunpack.c.h.b16 %v1166
        %v1250 = vunpack.c.l.b16 %v1167
        %v1251 = vunpack.c.h.b16 %v1167
        %v1252 = vunpack.c.l.b16 %v1168
        %v1253 = vunpack.c.h.b16 %v1168
        %v1254 = vunpack.c.l.b16 %v1169
        %v1255 = vunpack.c.h.b16 %v1169
        %v1256 = vunpack.c.l.b16 %v1170
        %v1257 = vunpack.c.h.b16 %v1170
        %v1258 = vunpack.c.l.b16 %v1171
        %v1259 = vunpack.c.h.b16 %v1171
        %v1260 = vunpack.c.l.b16 %v1172
        %v1261 = vunpack.c.h.b16 %v1172
        %v1262 = vunpack.c.l.b16 %v1173
        %v1263 = vunpack.c.h.b16 %v1173
        %v1264 = vunpack.c.l.b16 %v1174
        %v1265 = vunpack.c.h.b16 %v1174
        %v1266 = vunpack.c.l.b16 %v1175
        %v1267 = vunpack.c.h.b16 %v1175
        %v1268 = vunpack.c.l.b16 %v1176
        %v1269 = vunpack.c.h.b16 %v1176
        %v1270 = vunpack.c.l.b16 %v1177
        %v1271 = vunpack.c.h.b16 %v1177
        %v1272 = vunpack.c.l.b16 %v1178
        %v1273 = vunpack.c.h.b16 %v1178
        %v1274 = vunpack.c.l.b16 %v1179
        %v1275 = vunpack.c.h.b16 %v1179
        %v1276 = vpack.c.b16 %v1216, %v1212
        %v1277 = vpack.c.b16 %v1217, %v1213
        %v1278 = vpack.c.b16 %v1218, %v1214
        %v1279 = vpack.c.b16 %v1219, %v1215
        %v1280 = vpack.c.b16 %v1224, %v1220
        %v1281 = vpack.c.b16 %v1225, %v1221
        %v1282 = vpack.c.b16 %v1226, %v1222
        %v1283 = vpack.c.b16 %v1227, %v1223
        %v1284 = vpack.c.b16 %v1232, %v1228
        %v1285 = vpack.c.b16 %v1233, %v1229
        %v1286 = vpack.c.b16 %v1234, %v1230
        %v1287 = vpack.c.b16 %v1235, %v1231
        %v1288 = vpack.c.b16 %v1240, %v1236
        %v1289 = vpack.c.b16 %v1241, %v1237
        %v1290 = vpack.c.b16 %v1242, %v1238
        %v1291 = vpack.c.b16 %v1243, %v1239
        %v1292 = vpack.c.b16 %v1248, %v1244
        %v1293 = vpack.c.b16 %v1249, %v1245
        %v1294 = vpack.c.b16 %v1250, %v1246
        %v1295 = vpack.c.b16 %v1251, %v1247
        %v1296 = vpack.c.b16 %v1256, %v1252
        %v1297 = vpack.c.b16 %v1257, %v1253
        %v1298 = vpack.c.b16 %v1258, %v1254
        %v1299 = vpack.c.b16 %v1259, %v1255
        %v1300 = vpack.c.b16 %v1264, %v1260
        %v1301 = vpack.c.b16 %v1265, %v1261
        %v1302 = vpack.c.b16 %v1266, %v1262
        %v1303 = vpack.c.b16 %v1267, %v1263
        %v1304 = vpack.c.b16 %v1272, %v1268
        %v1305 = vpack.c.b16 %v1273, %v1269
        %v1306 = vpack.c.b16 %v1274, %v1270
        %v1307 = vpack.c.b16 %v1275, %v1271
        %1340 = vmatprep.subr.bf16.mxu0 %v1277
        %1341 = vmatpush1.bf16.msra.mxu0 %v1276
        %1342 = vmatprep.subr.bf16.mxu0 %v1281
        %1343 = vmatpush1.bf16.msra.mxu0 %v1280
        %1344 = vmatprep.subr.bf16.mxu0 %v1285
        %1345 = vmatpush1.bf16.msra.mxu0 %v1284
        %1346 = vmatprep.subr.bf16.mxu0 %v1289
        %1347 = vmatpush1.bf16.msra.mxu0 %v1288
        %1348 = vmatprep.subr.bf16.mxu0 %v1293
        %1349 = vmatpush1.bf16.msra.mxu0 %v1292
        %1350 = vmatprep.subr.bf16.mxu0 %v1297
        %1351 = vmatpush1.bf16.msra.mxu0 %v1296
        %1352 = vmatprep.subr.bf16.mxu0 %v1301
        %1353 = vmatpush1.bf16.msra.mxu0 %v1300
        %1354 = vmatprep.subr.bf16.mxu0 %v1305
        %1355 = vmatpush1.bf16.msra.mxu0 %v1304
        %1356 = vmatprep.subr.bf16.mxu0 0
        %1357 = vmatpush1.bf16.msra.mxu0 0
        %1358 = vmatprep.subr.bf16.mxu0 0
        %1359 = vmatpush1.bf16.msra.mxu0 0
        %1360 = vmatprep.subr.bf16.mxu0 0
        %1361 = vmatpush1.bf16.msra.mxu0 0
        %1362 = vmatprep.subr.bf16.mxu0 0
        %1363 = vmatpush1.bf16.msra.mxu0 0
        %1364 = vmatprep.subr.bf16.mxu0 0
        %1365 = vmatpush1.bf16.msra.mxu0 0
        %1366 = vmatprep.subr.bf16.mxu0 0
        %1367 = vmatpush1.bf16.msra.mxu0 0
        %1368 = vmatprep.subr.bf16.mxu0 0
        %1369 = vmatpush1.bf16.msra.mxu0 0
        %1370 = vmatprep.subr.bf16.mxu0 0
        %1371 = vmatpush1.bf16.msra.mxu0 0
        %1372 = vmatprep.mubr.bf16.mxu0 0
        %1373 = vmatmul.mubr.bf16.gmra.mrb[0].mxu0 %v1147
        %v1374 = vpop.f32.mrb[0].mxu0
        %v1375 = vadd.f32 0.0, %v1374
        %v1376 = vpop.f32.mrb[0].mxu0
        %v1377 = vadd.f32 0.0, %v1376
        %v1378 = vpop.f32.mrb[0].mxu0
        %v1379 = vpop.f32.mrb[0].mxu0
        %1380 = vdwg.mxu0
        %1381 = vmatprep.subr.bf16.mxu0 %v1279
        %1382 = vmatpush1.bf16.msra.mxu0 %v1278
        %1383 = vmatprep.subr.bf16.mxu0 %v1283
        %1384 = vmatpush1.bf16.msra.mxu0 %v1282
        %1385 = vmatprep.subr.bf16.mxu0 %v1287
        %1386 = vmatpush1.bf16.msra.mxu0 %v1286
        %1387 = vmatprep.subr.bf16.mxu0 %v1291
        %1388 = vmatpush1.bf16.msra.mxu0 %v1290
        %1389 = vmatprep.subr.bf16.mxu0 %v1295
        %1390 = vmatpush1.bf16.msra.mxu0 %v1294
        %1391 = vmatprep.subr.bf16.mxu0 %v1299
        %1392 = vmatpush1.bf16.msra.mxu0 %v1298
        %1393 = vmatprep.subr.bf16.mxu0 %v1303
        %1394 = vmatpush1.bf16.msra.mxu0 %v1302
        %1395 = vmatprep.subr.bf16.mxu0 %v1307
        %1396 = vmatpush1.bf16.msra.mxu0 %v1306
        %1397 = vmatprep.subr.bf16.mxu0 0
        %1398 = vmatpush1.bf16.msra.mxu0 0
        %1399 = vmatprep.subr.bf16.mxu0 0
        %1400 = vmatpush1.bf16.msra.mxu0 0
        %1401 = vmatprep.subr.bf16.mxu0 0
        %1402 = vmatpush1.bf16.msra.mxu0 0
        %1403 = vmatprep.subr.bf16.mxu0 0
        %1404 = vmatpush1.bf16.msra.mxu0 0
        %1405 = vmatprep.subr.bf16.mxu0 0
        %1406 = vmatpush1.bf16.msra.mxu0 0
        %1407 = vmatprep.subr.bf16.mxu0 0
        %1408 = vmatpush1.bf16.msra.mxu0 0
        %1409 = vmatprep.subr.bf16.mxu0 0
        %1410 = vmatpush1.bf16.msra.mxu0 0
        %1411 = vmatprep.subr.bf16.mxu0 0
        %1412 = vmatpush1.bf16.msra.mxu0 0
        %1413 = vmatprep.mubr.bf16.mxu0 0
        %1414 = vmatmul.mubr.bf16.gmra.mrb[0].mxu0 %v1147
        %v1415 = vpop.f32.mrb[0].mxu0
        %v1416 = vadd.f32 0.0, %v1415
        %v1417 = vpop.f32.mrb[0].mxu0
        %v1418 = vadd.f32 0.0, %v1417
        %v1419 = vpop.f32.mrb[0].mxu0
        %v1420 = vpop.f32.mrb[0].mxu0
        %1421 = vdwg.mxu0
        %v1422 = vadd.f32 %v1143, %v1375
        %v1423 = vadd.f32 %v1144, %v1377
        %v1424 = vadd.f32 %v1145, %v1416
        %v1425 = vadd.f32 %v1146, %v1418
        %v1426 = vxor.u32 %v1422, 2147483648
        %v1427 = vmul.f32 %v1426, 1.442695
        %v1428 = vpow.pop %v1427
        %v1429 = vadd.f32 %v1428, 1.0
        %v1430 = vrcp.pop %v1429
        %v1431 = vmul.f32 1.0, %v1430
        %v1432 = vxor.u32 %v1423, 2147483648
        %v1433 = vmul.f32 %v1432, 1.442695
        %v1434 = vpow.pop %v1433
        %v1435 = vadd.f32 %v1434, 1.0
        %v1436 = vrcp.pop %v1435
        %v1437 = vmul.f32 1.0, %v1436
        %v1438 = vtanh.pop %v1424
        %v1439 = vxor.u32 %v1425, 2147483648
        %v1440 = vmul.f32 %v1439, 1.442695
        %v1441 = vpow.pop %v1440
        %v1442 = vadd.f32 %v1441, 1.0
        %v1443 = vrcp.pop %v1442
        %v1444 = vmul.f32 1.0, %v1443
        %v1445 = vmul.f32 %v1437, %v1138
        %v1446 = vmul.f32 %v1431, %v1438
        %v1447 = vadd.f32 %v1445, %v1446
        %v1448 = vtanh.pop %v1447
        %v1449 = vmul.f32 %v1444, %v1448
        %s1450 = scalar_lea.vmem %s290, 8 [#allocation9]
        %1451 = vst [vmem:[%s1450] sm:$0xff] %v1449
        %s1452 = scalar_lea.vmem [#allocation2], 64
        %v1453 = vld [vmem:[%s1452] sm:$0xff]
        %v1454 = vld [vmem:[%s1452 + $0x8] sm:$0xff]
        %v1455 = vld [vmem:[%s1452 + $0x10] sm:$0xff]
        %v1456 = vld [vmem:[%s1452 + $0x18] sm:$0xff]
        %v1457 = vpack.c.bf16 %v1449, %v1449
        %v1458 = vld [vmem:[#allocation8] sm:$0xff]
        %v1459 = vld [vmem:[#allocation8 + $0x8] sm:$0xff]
        %v1460 = vld [vmem:[#allocation8 + $0x10] sm:$0xff]
        %v1461 = vld [vmem:[#allocation8 + $0x18] sm:$0xff]
        %v1462 = vld [vmem:[#allocation8 + $0x20] sm:$0xff]
        %v1463 = vld [vmem:[#allocation8 + $0x28] sm:$0xff]
        %v1464 = vld [vmem:[#allocation8 + $0x30] sm:$0xff]
        %v1465 = vld [vmem:[#allocation8 + $0x38] sm:$0xff]
        %v1466 = vld [vmem:[#allocation8 + $0x40] sm:$0xff]
        %v1467 = vld [vmem:[#allocation8 + $0x48] sm:$0xff]
        %v1468 = vld [vmem:[#allocation8 + $0x50] sm:$0xff]
        %v1469 = vld [vmem:[#allocation8 + $0x58] sm:$0xff]
        %v1470 = vld [vmem:[#allocation8 + $0x60] sm:$0xff]
        %v1471 = vld [vmem:[#allocation8 + $0x68] sm:$0xff]
        %v1472 = vld [vmem:[#allocation8 + $0x70] sm:$0xff]
        %v1473 = vld [vmem:[#allocation8 + $0x78] sm:$0xff]
        %v1474 = vld [vmem:[#allocation8 + $0x80] sm:$0xff]
        %v1475 = vld [vmem:[#allocation8 + $0x88] sm:$0xff]
        %v1476 = vld [vmem:[#allocation8 + $0x90] sm:$0xff]
        %v1477 = vld [vmem:[#allocation8 + $0x98] sm:$0xff]
        %v1478 = vld [vmem:[#allocation8 + $0xa0] sm:$0xff]
        %v1479 = vld [vmem:[#allocation8 + $0xa8] sm:$0xff]
        %v1480 = vld [vmem:[#allocation8 + $0xb0] sm:$0xff]
        %v1481 = vld [vmem:[#allocation8 + $0xb8] sm:$0xff]
        %v1482 = vld [vmem:[#allocation8 + $0xc0] sm:$0xff]
        %v1483 = vld [vmem:[#allocation8 + $0xc8] sm:$0xff]
        %v1484 = vld [vmem:[#allocation8 + $0xd0] sm:$0xff]
        %v1485 = vld [vmem:[#allocation8 + $0xd8] sm:$0xff]
        %v1486 = vld [vmem:[#allocation8 + $0xe0] sm:$0xff]
        %v1487 = vld [vmem:[#allocation8 + $0xe8] sm:$0xff]
        %v1488 = vld [vmem:[#allocation8 + $0xf0] sm:$0xff]
        %v1489 = vld [vmem:[#allocation8 + $0xf8] sm:$0xff]
        %v1522 = vunpack.c.l.b16 %v1458
        %v1523 = vunpack.c.h.b16 %v1458
        %v1524 = vunpack.c.l.b16 %v1459
        %v1525 = vunpack.c.h.b16 %v1459
        %v1526 = vunpack.c.l.b16 %v1460
        %v1527 = vunpack.c.h.b16 %v1460
        %v1528 = vunpack.c.l.b16 %v1461
        %v1529 = vunpack.c.h.b16 %v1461
        %v1530 = vunpack.c.l.b16 %v1462
        %v1531 = vunpack.c.h.b16 %v1462
        %v1532 = vunpack.c.l.b16 %v1463
        %v1533 = vunpack.c.h.b16 %v1463
        %v1534 = vunpack.c.l.b16 %v1464
        %v1535 = vunpack.c.h.b16 %v1464
        %v1536 = vunpack.c.l.b16 %v1465
        %v1537 = vunpack.c.h.b16 %v1465
        %v1538 = vunpack.c.l.b16 %v1466
        %v1539 = vunpack.c.h.b16 %v1466
        %v1540 = vunpack.c.l.b16 %v1467
        %v1541 = vunpack.c.h.b16 %v1467
        %v1542 = vunpack.c.l.b16 %v1468
        %v1543 = vunpack.c.h.b16 %v1468
        %v1544 = vunpack.c.l.b16 %v1469
        %v1545 = vunpack.c.h.b16 %v1469
        %v1546 = vunpack.c.l.b16 %v1470
        %v1547 = vunpack.c.h.b16 %v1470
        %v1548 = vunpack.c.l.b16 %v1471
        %v1549 = vunpack.c.h.b16 %v1471
        %v1550 = vunpack.c.l.b16 %v1472
        %v1551 = vunpack.c.h.b16 %v1472
        %v1552 = vunpack.c.l.b16 %v1473
        %v1553 = vunpack.c.h.b16 %v1473
        %v1554 = vunpack.c.l.b16 %v1474
        %v1555 = vunpack.c.h.b16 %v1474
        %v1556 = vunpack.c.l.b16 %v1475
        %v1557 = vunpack.c.h.b16 %v1475
        %v1558 = vunpack.c.l.b16 %v1476
        %v1559 = vunpack.c.h.b16 %v1476
        %v1560 = vunpack.c.l.b16 %v1477
        %v1561 = vunpack.c.h.b16 %v1477
        %v1562 = vunpack.c.l.b16 %v1478
        %v1563 = vunpack.c.h.b16 %v1478
        %v1564 = vunpack.c.l.b16 %v1479
        %v1565 = vunpack.c.h.b16 %v1479
        %v1566 = vunpack.c.l.b16 %v1480
        %v1567 = vunpack.c.h.b16 %v1480
        %v1568 = vunpack.c.l.b16 %v1481
        %v1569 = vunpack.c.h.b16 %v1481
        %v1570 = vunpack.c.l.b16 %v1482
        %v1571 = vunpack.c.h.b16 %v1482
        %v1572 = vunpack.c.l.b16 %v1483
        %v1573 = vunpack.c.h.b16 %v1483
        %v1574 = vunpack.c.l.b16 %v1484
        %v1575 = vunpack.c.h.b16 %v1484
        %v1576 = vunpack.c.l.b16 %v1485
        %v1577 = vunpack.c.h.b16 %v1485
        %v1578 = vunpack.c.l.b16 %v1486
        %v1579 = vunpack.c.h.b16 %v1486
        %v1580 = vunpack.c.l.b16 %v1487
        %v1581 = vunpack.c.h.b16 %v1487
        %v1582 = vunpack.c.l.b16 %v1488
        %v1583 = vunpack.c.h.b16 %v1488
        %v1584 = vunpack.c.l.b16 %v1489
        %v1585 = vunpack.c.h.b16 %v1489
        %v1586 = vpack.c.b16 %v1526, %v1522
        %v1587 = vpack.c.b16 %v1527, %v1523
        %v1588 = vpack.c.b16 %v1528, %v1524
        %v1589 = vpack.c.b16 %v1529, %v1525
        %v1590 = vpack.c.b16 %v1534, %v1530
        %v1591 = vpack.c.b16 %v1535, %v1531
        %v1592 = vpack.c.b16 %v1536, %v1532
        %v1593 = vpack.c.b16 %v1537, %v1533
        %v1594 = vpack.c.b16 %v1542, %v1538
        %v1595 = vpack.c.b16 %v1543, %v1539
        %v1596 = vpack.c.b16 %v1544, %v1540
        %v1597 = vpack.c.b16 %v1545, %v1541
        %v1598 = vpack.c.b16 %v1550, %v1546
        %v1599 = vpack.c.b16 %v1551, %v1547
        %v1600 = vpack.c.b16 %v1552, %v1548
        %v1601 = vpack.c.b16 %v1553, %v1549
        %v1602 = vpack.c.b16 %v1558, %v1554
        %v1603 = vpack.c.b16 %v1559, %v1555
        %v1604 = vpack.c.b16 %v1560, %v1556
        %v1605 = vpack.c.b16 %v1561, %v1557
        %v1606 = vpack.c.b16 %v1566, %v1562
        %v1607 = vpack.c.b16 %v1567, %v1563
        %v1608 = vpack.c.b16 %v1568, %v1564
        %v1609 = vpack.c.b16 %v1569, %v1565
        %v1610 = vpack.c.b16 %v1574, %v1570
        %v1611 = vpack.c.b16 %v1575, %v1571
        %v1612 = vpack.c.b16 %v1576, %v1572
        %v1613 = vpack.c.b16 %v1577, %v1573
        %v1614 = vpack.c.b16 %v1582, %v1578
        %v1615 = vpack.c.b16 %v1583, %v1579
        %v1616 = vpack.c.b16 %v1584, %v1580
        %v1617 = vpack.c.b16 %v1585, %v1581
        %1650 = vmatprep.subr.bf16.mxu0 %v1587
        %1651 = vmatpush1.bf16.msra.mxu0 %v1586
        %1652 = vmatprep.subr.bf16.mxu0 %v1591
        %1653 = vmatpush1.bf16.msra.mxu0 %v1590
        %1654 = vmatprep.subr.bf16.mxu0 %v1595
        %1655 = vmatpush1.bf16.msra.mxu0 %v1594
        %1656 = vmatprep.subr.bf16.mxu0 %v1599
        %1657 = vmatpush1.bf16.msra.mxu0 %v1598
        %1658 = vmatprep.subr.bf16.mxu0 %v1603
        %1659 = vmatpush1.bf16.msra.mxu0 %v1602
        %1660 = vmatprep.subr.bf16.mxu0 %v1607
        %1661 = vmatpush1.bf16.msra.mxu0 %v1606
        %1662 = vmatprep.subr.bf16.mxu0 %v1611
        %1663 = vmatpush1.bf16.msra.mxu0 %v1610
        %1664 = vmatprep.subr.bf16.mxu0 %v1615
        %1665 = vmatpush1.bf16.msra.mxu0 %v1614
        %1666 = vmatprep.subr.bf16.mxu0 0
        %1667 = vmatpush1.bf16.msra.mxu0 0
        %1668 = vmatprep.subr.bf16.mxu0 0
        %1669 = vmatpush1.bf16.msra.mxu0 0
        %1670 = vmatprep.subr.bf16.mxu0 0
        %1671 = vmatpush1.bf16.msra.mxu0 0
        %1672 = vmatprep.subr.bf16.mxu0 0
        %1673 = vmatpush1.bf16.msra.mxu0 0
        %1674 = vmatprep.subr.bf16.mxu0 0
        %1675 = vmatpush1.bf16.msra.mxu0 0
        %1676 = vmatprep.subr.bf16.mxu0 0
        %1677 = vmatpush1.bf16.msra.mxu0 0
        %1678 = vmatprep.subr.bf16.mxu0 0
        %1679 = vmatpush1.bf16.msra.mxu0 0
        %1680 = vmatprep.subr.bf16.mxu0 0
        %1681 = vmatpush1.bf16.msra.mxu0 0
        %1682 = vmatprep.mubr.bf16.mxu0 0
        %1683 = vmatmul.mubr.bf16.gmra.mrb[0].mxu0 %v1457
        %v1684 = vpop.f32.mrb[0].mxu0
        %v1685 = vadd.f32 0.0, %v1684
        %v1686 = vpop.f32.mrb[0].mxu0
        %v1687 = vadd.f32 0.0, %v1686
        %v1688 = vpop.f32.mrb[0].mxu0
        %v1689 = vpop.f32.mrb[0].mxu0
        %1690 = vdwg.mxu0
        %1691 = vmatprep.subr.bf16.mxu0 %v1589
        %1692 = vmatpush1.bf16.msra.mxu0 %v1588
        %1693 = vmatprep.subr.bf16.mxu0 %v1593
        %1694 = vmatpush1.bf16.msra.mxu0 %v1592
        %1695 = vmatprep.subr.bf16.mxu0 %v1597
        %1696 = vmatpush1.bf16.msra.mxu0 %v1596
        %1697 = vmatprep.subr.bf16.mxu0 %v1601
        %1698 = vmatpush1.bf16.msra.mxu0 %v1600
        %1699 = vmatprep.subr.bf16.mxu0 %v1605
        %1700 = vmatpush1.bf16.msra.mxu0 %v1604
        %1701 = vmatprep.subr.bf16.mxu0 %v1609
        %1702 = vmatpush1.bf16.msra.mxu0 %v1608
        %1703 = vmatprep.subr.bf16.mxu0 %v1613
        %1704 = vmatpush1.bf16.msra.mxu0 %v1612
        %1705 = vmatprep.subr.bf16.mxu0 %v1617
        %1706 = vmatpush1.bf16.msra.mxu0 %v1616
        %1707 = vmatprep.subr.bf16.mxu0 0
        %1708 = vmatpush1.bf16.msra.mxu0 0
        %1709 = vmatprep.subr.bf16.mxu0 0
        %1710 = vmatpush1.bf16.msra.mxu0 0
        %1711 = vmatprep.subr.bf16.mxu0 0
        %1712 = vmatpush1.bf16.msra.mxu0 0
        %1713 = vmatprep.subr.bf16.mxu0 0
        %1714 = vmatpush1.bf16.msra.mxu0 0
        %1715 = vmatprep.subr.bf16.mxu0 0
        %1716 = vmatpush1.bf16.msra.mxu0 0
        %1717 = vmatprep.subr.bf16.mxu0 0
        %1718 = vmatpush1.bf16.msra.mxu0 0
        %1719 = vmatprep.subr.bf16.mxu0 0
        %1720 = vmatpush1.bf16.msra.mxu0 0
        %1721 = vmatprep.subr.bf16.mxu0 0
        %1722 = vmatpush1.bf16.msra.mxu0 0
        %1723 = vmatprep.mubr.bf16.mxu0 0
        %1724 = vmatmul.mubr.bf16.gmra.mrb[0].mxu0 %v1457
        %v1725 = vpop.f32.mrb[0].mxu0
        %v1726 = vadd.f32 0.0, %v1725
        %v1727 = vpop.f32.mrb[0].mxu0
        %v1728 = vadd.f32 0.0, %v1727
        %v1729 = vpop.f32.mrb[0].mxu0
        %v1730 = vpop.f32.mrb[0].mxu0
        %1731 = vdwg.mxu0
        %v1732 = vadd.f32 %v1453, %v1685
        %v1733 = vadd.f32 %v1454, %v1687
        %v1734 = vadd.f32 %v1455, %v1726
        %v1735 = vadd.f32 %v1456, %v1728
        %v1736 = vxor.u32 %v1732, 2147483648
        %v1737 = vmul.f32 %v1736, 1.442695
        %v1738 = vpow.pop %v1737
        %v1739 = vadd.f32 %v1738, 1.0
        %v1740 = vrcp.pop %v1739
        %v1741 = vmul.f32 1.0, %v1740
        %v1742 = vxor.u32 %v1733, 2147483648
        %v1743 = vmul.f32 %v1742, 1.442695
        %v1744 = vpow.pop %v1743
        %v1745 = vadd.f32 %v1744, 1.0
        %v1746 = vrcp.pop %v1745
        %v1747 = vmul.f32 1.0, %v1746
        %v1748 = vtanh.pop %v1734
        %v1749 = vxor.u32 %v1735, 2147483648
        %v1750 = vmul.f32 %v1749, 1.442695
        %v1751 = vpow.pop %v1750
        %v1752 = vadd.f32 %v1751, 1.0
        %v1753 = vrcp.pop %v1752
        %v1754 = vmul.f32 1.0, %v1753
        %v1755 = vmul.f32 %v1747, %v1447
        %v1756 = vmul.f32 %v1741, %v1748
        %v1757 = vadd.f32 %v1755, %v1756
        %v1758 = vtanh.pop %v1757
        %v1759 = vmul.f32 %v1754, %v1758
        %s1760 = scalar_lea.vmem %s290, 16 [#allocation9]
        %1761 = vst [vmem:[%s1760] sm:$0xff] %v1759
        %s1762 = scalar_lea.vmem [#allocation2], 96
        %v1763 = vld [vmem:[%s1762] sm:$0xff]
        %v1764 = vld [vmem:[%s1762 + $0x8] sm:$0xff]
        %v1765 = vld [vmem:[%s1762 + $0x10] sm:$0xff]
        %v1766 = vld [vmem:[%s1762 + $0x18] sm:$0xff]
        %v1767 = vpack.c.bf16 %v1759, %v1759
        %v1768 = vld [vmem:[#allocation8] sm:$0xff]
        %v1769 = vld [vmem:[#allocation8 + $0x8] sm:$0xff]
        %v1770 = vld [vmem:[#allocation8 + $0x10] sm:$0xff]
        %v1771 = vld [vmem:[#allocation8 + $0x18] sm:$0xff]
        %v1772 = vld [vmem:[#allocation8 + $0x20] sm:$0xff]
        %v1773 = vld [vmem:[#allocation8 + $0x28] sm:$0xff]
        %v1774 = vld [vmem:[#allocation8 + $0x30] sm:$0xff]
        %v1775 = vld [vmem:[#allocation8 + $0x38] sm:$0xff]
        %v1776 = vld [vmem:[#allocation8 + $0x40] sm:$0xff]
        %v1777 = vld [vmem:[#allocation8 + $0x48] sm:$0xff]
        %v1778 = vld [vmem:[#allocation8 + $0x50] sm:$0xff]
        %v1779 = vld [vmem:[#allocation8 + $0x58] sm:$0xff]
        %v1780 = vld [vmem:[#allocation8 + $0x60] sm:$0xff]
        %v1781 = vld [vmem:[#allocation8 + $0x68] sm:$0xff]
        %v1782 = vld [vmem:[#allocation8 + $0x70] sm:$0xff]
        %v1783 = vld [vmem:[#allocation8 + $0x78] sm:$0xff]
        %v1784 = vld [vmem:[#allocation8 + $0x80] sm:$0xff]
        %v1785 = vld [vmem:[#allocation8 + $0x88] sm:$0xff]
        %v1786 = vld [vmem:[#allocation8 + $0x90] sm:$0xff]
        %v1787 = vld [vmem:[#allocation8 + $0x98] sm:$0xff]
        %v1788 = vld [vmem:[#allocation8 + $0xa0] sm:$0xff]
        %v1789 = vld [vmem:[#allocation8 + $0xa8] sm:$0xff]
        %v1790 = vld [vmem:[#allocation8 + $0xb0] sm:$0xff]
        %v1791 = vld [vmem:[#allocation8 + $0xb8] sm:$0xff]
        %v1792 = vld [vmem:[#allocation8 + $0xc0] sm:$0xff]
        %v1793 = vld [vmem:[#allocation8 + $0xc8] sm:$0xff]
        %v1794 = vld [vmem:[#allocation8 + $0xd0] sm:$0xff]
        %v1795 = vld [vmem:[#allocation8 + $0xd8] sm:$0xff]
        %v1796 = vld [vmem:[#allocation8 + $0xe0] sm:$0xff]
        %v1797 = vld [vmem:[#allocation8 + $0xe8] sm:$0xff]
        %v1798 = vld [vmem:[#allocation8 + $0xf0] sm:$0xff]
        %v1799 = vld [vmem:[#allocation8 + $0xf8] sm:$0xff]
        %v1832 = vunpack.c.l.b16 %v1768
        %v1833 = vunpack.c.h.b16 %v1768
        %v1834 = vunpack.c.l.b16 %v1769
        %v1835 = vunpack.c.h.b16 %v1769
        %v1836 = vunpack.c.l.b16 %v1770
        %v1837 = vunpack.c.h.b16 %v1770
        %v1838 = vunpack.c.l.b16 %v1771
        %v1839 = vunpack.c.h.b16 %v1771
        %v1840 = vunpack.c.l.b16 %v1772
        %v1841 = vunpack.c.h.b16 %v1772
        %v1842 = vunpack.c.l.b16 %v1773
        %v1843 = vunpack.c.h.b16 %v1773
        %v1844 = vunpack.c.l.b16 %v1774
        %v1845 = vunpack.c.h.b16 %v1774
        %v1846 = vunpack.c.l.b16 %v1775
        %v1847 = vunpack.c.h.b16 %v1775
        %v1848 = vunpack.c.l.b16 %v1776
        %v1849 = vunpack.c.h.b16 %v1776
        %v1850 = vunpack.c.l.b16 %v1777
        %v1851 = vunpack.c.h.b16 %v1777
        %v1852 = vunpack.c.l.b16 %v1778
        %v1853 = vunpack.c.h.b16 %v1778
        %v1854 = vunpack.c.l.b16 %v1779
        %v1855 = vunpack.c.h.b16 %v1779
        %v1856 = vunpack.c.l.b16 %v1780
        %v1857 = vunpack.c.h.b16 %v1780
        %v1858 = vunpack.c.l.b16 %v1781
        %v1859 = vunpack.c.h.b16 %v1781
        %v1860 = vunpack.c.l.b16 %v1782
        %v1861 = vunpack.c.h.b16 %v1782
        %v1862 = vunpack.c.l.b16 %v1783
        %v1863 = vunpack.c.h.b16 %v1783
        %v1864 = vunpack.c.l.b16 %v1784
        %v1865 = vunpack.c.h.b16 %v1784
        %v1866 = vunpack.c.l.b16 %v1785
        %v1867 = vunpack.c.h.b16 %v1785
        %v1868 = vunpack.c.l.b16 %v1786
        %v1869 = vunpack.c.h.b16 %v1786
        %v1870 = vunpack.c.l.b16 %v1787
        %v1871 = vunpack.c.h.b16 %v1787
        %v1872 = vunpack.c.l.b16 %v1788
        %v1873 = vunpack.c.h.b16 %v1788
        %v1874 = vunpack.c.l.b16 %v1789
        %v1875 = vunpack.c.h.b16 %v1789
        %v1876 = vunpack.c.l.b16 %v1790
        %v1877 = vunpack.c.h.b16 %v1790
        %v1878 = vunpack.c.l.b16 %v1791
        %v1879 = vunpack.c.h.b16 %v1791
        %v1880 = vunpack.c.l.b16 %v1792
        %v1881 = vunpack.c.h.b16 %v1792
        %v1882 = vunpack.c.l.b16 %v1793
        %v1883 = vunpack.c.h.b16 %v1793
        %v1884 = vunpack.c.l.b16 %v1794
        %v1885 = vunpack.c.h.b16 %v1794
        %v1886 = vunpack.c.l.b16 %v1795
        %v1887 = vunpack.c.h.b16 %v1795
        %v1888 = vunpack.c.l.b16 %v1796
        %v1889 = vunpack.c.h.b16 %v1796
        %v1890 = vunpack.c.l.b16 %v1797
        %v1891 = vunpack.c.h.b16 %v1797
        %v1892 = vunpack.c.l.b16 %v1798
        %v1893 = vunpack.c.h.b16 %v1798
        %v1894 = vunpack.c.l.b16 %v1799
        %v1895 = vunpack.c.h.b16 %v1799
        %v1896 = vpack.c.b16 %v1836, %v1832
        %v1897 = vpack.c.b16 %v1837, %v1833
        %v1898 = vpack.c.b16 %v1838, %v1834
        %v1899 = vpack.c.b16 %v1839, %v1835
        %v1900 = vpack.c.b16 %v1844, %v1840
        %v1901 = vpack.c.b16 %v1845, %v1841
        %v1902 = vpack.c.b16 %v1846, %v1842
        %v1903 = vpack.c.b16 %v1847, %v1843
        %v1904 = vpack.c.b16 %v1852, %v1848
        %v1905 = vpack.c.b16 %v1853, %v1849
        %v1906 = vpack.c.b16 %v1854, %v1850
        %v1907 = vpack.c.b16 %v1855, %v1851
        %v1908 = vpack.c.b16 %v1860, %v1856
        %v1909 = vpack.c.b16 %v1861, %v1857
        %v1910 = vpack.c.b16 %v1862, %v1858
        %v1911 = vpack.c.b16 %v1863, %v1859
        %v1912 = vpack.c.b16 %v1868, %v1864
        %v1913 = vpack.c.b16 %v1869, %v1865
        %v1914 = vpack.c.b16 %v1870, %v1866
        %v1915 = vpack.c.b16 %v1871, %v1867
        %v1916 = vpack.c.b16 %v1876, %v1872
        %v1917 = vpack.c.b16 %v1877, %v1873
        %v1918 = vpack.c.b16 %v1878, %v1874
        %v1919 = vpack.c.b16 %v1879, %v1875
        %v1920 = vpack.c.b16 %v1884, %v1880
        %v1921 = vpack.c.b16 %v1885, %v1881
        %v1922 = vpack.c.b16 %v1886, %v1882
        %v1923 = vpack.c.b16 %v1887, %v1883
        %v1924 = vpack.c.b16 %v1892, %v1888
        %v1925 = vpack.c.b16 %v1893, %v1889
        %v1926 = vpack.c.b16 %v1894, %v1890
        %v1927 = vpack.c.b16 %v1895, %v1891
        %1960 = vmatprep.subr.bf16.mxu0 %v1897
        %1961 = vmatpush1.bf16.msra.mxu0 %v1896
        %1962 = vmatprep.subr.bf16.mxu0 %v1901
        %1963 = vmatpush1.bf16.msra.mxu0 %v1900
        %1964 = vmatprep.subr.bf16.mxu0 %v1905
        %1965 = vmatpush1.bf16.msra.mxu0 %v1904
        %1966 = vmatprep.subr.bf16.mxu0 %v1909
        %1967 = vmatpush1.bf16.msra.mxu0 %v1908
        %1968 = vmatprep.subr.bf16.mxu0 %v1913
        %1969 = vmatpush1.bf16.msra.mxu0 %v1912
        %1970 = vmatprep.subr.bf16.mxu0 %v1917
        %1971 = vmatpush1.bf16.msra.mxu0 %v1916
        %1972 = vmatprep.subr.bf16.mxu0 %v1921
        %1973 = vmatpush1.bf16.msra.mxu0 %v1920
        %1974 = vmatprep.subr.bf16.mxu0 %v1925
        %1975 = vmatpush1.bf16.msra.mxu0 %v1924
        %1976 = vmatprep.subr.bf16.mxu0 0
        %1977 = vmatpush1.bf16.msra.mxu0 0
        %1978 = vmatprep.subr.bf16.mxu0 0
        %1979 = vmatpush1.bf16.msra.mxu0 0
        %1980 = vmatprep.subr.bf16.mxu0 0
        %1981 = vmatpush1.bf16.msra.mxu0 0
        %1982 = vmatprep.subr.bf16.mxu0 0
        %1983 = vmatpush1.bf16.msra.mxu0 0
        %1984 = vmatprep.subr.bf16.mxu0 0
        %1985 = vmatpush1.bf16.msra.mxu0 0
        %1986 = vmatprep.subr.bf16.mxu0 0
        %1987 = vmatpush1.bf16.msra.mxu0 0
        %1988 = vmatprep.subr.bf16.mxu0 0
        %1989 = vmatpush1.bf16.msra.mxu0 0
        %1990 = vmatprep.subr.bf16.mxu0 0
        %1991 = vmatpush1.bf16.msra.mxu0 0
        %1992 = vmatprep.mubr.bf16.mxu0 0
        %1993 = vmatmul.mubr.bf16.gmra.mrb[0].mxu0 %v1767
        %v1994 = vpop.f32.mrb[0].mxu0
        %v1995 = vadd.f32 0.0, %v1994
        %v1996 = vpop.f32.mrb[0].mxu0
        %v1997 = vadd.f32 0.0, %v1996
        %v1998 = vpop.f32.mrb[0].mxu0
        %v1999 = vpop.f32.mrb[0].mxu0
        %2000 = vdwg.mxu0
        %2001 = vmatprep.subr.bf16.mxu0 %v1899
        %2002 = vmatpush1.bf16.msra.mxu0 %v1898
        %2003 = vmatprep.subr.bf16.mxu0 %v1903
        %2004 = vmatpush1.bf16.msra.mxu0 %v1902
        %2005 = vmatprep.subr.bf16.mxu0 %v1907
        %2006 = vmatpush1.bf16.msra.mxu0 %v1906
        %2007 = vmatprep.subr.bf16.mxu0 %v1911
        %2008 = vmatpush1.bf16.msra.mxu0 %v1910
        %2009 = vmatprep.subr.bf16.mxu0 %v1915
        %2010 = vmatpush1.bf16.msra.mxu0 %v1914
        %2011 = vmatprep.subr.bf16.mxu0 %v1919
        %2012 = vmatpush1.bf16.msra.mxu0 %v1918
        %2013 = vmatprep.subr.bf16.mxu0 %v1923
        %2014 = vmatpush1.bf16.msra.mxu0 %v1922
        %2015 = vmatprep.subr.bf16.mxu0 %v1927
        %2016 = vmatpush1.bf16.msra.mxu0 %v1926
        %2017 = vmatprep.subr.bf16.mxu0 0
        %2018 = vmatpush1.bf16.msra.mxu0 0
        %2019 = vmatprep.subr.bf16.mxu0 0
        %2020 = vmatpush1.bf16.msra.mxu0 0
        %2021 = vmatprep.subr.bf16.mxu0 0
        %2022 = vmatpush1.bf16.msra.mxu0 0
        %2023 = vmatprep.subr.bf16.mxu0 0
        %2024 = vmatpush1.bf16.msra.mxu0 0
        %2025 = vmatprep.subr.bf16.mxu0 0
        %2026 = vmatpush1.bf16.msra.mxu0 0
        %2027 = vmatprep.subr.bf16.mxu0 0
        %2028 = vmatpush1.bf16.msra.mxu0 0
        %2029 = vmatprep.subr.bf16.mxu0 0
        %2030 = vmatpush1.bf16.msra.mxu0 0
        %2031 = vmatprep.subr.bf16.mxu0 0
        %2032 = vmatpush1.bf16.msra.mxu0 0
        %2033 = vmatprep.mubr.bf16.mxu0 0
        %2034 = vmatmul.mubr.bf16.gmra.mrb[0].mxu0 %v1767
        %v2035 = vpop.f32.mrb[0].mxu0
        %v2036 = vadd.f32 0.0, %v2035
        %v2037 = vpop.f32.mrb[0].mxu0
        %v2038 = vadd.f32 0.0, %v2037
        %v2039 = vpop.f32.mrb[0].mxu0
        %v2040 = vpop.f32.mrb[0].mxu0
        %2041 = vdwg.mxu0
        %v2042 = vadd.f32 %v1763, %v1995
        %v2043 = vadd.f32 %v1764, %v1997
        %v2044 = vadd.f32 %v1765, %v2036
        %v2045 = vadd.f32 %v1766, %v2038
        %v2046 = vxor.u32 %v2042, 2147483648
        %v2047 = vmul.f32 %v2046, 1.442695
        %v2048 = vpow.pop %v2047
        %v2049 = vadd.f32 %v2048, 1.0
        %v2050 = vrcp.pop %v2049
        %v2051 = vmul.f32 1.0, %v2050
        %v2052 = vxor.u32 %v2043, 2147483648
        %v2053 = vmul.f32 %v2052, 1.442695
        %v2054 = vpow.pop %v2053
        %v2055 = vadd.f32 %v2054, 1.0
        %v2056 = vrcp.pop %v2055
        %v2057 = vmul.f32 1.0, %v2056
        %v2058 = vtanh.pop %v2044
        %v2059 = vxor.u32 %v2045, 2147483648
        %v2060 = vmul.f32 %v2059, 1.442695
        %v2061 = vpow.pop %v2060
        %v2062 = vadd.f32 %v2061, 1.0
        %v2063 = vrcp.pop %v2062
        %v2064 = vmul.f32 1.0, %v2063
        %v2065 = vmul.f32 %v2057, %v1757
        %v2066 = vmul.f32 %v2051, %v2058
        %v2067 = vadd.f32 %v2065, %v2066
        %v2068 = vtanh.pop %v2067
        %v2069 = vmul.f32 %v2064, %v2068
        %s2070 = scalar_lea.vmem %s290, 24 [#allocation9]
        %2071 = vst [vmem:[%s2070] sm:$0xff] %v2069
        %s2072 = scalar_lea.vmem [#allocation2], 128
        %v2073 = vld [vmem:[%s2072] sm:$0xff]
        %v2074 = vld [vmem:[%s2072 + $0x8] sm:$0xff]
        %v2075 = vld [vmem:[%s2072 + $0x10] sm:$0xff]
        %v2076 = vld [vmem:[%s2072 + $0x18] sm:$0xff]
        %v2077 = vpack.c.bf16 %v2069, %v2069
        %v2078 = vld [vmem:[#allocation8] sm:$0xff]
        %v2079 = vld [vmem:[#allocation8 + $0x8] sm:$0xff]
        %v2080 = vld [vmem:[#allocation8 + $0x10] sm:$0xff]
        %v2081 = vld [vmem:[#allocation8 + $0x18] sm:$0xff]
        %v2082 = vld [vmem:[#allocation8 + $0x20] sm:$0xff]
        %v2083 = vld [vmem:[#allocation8 + $0x28] sm:$0xff]
        %v2084 = vld [vmem:[#allocation8 + $0x30] sm:$0xff]
        %v2085 = vld [vmem:[#allocation8 + $0x38] sm:$0xff]
        %v2086 = vld [vmem:[#allocation8 + $0x40] sm:$0xff]
        %v2087 = vld [vmem:[#allocation8 + $0x48] sm:$0xff]
        %v2088 = vld [vmem:[#allocation8 + $0x50] sm:$0xff]
        %v2089 = vld [vmem:[#allocation8 + $0x58] sm:$0xff]
        %v2090 = vld [vmem:[#allocation8 + $0x60] sm:$0xff]
        %v2091 = vld [vmem:[#allocation8 + $0x68] sm:$0xff]
        %v2092 = vld [vmem:[#allocation8 + $0x70] sm:$0xff]
        %v2093 = vld [vmem:[#allocation8 + $0x78] sm:$0xff]
        %v2094 = vld [vmem:[#allocation8 + $0x80] sm:$0xff]
        %v2095 = vld [vmem:[#allocation8 + $0x88] sm:$0xff]
        %v2096 = vld [vmem:[#allocation8 + $0x90] sm:$0xff]
        %v2097 = vld [vmem:[#allocation8 + $0x98] sm:$0xff]
        %v2098 = vld [vmem:[#allocation8 + $0xa0] sm:$0xff]
        %v2099 = vld [vmem:[#allocation8 + $0xa8] sm:$0xff]
        %v2100 = vld [vmem:[#allocation8 + $0xb0] sm:$0xff]
        %v2101 = vld [vmem:[#allocation8 + $0xb8] sm:$0xff]
        %v2102 = vld [vmem:[#allocation8 + $0xc0] sm:$0xff]
        %v2103 = vld [vmem:[#allocation8 + $0xc8] sm:$0xff]
        %v2104 = vld [vmem:[#allocation8 + $0xd0] sm:$0xff]
        %v2105 = vld [vmem:[#allocation8 + $0xd8] sm:$0xff]
        %v2106 = vld [vmem:[#allocation8 + $0xe0] sm:$0xff]
        %v2107 = vld [vmem:[#allocation8 + $0xe8] sm:$0xff]
        %v2108 = vld [vmem:[#allocation8 + $0xf0] sm:$0xff]
        %v2109 = vld [vmem:[#allocation8 + $0xf8] sm:$0xff]
        %v2142 = vunpack.c.l.b16 %v2078
        %v2143 = vunpack.c.h.b16 %v2078
        %v2144 = vunpack.c.l.b16 %v2079
        %v2145 = vunpack.c.h.b16 %v2079
        %v2146 = vunpack.c.l.b16 %v2080
        %v2147 = vunpack.c.h.b16 %v2080
        %v2148 = vunpack.c.l.b16 %v2081
        %v2149 = vunpack.c.h.b16 %v2081
        %v2150 = vunpack.c.l.b16 %v2082
        %v2151 = vunpack.c.h.b16 %v2082
        %v2152 = vunpack.c.l.b16 %v2083
        %v2153 = vunpack.c.h.b16 %v2083
        %v2154 = vunpack.c.l.b16 %v2084
        %v2155 = vunpack.c.h.b16 %v2084
        %v2156 = vunpack.c.l.b16 %v2085
        %v2157 = vunpack.c.h.b16 %v2085
        %v2158 = vunpack.c.l.b16 %v2086
        %v2159 = vunpack.c.h.b16 %v2086
        %v2160 = vunpack.c.l.b16 %v2087
        %v2161 = vunpack.c.h.b16 %v2087
        %v2162 = vunpack.c.l.b16 %v2088
        %v2163 = vunpack.c.h.b16 %v2088
        %v2164 = vunpack.c.l.b16 %v2089
        %v2165 = vunpack.c.h.b16 %v2089
        %v2166 = vunpack.c.l.b16 %v2090
        %v2167 = vunpack.c.h.b16 %v2090
        %v2168 = vunpack.c.l.b16 %v2091
        %v2169 = vunpack.c.h.b16 %v2091
        %v2170 = vunpack.c.l.b16 %v2092
        %v2171 = vunpack.c.h.b16 %v2092
        %v2172 = vunpack.c.l.b16 %v2093
        %v2173 = vunpack.c.h.b16 %v2093
        %v2174 = vunpack.c.l.b16 %v2094
        %v2175 = vunpack.c.h.b16 %v2094
        %v2176 = vunpack.c.l.b16 %v2095
        %v2177 = vunpack.c.h.b16 %v2095
        %v2178 = vunpack.c.l.b16 %v2096
        %v2179 = vunpack.c.h.b16 %v2096
        %v2180 = vunpack.c.l.b16 %v2097
        %v2181 = vunpack.c.h.b16 %v2097
        %v2182 = vunpack.c.l.b16 %v2098
        %v2183 = vunpack.c.h.b16 %v2098
        %v2184 = vunpack.c.l.b16 %v2099
        %v2185 = vunpack.c.h.b16 %v2099
        %v2186 = vunpack.c.l.b16 %v2100
        %v2187 = vunpack.c.h.b16 %v2100
        %v2188 = vunpack.c.l.b16 %v2101
        %v2189 = vunpack.c.h.b16 %v2101
        %v2190 = vunpack.c.l.b16 %v2102
        %v2191 = vunpack.c.h.b16 %v2102
        %v2192 = vunpack.c.l.b16 %v2103
        %v2193 = vunpack.c.h.b16 %v2103
        %v2194 = vunpack.c.l.b16 %v2104
        %v2195 = vunpack.c.h.b16 %v2104
        %v2196 = vunpack.c.l.b16 %v2105
        %v2197 = vunpack.c.h.b16 %v2105
        %v2198 = vunpack.c.l.b16 %v2106
        %v2199 = vunpack.c.h.b16 %v2106
        %v2200 = vunpack.c.l.b16 %v2107
        %v2201 = vunpack.c.h.b16 %v2107
        %v2202 = vunpack.c.l.b16 %v2108
        %v2203 = vunpack.c.h.b16 %v2108
        %v2204 = vunpack.c.l.b16 %v2109
        %v2205 = vunpack.c.h.b16 %v2109
        %v2206 = vpack.c.b16 %v2146, %v2142
        %v2207 = vpack.c.b16 %v2147, %v2143
        %v2208 = vpack.c.b16 %v2148, %v2144
        %v2209 = vpack.c.b16 %v2149, %v2145
        %v2210 = vpack.c.b16 %v2154, %v2150
        %v2211 = vpack.c.b16 %v2155, %v2151
        %v2212 = vpack.c.b16 %v2156, %v2152
        %v2213 = vpack.c.b16 %v2157, %v2153
        %v2214 = vpack.c.b16 %v2162, %v2158
        %v2215 = vpack.c.b16 %v2163, %v2159
        %v2216 = vpack.c.b16 %v2164, %v2160
        %v2217 = vpack.c.b16 %v2165, %v2161
        %v2218 = vpack.c.b16 %v2170, %v2166
        %v2219 = vpack.c.b16 %v2171, %v2167
        %v2220 = vpack.c.b16 %v2172, %v2168
        %v2221 = vpack.c.b16 %v2173, %v2169
        %v2222 = vpack.c.b16 %v2178, %v2174
        %v2223 = vpack.c.b16 %v2179, %v2175
        %v2224 = vpack.c.b16 %v2180, %v2176
        %v2225 = vpack.c.b16 %v2181, %v2177
        %v2226 = vpack.c.b16 %v2186, %v2182
        %v2227 = vpack.c.b16 %v2187, %v2183
        %v2228 = vpack.c.b16 %v2188, %v2184
        %v2229 = vpack.c.b16 %v2189, %v2185
        %v2230 = vpack.c.b16 %v2194, %v2190
        %v2231 = vpack.c.b16 %v2195, %v2191
        %v2232 = vpack.c.b16 %v2196, %v2192
        %v2233 = vpack.c.b16 %v2197, %v2193
        %v2234 = vpack.c.b16 %v2202, %v2198
        %v2235 = vpack.c.b16 %v2203, %v2199
        %v2236 = vpack.c.b16 %v2204, %v2200
        %v2237 = vpack.c.b16 %v2205, %v2201
        %2270 = vmatprep.subr.bf16.mxu0 %v2207
        %2271 = vmatpush1.bf16.msra.mxu0 %v2206
        %2272 = vmatprep.subr.bf16.mxu0 %v2211
        %2273 = vmatpush1.bf16.msra.mxu0 %v2210
        %2274 = vmatprep.subr.bf16.mxu0 %v2215
        %2275 = vmatpush1.bf16.msra.mxu0 %v2214
        %2276 = vmatprep.subr.bf16.mxu0 %v2219
        %2277 = vmatpush1.bf16.msra.mxu0 %v2218
        %2278 = vmatprep.subr.bf16.mxu0 %v2223
        %2279 = vmatpush1.bf16.msra.mxu0 %v2222
        %2280 = vmatprep.subr.bf16.mxu0 %v2227
        %2281 = vmatpush1.bf16.msra.mxu0 %v2226
        %2282 = vmatprep.subr.bf16.mxu0 %v2231
        %2283 = vmatpush1.bf16.msra.mxu0 %v2230
        %2284 = vmatprep.subr.bf16.mxu0 %v2235
        %2285 = vmatpush1.bf16.msra.mxu0 %v2234
        %2286 = vmatprep.subr.bf16.mxu0 0
        %2287 = vmatpush1.bf16.msra.mxu0 0
        %2288 = vmatprep.subr.bf16.mxu0 0
        %2289 = vmatpush1.bf16.msra.mxu0 0
        %2290 = vmatprep.subr.bf16.mxu0 0
        %2291 = vmatpush1.bf16.msra.mxu0 0
        %2292 = vmatprep.subr.bf16.mxu0 0
        %2293 = vmatpush1.bf16.msra.mxu0 0
        %2294 = vmatprep.subr.bf16.mxu0 0
        %2295 = vmatpush1.bf16.msra.mxu0 0
        %2296 = vmatprep.subr.bf16.mxu0 0
        %2297 = vmatpush1.bf16.msra.mxu0 0
        %2298 = vmatprep.subr.bf16.mxu0 0
        %2299 = vmatpush1.bf16.msra.mxu0 0
        %2300 = vmatprep.subr.bf16.mxu0 0
        %2301 = vmatpush1.bf16.msra.mxu0 0
        %2302 = vmatprep.mubr.bf16.mxu0 0
        %2303 = vmatmul.mubr.bf16.gmra.mrb[0].mxu0 %v2077
        %v2304 = vpop.f32.mrb[0].mxu0
        %v2305 = vadd.f32 0.0, %v2304
        %v2306 = vpop.f32.mrb[0].mxu0
        %v2307 = vadd.f32 0.0, %v2306
        %v2308 = vpop.f32.mrb[0].mxu0
        %v2309 = vpop.f32.mrb[0].mxu0
        %2310 = vdwg.mxu0
        %2311 = vmatprep.subr.bf16.mxu0 %v2209
        %2312 = vmatpush1.bf16.msra.mxu0 %v2208
        %2313 = vmatprep.subr.bf16.mxu0 %v2213
        %2314 = vmatpush1.bf16.msra.mxu0 %v2212
        %2315 = vmatprep.subr.bf16.mxu0 %v2217
        %2316 = vmatpush1.bf16.msra.mxu0 %v2216
        %2317 = vmatprep.subr.bf16.mxu0 %v2221
        %2318 = vmatpush1.bf16.msra.mxu0 %v2220
        %2319 = vmatprep.subr.bf16.mxu0 %v2225
        %2320 = vmatpush1.bf16.msra.mxu0 %v2224
        %2321 = vmatprep.subr.bf16.mxu0 %v2229
        %2322 = vmatpush1.bf16.msra.mxu0 %v2228
        %2323 = vmatprep.subr.bf16.mxu0 %v2233
        %2324 = vmatpush1.bf16.msra.mxu0 %v2232
        %2325 = vmatprep.subr.bf16.mxu0 %v2237
        %2326 = vmatpush1.bf16.msra.mxu0 %v2236
        %2327 = vmatprep.subr.bf16.mxu0 0
        %2328 = vmatpush1.bf16.msra.mxu0 0
        %2329 = vmatprep.subr.bf16.mxu0 0
        %2330 = vmatpush1.bf16.msra.mxu0 0
        %2331 = vmatprep.subr.bf16.mxu0 0
        %2332 = vmatpush1.bf16.msra.mxu0 0
        %2333 = vmatprep.subr.bf16.mxu0 0
        %2334 = vmatpush1.bf16.msra.mxu0 0
        %2335 = vmatprep.subr.bf16.mxu0 0
        %2336 = vmatpush1.bf16.msra.mxu0 0
        %2337 = vmatprep.subr.bf16.mxu0 0
        %2338 = vmatpush1.bf16.msra.mxu0 0
        %2339 = vmatprep.subr.bf16.mxu0 0
        %2340 = vmatpush1.bf16.msra.mxu0 0
        %2341 = vmatprep.subr.bf16.mxu0 0
        %2342 = vmatpush1.bf16.msra.mxu0 0
        %2343 = vmatprep.mubr.bf16.mxu0 0
        %2344 = vmatmul.mubr.bf16.gmra.mrb[0].mxu0 %v2077
        %v2345 = vpop.f32.mrb[0].mxu0
        %v2346 = vadd.f32 0.0, %v2345
        %v2347 = vpop.f32.mrb[0].mxu0
        %v2348 = vadd.f32 0.0, %v2347
        %v2349 = vpop.f32.mrb[0].mxu0
        %v2350 = vpop.f32.mrb[0].mxu0
        %2351 = vdwg.mxu0
        %v2352 = vadd.f32 %v2073, %v2305
        %v2353 = vadd.f32 %v2074, %v2307
        %v2354 = vadd.f32 %v2075, %v2346
        %v2355 = vadd.f32 %v2076, %v2348
        %v2356 = vxor.u32 %v2352, 2147483648
        %v2357 = vmul.f32 %v2356, 1.442695
        %v2358 = vpow.pop %v2357
        %v2359 = vadd.f32 %v2358, 1.0
        %v2360 = vrcp.pop %v2359
        %v2361 = vmul.f32 1.0, %v2360
        %v2362 = vxor.u32 %v2353, 2147483648
        %v2363 = vmul.f32 %v2362, 1.442695
        %v2364 = vpow.pop %v2363
        %v2365 = vadd.f32 %v2364, 1.0
        %v2366 = vrcp.pop %v2365
        %v2367 = vmul.f32 1.0, %v2366
        %v2368 = vtanh.pop %v2354
        %v2369 = vxor.u32 %v2355, 2147483648
        %v2370 = vmul.f32 %v2369, 1.442695
        %v2371 = vpow.pop %v2370
        %v2372 = vadd.f32 %v2371, 1.0
        %v2373 = vrcp.pop %v2372
        %v2374 = vmul.f32 1.0, %v2373
        %v2375 = vmul.f32 %v2367, %v2067
        %v2376 = vmul.f32 %v2361, %v2368
        %v2377 = vadd.f32 %v2375, %v2376
        %v2378 = vtanh.pop %v2377
        %v2379 = vmul.f32 %v2374, %v2378
        %s2380 = scalar_lea.vmem %s290, 32 [#allocation9]
        %2381 = vst [vmem:[%s2380] sm:$0xff] %v2379
        %s2382 = scalar_lea.vmem [#allocation2], 160
        %v2383 = vld [vmem:[%s2382] sm:$0xff]
        %v2384 = vld [vmem:[%s2382 + $0x8] sm:$0xff]
        %v2385 = vld [vmem:[%s2382 + $0x10] sm:$0xff]
        %v2386 = vld [vmem:[%s2382 + $0x18] sm:$0xff]
        %v2387 = vpack.c.bf16 %v2379, %v2379
        %v2388 = vld [vmem:[#allocation8] sm:$0xff]
        %v2389 = vld [vmem:[#allocation8 + $0x8] sm:$0xff]
        %v2390 = vld [vmem:[#allocation8 + $0x10] sm:$0xff]
        %v2391 = vld [vmem:[#allocation8 + $0x18] sm:$0xff]
        %v2392 = vld [vmem:[#allocation8 + $0x20] sm:$0xff]
        %v2393 = vld [vmem:[#allocation8 + $0x28] sm:$0xff]
        %v2394 = vld [vmem:[#allocation8 + $0x30] sm:$0xff]
        %v2395 = vld [vmem:[#allocation8 + $0x38] sm:$0xff]
        %v2396 = vld [vmem:[#allocation8 + $0x40] sm:$0xff]
        %v2397 = vld [vmem:[#allocation8 + $0x48] sm:$0xff]
        %v2398 = vld [vmem:[#allocation8 + $0x50] sm:$0xff]
        %v2399 = vld [vmem:[#allocation8 + $0x58] sm:$0xff]
        %v2400 = vld [vmem:[#allocation8 + $0x60] sm:$0xff]
        %v2401 = vld [vmem:[#allocation8 + $0x68] sm:$0xff]
        %v2402 = vld [vmem:[#allocation8 + $0x70] sm:$0xff]
        %v2403 = vld [vmem:[#allocation8 + $0x78] sm:$0xff]
        %v2404 = vld [vmem:[#allocation8 + $0x80] sm:$0xff]
        %v2405 = vld [vmem:[#allocation8 + $0x88] sm:$0xff]
        %v2406 = vld [vmem:[#allocation8 + $0x90] sm:$0xff]
        %v2407 = vld [vmem:[#allocation8 + $0x98] sm:$0xff]
        %v2408 = vld [vmem:[#allocation8 + $0xa0] sm:$0xff]
        %v2409 = vld [vmem:[#allocation8 + $0xa8] sm:$0xff]
        %v2410 = vld [vmem:[#allocation8 + $0xb0] sm:$0xff]
        %v2411 = vld [vmem:[#allocation8 + $0xb8] sm:$0xff]
        %v2412 = vld [vmem:[#allocation8 + $0xc0] sm:$0xff]
        %v2413 = vld [vmem:[#allocation8 + $0xc8] sm:$0xff]
        %v2414 = vld [vmem:[#allocation8 + $0xd0] sm:$0xff]
        %v2415 = vld [vmem:[#allocation8 + $0xd8] sm:$0xff]
        %v2416 = vld [vmem:[#allocation8 + $0xe0] sm:$0xff]
        %v2417 = vld [vmem:[#allocation8 + $0xe8] sm:$0xff]
        %v2418 = vld [vmem:[#allocation8 + $0xf0] sm:$0xff]
        %v2419 = vld [vmem:[#allocation8 + $0xf8] sm:$0xff]
        %v2452 = vunpack.c.l.b16 %v2388
        %v2453 = vunpack.c.h.b16 %v2388
        %v2454 = vunpack.c.l.b16 %v2389
        %v2455 = vunpack.c.h.b16 %v2389
        %v2456 = vunpack.c.l.b16 %v2390
        %v2457 = vunpack.c.h.b16 %v2390
        %v2458 = vunpack.c.l.b16 %v2391
        %v2459 = vunpack.c.h.b16 %v2391
        %v2460 = vunpack.c.l.b16 %v2392
        %v2461 = vunpack.c.h.b16 %v2392
        %v2462 = vunpack.c.l.b16 %v2393
        %v2463 = vunpack.c.h.b16 %v2393
        %v2464 = vunpack.c.l.b16 %v2394
        %v2465 = vunpack.c.h.b16 %v2394
        %v2466 = vunpack.c.l.b16 %v2395
        %v2467 = vunpack.c.h.b16 %v2395
        %v2468 = vunpack.c.l.b16 %v2396
        %v2469 = vunpack.c.h.b16 %v2396
        %v2470 = vunpack.c.l.b16 %v2397
        %v2471 = vunpack.c.h.b16 %v2397
        %v2472 = vunpack.c.l.b16 %v2398
        %v2473 = vunpack.c.h.b16 %v2398
        %v2474 = vunpack.c.l.b16 %v2399
        %v2475 = vunpack.c.h.b16 %v2399
        %v2476 = vunpack.c.l.b16 %v2400
        %v2477 = vunpack.c.h.b16 %v2400
        %v2478 = vunpack.c.l.b16 %v2401
        %v2479 = vunpack.c.h.b16 %v2401
        %v2480 = vunpack.c.l.b16 %v2402
        %v2481 = vunpack.c.h.b16 %v2402
        %v2482 = vunpack.c.l.b16 %v2403
        %v2483 = vunpack.c.h.b16 %v2403
        %v2484 = vunpack.c.l.b16 %v2404
        %v2485 = vunpack.c.h.b16 %v2404
        %v2486 = vunpack.c.l.b16 %v2405
        %v2487 = vunpack.c.h.b16 %v2405
        %v2488 = vunpack.c.l.b16 %v2406
        %v2489 = vunpack.c.h.b16 %v2406
        %v2490 = vunpack.c.l.b16 %v2407
        %v2491 = vunpack.c.h.b16 %v2407
        %v2492 = vunpack.c.l.b16 %v2408
        %v2493 = vunpack.c.h.b16 %v2408
        %v2494 = vunpack.c.l.b16 %v2409
        %v2495 = vunpack.c.h.b16 %v2409
        %v2496 = vunpack.c.l.b16 %v2410
        %v2497 = vunpack.c.h.b16 %v2410
        %v2498 = vunpack.c.l.b16 %v2411
        %v2499 = vunpack.c.h.b16 %v2411
        %v2500 = vunpack.c.l.b16 %v2412
        %v2501 = vunpack.c.h.b16 %v2412
        %v2502 = vunpack.c.l.b16 %v2413
        %v2503 = vunpack.c.h.b16 %v2413
        %v2504 = vunpack.c.l.b16 %v2414
        %v2505 = vunpack.c.h.b16 %v2414
        %v2506 = vunpack.c.l.b16 %v2415
        %v2507 = vunpack.c.h.b16 %v2415
        %v2508 = vunpack.c.l.b16 %v2416
        %v2509 = vunpack.c.h.b16 %v2416
        %v2510 = vunpack.c.l.b16 %v2417
        %v2511 = vunpack.c.h.b16 %v2417
        %v2512 = vunpack.c.l.b16 %v2418
        %v2513 = vunpack.c.h.b16 %v2418
        %v2514 = vunpack.c.l.b16 %v2419
        %v2515 = vunpack.c.h.b16 %v2419
        %v2516 = vpack.c.b16 %v2456, %v2452
        %v2517 = vpack.c.b16 %v2457, %v2453
        %v2518 = vpack.c.b16 %v2458, %v2454
        %v2519 = vpack.c.b16 %v2459, %v2455
        %v2520 = vpack.c.b16 %v2464, %v2460
        %v2521 = vpack.c.b16 %v2465, %v2461
        %v2522 = vpack.c.b16 %v2466, %v2462
        %v2523 = vpack.c.b16 %v2467, %v2463
        %v2524 = vpack.c.b16 %v2472, %v2468
        %v2525 = vpack.c.b16 %v2473, %v2469
        %v2526 = vpack.c.b16 %v2474, %v2470
        %v2527 = vpack.c.b16 %v2475, %v2471
        %v2528 = vpack.c.b16 %v2480, %v2476
        %v2529 = vpack.c.b16 %v2481, %v2477
        %v2530 = vpack.c.b16 %v2482, %v2478
        %v2531 = vpack.c.b16 %v2483, %v2479
        %v2532 = vpack.c.b16 %v2488, %v2484
        %v2533 = vpack.c.b16 %v2489, %v2485
        %v2534 = vpack.c.b16 %v2490, %v2486
        %v2535 = vpack.c.b16 %v2491, %v2487
        %v2536 = vpack.c.b16 %v2496, %v2492
        %v2537 = vpack.c.b16 %v2497, %v2493
        %v2538 = vpack.c.b16 %v2498, %v2494
        %v2539 = vpack.c.b16 %v2499, %v2495
        %v2540 = vpack.c.b16 %v2504, %v2500
        %v2541 = vpack.c.b16 %v2505, %v2501
        %v2542 = vpack.c.b16 %v2506, %v2502
        %v2543 = vpack.c.b16 %v2507, %v2503
        %v2544 = vpack.c.b16 %v2512, %v2508
        %v2545 = vpack.c.b16 %v2513, %v2509
        %v2546 = vpack.c.b16 %v2514, %v2510
        %v2547 = vpack.c.b16 %v2515, %v2511
        %2580 = vmatprep.subr.bf16.mxu0 %v2517
        %2581 = vmatpush1.bf16.msra.mxu0 %v2516
        %2582 = vmatprep.subr.bf16.mxu0 %v2521
        %2583 = vmatpush1.bf16.msra.mxu0 %v2520
        %2584 = vmatprep.subr.bf16.mxu0 %v2525
        %2585 = vmatpush1.bf16.msra.mxu0 %v2524
        %2586 = vmatprep.subr.bf16.mxu0 %v2529
        %2587 = vmatpush1.bf16.msra.mxu0 %v2528
        %2588 = vmatprep.subr.bf16.mxu0 %v2533
        %2589 = vmatpush1.bf16.msra.mxu0 %v2532
        %2590 = vmatprep.subr.bf16.mxu0 %v2537
        %2591 = vmatpush1.bf16.msra.mxu0 %v2536
        %2592 = vmatprep.subr.bf16.mxu0 %v2541
        %2593 = vmatpush1.bf16.msra.mxu0 %v2540
        %2594 = vmatprep.subr.bf16.mxu0 %v2545
        %2595 = vmatpush1.bf16.msra.mxu0 %v2544
        %2596 = vmatprep.subr.bf16.mxu0 0
        %2597 = vmatpush1.bf16.msra.mxu0 0
        %2598 = vmatprep.subr.bf16.mxu0 0
        %2599 = vmatpush1.bf16.msra.mxu0 0
        %2600 = vmatprep.subr.bf16.mxu0 0
        %2601 = vmatpush1.bf16.msra.mxu0 0
        %2602 = vmatprep.subr.bf16.mxu0 0
        %2603 = vmatpush1.bf16.msra.mxu0 0
        %2604 = vmatprep.subr.bf16.mxu0 0
        %2605 = vmatpush1.bf16.msra.mxu0 0
        %2606 = vmatprep.subr.bf16.mxu0 0
        %2607 = vmatpush1.bf16.msra.mxu0 0
        %2608 = vmatprep.subr.bf16.mxu0 0
        %2609 = vmatpush1.bf16.msra.mxu0 0
        %2610 = vmatprep.subr.bf16.mxu0 0
        %2611 = vmatpush1.bf16.msra.mxu0 0
        %2612 = vmatprep.mubr.bf16.mxu0 0
        %2613 = vmatmul.mubr.bf16.gmra.mrb[0].mxu0 %v2387
        %v2614 = vpop.f32.mrb[0].mxu0
        %v2615 = vadd.f32 0.0, %v2614
        %v2616 = vpop.f32.mrb[0].mxu0
        %v2617 = vadd.f32 0.0, %v2616
        %v2618 = vpop.f32.mrb[0].mxu0
        %v2619 = vpop.f32.mrb[0].mxu0
        %2620 = vdwg.mxu0
        %2621 = vmatprep.subr.bf16.mxu0 %v2519
        %2622 = vmatpush1.bf16.msra.mxu0 %v2518
        %2623 = vmatprep.subr.bf16.mxu0 %v2523
        %2624 = vmatpush1.bf16.msra.mxu0 %v2522
        %2625 = vmatprep.subr.bf16.mxu0 %v2527
        %2626 = vmatpush1.bf16.msra.mxu0 %v2526
        %2627 = vmatprep.subr.bf16.mxu0 %v2531
        %2628 = vmatpush1.bf16.msra.mxu0 %v2530
        %2629 = vmatprep.subr.bf16.mxu0 %v2535
        %2630 = vmatpush1.bf16.msra.mxu0 %v2534
        %2631 = vmatprep.subr.bf16.mxu0 %v2539
        %2632 = vmatpush1.bf16.msra.mxu0 %v2538
        %2633 = vmatprep.subr.bf16.mxu0 %v2543
        %2634 = vmatpush1.bf16.msra.mxu0 %v2542
        %2635 = vmatprep.subr.bf16.mxu0 %v2547
        %2636 = vmatpush1.bf16.msra.mxu0 %v2546
        %2637 = vmatprep.subr.bf16.mxu0 0
        %2638 = vmatpush1.bf16.msra.mxu0 0
        %2639 = vmatprep.subr.bf16.mxu0 0
        %2640 = vmatpush1.bf16.msra.mxu0 0
        %2641 = vmatprep.subr.bf16.mxu0 0
        %2642 = vmatpush1.bf16.msra.mxu0 0
        %2643 = vmatprep.subr.bf16.mxu0 0
        %2644 = vmatpush1.bf16.msra.mxu0 0
        %2645 = vmatprep.subr.bf16.mxu0 0
        %2646 = vmatpush1.bf16.msra.mxu0 0
        %2647 = vmatprep.subr.bf16.mxu0 0
        %2648 = vmatpush1.bf16.msra.mxu0 0
        %2649 = vmatprep.subr.bf16.mxu0 0
        %2650 = vmatpush1.bf16.msra.mxu0 0
        %2651 = vmatprep.subr.bf16.mxu0 0
        %2652 = vmatpush1.bf16.msra.mxu0 0
        %2653 = vmatprep.mubr.bf16.mxu0 0
        %2654 = vmatmul.mubr.bf16.gmra.mrb[0].mxu0 %v2387
        %v2655 = vpop.f32.mrb[0].mxu0
        %v2656 = vadd.f32 0.0, %v2655
        %v2657 = vpop.f32.mrb[0].mxu0
        %v2658 = vadd.f32 0.0, %v2657
        %v2659 = vpop.f32.mrb[0].mxu0
        %v2660 = vpop.f32.mrb[0].mxu0
        %2661 = vdwg.mxu0
        %v2662 = vadd.f32 %v2383, %v2615
        %v2663 = vadd.f32 %v2384, %v2617
        %v2664 = vadd.f32 %v2385, %v2656
        %v2665 = vadd.f32 %v2386, %v2658
        %v2666 = vxor.u32 %v2662, 2147483648
        %v2667 = vmul.f32 %v2666, 1.442695
        %v2668 = vpow.pop %v2667
        %v2669 = vadd.f32 %v2668, 1.0
        %v2670 = vrcp.pop %v2669
        %v2671 = vmul.f32 1.0, %v2670
        %v2672 = vxor.u32 %v2663, 2147483648
        %v2673 = vmul.f32 %v2672, 1.442695
        %v2674 = vpow.pop %v2673
        %v2675 = vadd.f32 %v2674, 1.0
        %v2676 = vrcp.pop %v2675
        %v2677 = vmul.f32 1.0, %v2676
        %v2678 = vtanh.pop %v2664
        %v2679 = vxor.u32 %v2665, 2147483648
        %v2680 = vmul.f32 %v2679, 1.442695
        %v2681 = vpow.pop %v2680
        %v2682 = vadd.f32 %v2681, 1.0
        %v2683 = vrcp.pop %v2682
        %v2684 = vmul.f32 1.0, %v2683
        %v2685 = vmul.f32 %v2677, %v2377
        %v2686 = vmul.f32 %v2671, %v2678
        %v2687 = vadd.f32 %v2685, %v2686
        %v2688 = vtanh.pop %v2687
        %v2689 = vmul.f32 %v2684, %v2688
        %s2690 = scalar_lea.vmem %s290, 40 [#allocation9]
        %2691 = vst [vmem:[%s2690] sm:$0xff] %v2689
        %s2692 = scalar_lea.vmem [#allocation2], 192
        %v2693 = vld [vmem:[%s2692] sm:$0xff]
        %v2694 = vld [vmem:[%s2692 + $0x8] sm:$0xff]
        %v2695 = vld [vmem:[%s2692 + $0x10] sm:$0xff]
        %v2696 = vld [vmem:[%s2692 + $0x18] sm:$0xff]
        %v2697 = vpack.c.bf16 %v2689, %v2689
        %v2698 = vld [vmem:[#allocation8] sm:$0xff]
        %v2699 = vld [vmem:[#allocation8 + $0x8] sm:$0xff]
        %v2700 = vld [vmem:[#allocation8 + $0x10] sm:$0xff]
        %v2701 = vld [vmem:[#allocation8 + $0x18] sm:$0xff]
        %v2702 = vld [vmem:[#allocation8 + $0x20] sm:$0xff]
        %v2703 = vld [vmem:[#allocation8 + $0x28] sm:$0xff]
        %v2704 = vld [vmem:[#allocation8 + $0x30] sm:$0xff]
        %v2705 = vld [vmem:[#allocation8 + $0x38] sm:$0xff]
        %v2706 = vld [vmem:[#allocation8 + $0x40] sm:$0xff]
        %v2707 = vld [vmem:[#allocation8 + $0x48] sm:$0xff]
        %v2708 = vld [vmem:[#allocation8 + $0x50] sm:$0xff]
        %v2709 = vld [vmem:[#allocation8 + $0x58] sm:$0xff]
        %v2710 = vld [vmem:[#allocation8 + $0x60] sm:$0xff]
        %v2711 = vld [vmem:[#allocation8 + $0x68] sm:$0xff]
        %v2712 = vld [vmem:[#allocation8 + $0x70] sm:$0xff]
        %v2713 = vld [vmem:[#allocation8 + $0x78] sm:$0xff]
        %v2714 = vld [vmem:[#allocation8 + $0x80] sm:$0xff]
        %v2715 = vld [vmem:[#allocation8 + $0x88] sm:$0xff]
        %v2716 = vld [vmem:[#allocation8 + $0x90] sm:$0xff]
        %v2717 = vld [vmem:[#allocation8 + $0x98] sm:$0xff]
        %v2718 = vld [vmem:[#allocation8 + $0xa0] sm:$0xff]
        %v2719 = vld [vmem:[#allocation8 + $0xa8] sm:$0xff]
        %v2720 = vld [vmem:[#allocation8 + $0xb0] sm:$0xff]
        %v2721 = vld [vmem:[#allocation8 + $0xb8] sm:$0xff]
        %v2722 = vld [vmem:[#allocation8 + $0xc0] sm:$0xff]
        %v2723 = vld [vmem:[#allocation8 + $0xc8] sm:$0xff]
        %v2724 = vld [vmem:[#allocation8 + $0xd0] sm:$0xff]
        %v2725 = vld [vmem:[#allocation8 + $0xd8] sm:$0xff]
        %v2726 = vld [vmem:[#allocation8 + $0xe0] sm:$0xff]
        %v2727 = vld [vmem:[#allocation8 + $0xe8] sm:$0xff]
        %v2728 = vld [vmem:[#allocation8 + $0xf0] sm:$0xff]
        %v2729 = vld [vmem:[#allocation8 + $0xf8] sm:$0xff]
        %v2762 = vunpack.c.l.b16 %v2698
        %v2763 = vunpack.c.h.b16 %v2698
        %v2764 = vunpack.c.l.b16 %v2699
        %v2765 = vunpack.c.h.b16 %v2699
        %v2766 = vunpack.c.l.b16 %v2700
        %v2767 = vunpack.c.h.b16 %v2700
        %v2768 = vunpack.c.l.b16 %v2701
        %v2769 = vunpack.c.h.b16 %v2701
        %v2770 = vunpack.c.l.b16 %v2702
        %v2771 = vunpack.c.h.b16 %v2702
        %v2772 = vunpack.c.l.b16 %v2703
        %v2773 = vunpack.c.h.b16 %v2703
        %v2774 = vunpack.c.l.b16 %v2704
        %v2775 = vunpack.c.h.b16 %v2704
        %v2776 = vunpack.c.l.b16 %v2705
        %v2777 = vunpack.c.h.b16 %v2705
        %v2778 = vunpack.c.l.b16 %v2706
        %v2779 = vunpack.c.h.b16 %v2706
        %v2780 = vunpack.c.l.b16 %v2707
        %v2781 = vunpack.c.h.b16 %v2707
        %v2782 = vunpack.c.l.b16 %v2708
        %v2783 = vunpack.c.h.b16 %v2708
        %v2784 = vunpack.c.l.b16 %v2709
        %v2785 = vunpack.c.h.b16 %v2709
        %v2786 = vunpack.c.l.b16 %v2710
        %v2787 = vunpack.c.h.b16 %v2710
        %v2788 = vunpack.c.l.b16 %v2711
        %v2789 = vunpack.c.h.b16 %v2711
        %v2790 = vunpack.c.l.b16 %v2712
        %v2791 = vunpack.c.h.b16 %v2712
        %v2792 = vunpack.c.l.b16 %v2713
        %v2793 = vunpack.c.h.b16 %v2713
        %v2794 = vunpack.c.l.b16 %v2714
        %v2795 = vunpack.c.h.b16 %v2714
        %v2796 = vunpack.c.l.b16 %v2715
        %v2797 = vunpack.c.h.b16 %v2715
        %v2798 = vunpack.c.l.b16 %v2716
        %v2799 = vunpack.c.h.b16 %v2716
        %v2800 = vunpack.c.l.b16 %v2717
        %v2801 = vunpack.c.h.b16 %v2717
        %v2802 = vunpack.c.l.b16 %v2718
        %v2803 = vunpack.c.h.b16 %v2718
        %v2804 = vunpack.c.l.b16 %v2719
        %v2805 = vunpack.c.h.b16 %v2719
        %v2806 = vunpack.c.l.b16 %v2720
        %v2807 = vunpack.c.h.b16 %v2720
        %v2808 = vunpack.c.l.b16 %v2721
        %v2809 = vunpack.c.h.b16 %v2721
        %v2810 = vunpack.c.l.b16 %v2722
        %v2811 = vunpack.c.h.b16 %v2722
        %v2812 = vunpack.c.l.b16 %v2723
        %v2813 = vunpack.c.h.b16 %v2723
        %v2814 = vunpack.c.l.b16 %v2724
        %v2815 = vunpack.c.h.b16 %v2724
        %v2816 = vunpack.c.l.b16 %v2725
        %v2817 = vunpack.c.h.b16 %v2725
        %v2818 = vunpack.c.l.b16 %v2726
        %v2819 = vunpack.c.h.b16 %v2726
        %v2820 = vunpack.c.l.b16 %v2727
        %v2821 = vunpack.c.h.b16 %v2727
        %v2822 = vunpack.c.l.b16 %v2728
        %v2823 = vunpack.c.h.b16 %v2728
        %v2824 = vunpack.c.l.b16 %v2729
        %v2825 = vunpack.c.h.b16 %v2729
        %v2826 = vpack.c.b16 %v2766, %v2762
        %v2827 = vpack.c.b16 %v2767, %v2763
        %v2828 = vpack.c.b16 %v2768, %v2764
        %v2829 = vpack.c.b16 %v2769, %v2765
        %v2830 = vpack.c.b16 %v2774, %v2770
        %v2831 = vpack.c.b16 %v2775, %v2771
        %v2832 = vpack.c.b16 %v2776, %v2772
        %v2833 = vpack.c.b16 %v2777, %v2773
        %v2834 = vpack.c.b16 %v2782, %v2778
        %v2835 = vpack.c.b16 %v2783, %v2779
        %v2836 = vpack.c.b16 %v2784, %v2780
        %v2837 = vpack.c.b16 %v2785, %v2781
        %v2838 = vpack.c.b16 %v2790, %v2786
        %v2839 = vpack.c.b16 %v2791, %v2787
        %v2840 = vpack.c.b16 %v2792, %v2788
        %v2841 = vpack.c.b16 %v2793, %v2789
        %v2842 = vpack.c.b16 %v2798, %v2794
        %v2843 = vpack.c.b16 %v2799, %v2795
        %v2844 = vpack.c.b16 %v2800, %v2796
        %v2845 = vpack.c.b16 %v2801, %v2797
        %v2846 = vpack.c.b16 %v2806, %v2802
        %v2847 = vpack.c.b16 %v2807, %v2803
        %v2848 = vpack.c.b16 %v2808, %v2804
        %v2849 = vpack.c.b16 %v2809, %v2805
        %v2850 = vpack.c.b16 %v2814, %v2810
        %v2851 = vpack.c.b16 %v2815, %v2811
        %v2852 = vpack.c.b16 %v2816, %v2812
        %v2853 = vpack.c.b16 %v2817, %v2813
        %v2854 = vpack.c.b16 %v2822, %v2818
        %v2855 = vpack.c.b16 %v2823, %v2819
        %v2856 = vpack.c.b16 %v2824, %v2820
        %v2857 = vpack.c.b16 %v2825, %v2821
        %2890 = vmatprep.subr.bf16.mxu0 %v2827
        %2891 = vmatpush1.bf16.msra.mxu0 %v2826
        %2892 = vmatprep.subr.bf16.mxu0 %v2831
        %2893 = vmatpush1.bf16.msra.mxu0 %v2830
        %2894 = vmatprep.subr.bf16.mxu0 %v2835
        %2895 = vmatpush1.bf16.msra.mxu0 %v2834
        %2896 = vmatprep.subr.bf16.mxu0 %v2839
        %2897 = vmatpush1.bf16.msra.mxu0 %v2838
        %2898 = vmatprep.subr.bf16.mxu0 %v2843
        %2899 = vmatpush1.bf16.msra.mxu0 %v2842
        %2900 = vmatprep.subr.bf16.mxu0 %v2847
        %2901 = vmatpush1.bf16.msra.mxu0 %v2846
        %2902 = vmatprep.subr.bf16.mxu0 %v2851
        %2903 = vmatpush1.bf16.msra.mxu0 %v2850
        %2904 = vmatprep.subr.bf16.mxu0 %v2855
        %2905 = vmatpush1.bf16.msra.mxu0 %v2854
        %2906 = vmatprep.subr.bf16.mxu0 0
        %2907 = vmatpush1.bf16.msra.mxu0 0
        %2908 = vmatprep.subr.bf16.mxu0 0
        %2909 = vmatpush1.bf16.msra.mxu0 0
        %2910 = vmatprep.subr.bf16.mxu0 0
        %2911 = vmatpush1.bf16.msra.mxu0 0
        %2912 = vmatprep.subr.bf16.mxu0 0
        %2913 = vmatpush1.bf16.msra.mxu0 0
        %2914 = vmatprep.subr.bf16.mxu0 0
        %2915 = vmatpush1.bf16.msra.mxu0 0
        %2916 = vmatprep.subr.bf16.mxu0 0
        %2917 = vmatpush1.bf16.msra.mxu0 0
        %2918 = vmatprep.subr.bf16.mxu0 0
        %2919 = vmatpush1.bf16.msra.mxu0 0
        %2920 = vmatprep.subr.bf16.mxu0 0
        %2921 = vmatpush1.bf16.msra.mxu0 0
        %2922 = vmatprep.mubr.bf16.mxu0 0
        %2923 = vmatmul.mubr.bf16.gmra.mrb[0].mxu0 %v2697
        %v2924 = vpop.f32.mrb[0].mxu0
        %v2925 = vadd.f32 0.0, %v2924
        %v2926 = vpop.f32.mrb[0].mxu0
        %v2927 = vadd.f32 0.0, %v2926
        %v2928 = vpop.f32.mrb[0].mxu0
        %v2929 = vpop.f32.mrb[0].mxu0
        %2930 = vdwg.mxu0
        %2931 = vmatprep.subr.bf16.mxu0 %v2829
        %2932 = vmatpush1.bf16.msra.mxu0 %v2828
        %2933 = vmatprep.subr.bf16.mxu0 %v2833
        %2934 = vmatpush1.bf16.msra.mxu0 %v2832
        %2935 = vmatprep.subr.bf16.mxu0 %v2837
        %2936 = vmatpush1.bf16.msra.mxu0 %v2836
        %2937 = vmatprep.subr.bf16.mxu0 %v2841
        %2938 = vmatpush1.bf16.msra.mxu0 %v2840
        %2939 = vmatprep.subr.bf16.mxu0 %v2845
        %2940 = vmatpush1.bf16.msra.mxu0 %v2844
        %2941 = vmatprep.subr.bf16.mxu0 %v2849
        %2942 = vmatpush1.bf16.msra.mxu0 %v2848
        %2943 = vmatprep.subr.bf16.mxu0 %v2853
        %2944 = vmatpush1.bf16.msra.mxu0 %v2852
        %2945 = vmatprep.subr.bf16.mxu0 %v2857
        %2946 = vmatpush1.bf16.msra.mxu0 %v2856
        %2947 = vmatprep.subr.bf16.mxu0 0
        %2948 = vmatpush1.bf16.msra.mxu0 0
        %2949 = vmatprep.subr.bf16.mxu0 0
        %2950 = vmatpush1.bf16.msra.mxu0 0
        %2951 = vmatprep.subr.bf16.mxu0 0
        %2952 = vmatpush1.bf16.msra.mxu0 0
        %2953 = vmatprep.subr.bf16.mxu0 0
        %2954 = vmatpush1.bf16.msra.mxu0 0
        %2955 = vmatprep.subr.bf16.mxu0 0
        %2956 = vmatpush1.bf16.msra.mxu0 0
        %2957 = vmatprep.subr.bf16.mxu0 0
        %2958 = vmatpush1.bf16.msra.mxu0 0
        %2959 = vmatprep.subr.bf16.mxu0 0
        %2960 = vmatpush1.bf16.msra.mxu0 0
        %2961 = vmatprep.subr.bf16.mxu0 0
        %2962 = vmatpush1.bf16.msra.mxu0 0
        %2963 = vmatprep.mubr.bf16.mxu0 0
        %2964 = vmatmul.mubr.bf16.gmra.mrb[0].mxu0 %v2697
        %v2965 = vpop.f32.mrb[0].mxu0
        %v2966 = vadd.f32 0.0, %v2965
        %v2967 = vpop.f32.mrb[0].mxu0
        %v2968 = vadd.f32 0.0, %v2967
        %v2969 = vpop.f32.mrb[0].mxu0
        %v2970 = vpop.f32.mrb[0].mxu0
        %2971 = vdwg.mxu0
        %v2972 = vadd.f32 %v2693, %v2925
        %v2973 = vadd.f32 %v2694, %v2927
        %v2974 = vadd.f32 %v2695, %v2966
        %v2975 = vadd.f32 %v2696, %v2968
        %v2976 = vxor.u32 %v2972, 2147483648
        %v2977 = vmul.f32 %v2976, 1.442695
        %v2978 = vpow.pop %v2977
        %v2979 = vadd.f32 %v2978, 1.0
        %v2980 = vrcp.pop %v2979
        %v2981 = vmul.f32 1.0, %v2980
        %v2982 = vxor.u32 %v2973, 2147483648
        %v2983 = vmul.f32 %v2982, 1.442695
        %v2984 = vpow.pop %v2983
        %v2985 = vadd.f32 %v2984, 1.0
        %v2986 = vrcp.pop %v2985
        %v2987 = vmul.f32 1.0, %v2986
        %v2988 = vtanh.pop %v2974
        %v2989 = vxor.u32 %v2975, 2147483648
        %v2990 = vmul.f32 %v2989, 1.442695
        %v2991 = vpow.pop %v2990
        %v2992 = vadd.f32 %v2991, 1.0
        %v2993 = vrcp.pop %v2992
        %v2994 = vmul.f32 1.0, %v2993
        %v2995 = vmul.f32 %v2987, %v2687
        %v2996 = vmul.f32 %v2981, %v2988
        %v2997 = vadd.f32 %v2995, %v2996
        %v2998 = vtanh.pop %v2997
        %v2999 = vmul.f32 %v2994, %v2998
        %s3000 = scalar_lea.vmem %s290, 48 [#allocation9]
        %3001 = vst [vmem:[%s3000] sm:$0xff] %v2999
        %s3002 = scalar_lea.vmem [#allocation2], 224
        %v3003 = vld [vmem:[%s3002] sm:$0xff]
        %v3004 = vld [vmem:[%s3002 + $0x8] sm:$0xff]
        %v3005 = vld [vmem:[%s3002 + $0x10] sm:$0xff]
        %v3006 = vld [vmem:[%s3002 + $0x18] sm:$0xff]
        %v3007 = vpack.c.bf16 %v2999, %v2999
        %v3008 = vld [vmem:[#allocation8] sm:$0xff]
        %v3009 = vld [vmem:[#allocation8 + $0x8] sm:$0xff]
        %v3010 = vld [vmem:[#allocation8 + $0x10] sm:$0xff]
        %v3011 = vld [vmem:[#allocation8 + $0x18] sm:$0xff]
        %v3012 = vld [vmem:[#allocation8 + $0x20] sm:$0xff]
        %v3013 = vld [vmem:[#allocation8 + $0x28] sm:$0xff]
        %v3014 = vld [vmem:[#allocation8 + $0x30] sm:$0xff]
        %v3015 = vld [vmem:[#allocation8 + $0x38] sm:$0xff]
        %v3016 = vld [vmem:[#allocation8 + $0x40] sm:$0xff]
        %v3017 = vld [vmem:[#allocation8 + $0x48] sm:$0xff]
        %v3018 = vld [vmem:[#allocation8 + $0x50] sm:$0xff]
        %v3019 = vld [vmem:[#allocation8 + $0x58] sm:$0xff]
        %v3020 = vld [vmem:[#allocation8 + $0x60] sm:$0xff]
        %v3021 = vld [vmem:[#allocation8 + $0x68] sm:$0xff]
        %v3022 = vld [vmem:[#allocation8 + $0x70] sm:$0xff]
        %v3023 = vld [vmem:[#allocation8 + $0x78] sm:$0xff]
        %v3024 = vld [vmem:[#allocation8 + $0x80] sm:$0xff]
        %v3025 = vld [vmem:[#allocation8 + $0x88] sm:$0xff]
        %v3026 = vld [vmem:[#allocation8 + $0x90] sm:$0xff]
        %v3027 = vld [vmem:[#allocation8 + $0x98] sm:$0xff]
        %v3028 = vld [vmem:[#allocation8 + $0xa0] sm:$0xff]
        %v3029 = vld [vmem:[#allocation8 + $0xa8] sm:$0xff]
        %v3030 = vld [vmem:[#allocation8 + $0xb0] sm:$0xff]
        %v3031 = vld [vmem:[#allocation8 + $0xb8] sm:$0xff]
        %v3032 = vld [vmem:[#allocation8 + $0xc0] sm:$0xff]
        %v3033 = vld [vmem:[#allocation8 + $0xc8] sm:$0xff]
        %v3034 = vld [vmem:[#allocation8 + $0xd0] sm:$0xff]
        %v3035 = vld [vmem:[#allocation8 + $0xd8] sm:$0xff]
        %v3036 = vld [vmem:[#allocation8 + $0xe0] sm:$0xff]
        %v3037 = vld [vmem:[#allocation8 + $0xe8] sm:$0xff]
        %v3038 = vld [vmem:[#allocation8 + $0xf0] sm:$0xff]
        %v3039 = vld [vmem:[#allocation8 + $0xf8] sm:$0xff]
        %v3072 = vunpack.c.l.b16 %v3008
        %v3073 = vunpack.c.h.b16 %v3008
        %v3074 = vunpack.c.l.b16 %v3009
        %v3075 = vunpack.c.h.b16 %v3009
        %v3076 = vunpack.c.l.b16 %v3010
        %v3077 = vunpack.c.h.b16 %v3010
        %v3078 = vunpack.c.l.b16 %v3011
        %v3079 = vunpack.c.h.b16 %v3011
        %v3080 = vunpack.c.l.b16 %v3012
        %v3081 = vunpack.c.h.b16 %v3012
        %v3082 = vunpack.c.l.b16 %v3013
        %v3083 = vunpack.c.h.b16 %v3013
        %v3084 = vunpack.c.l.b16 %v3014
        %v3085 = vunpack.c.h.b16 %v3014
        %v3086 = vunpack.c.l.b16 %v3015
        %v3087 = vunpack.c.h.b16 %v3015
        %v3088 = vunpack.c.l.b16 %v3016
        %v3089 = vunpack.c.h.b16 %v3016
        %v3090 = vunpack.c.l.b16 %v3017
        %v3091 = vunpack.c.h.b16 %v3017
        %v3092 = vunpack.c.l.b16 %v3018
        %v3093 = vunpack.c.h.b16 %v3018
        %v3094 = vunpack.c.l.b16 %v3019
        %v3095 = vunpack.c.h.b16 %v3019
        %v3096 = vunpack.c.l.b16 %v3020
        %v3097 = vunpack.c.h.b16 %v3020
        %v3098 = vunpack.c.l.b16 %v3021
        %v3099 = vunpack.c.h.b16 %v3021
        %v3100 = vunpack.c.l.b16 %v3022
        %v3101 = vunpack.c.h.b16 %v3022
        %v3102 = vunpack.c.l.b16 %v3023
        %v3103 = vunpack.c.h.b16 %v3023
        %v3104 = vunpack.c.l.b16 %v3024
        %v3105 = vunpack.c.h.b16 %v3024
        %v3106 = vunpack.c.l.b16 %v3025
        %v3107 = vunpack.c.h.b16 %v3025
        %v3108 = vunpack.c.l.b16 %v3026
        %v3109 = vunpack.c.h.b16 %v3026
        %v3110 = vunpack.c.l.b16 %v3027
        %v3111 = vunpack.c.h.b16 %v3027
        %v3112 = vunpack.c.l.b16 %v3028
        %v3113 = vunpack.c.h.b16 %v3028
        %v3114 = vunpack.c.l.b16 %v3029
        %v3115 = vunpack.c.h.b16 %v3029
        %v3116 = vunpack.c.l.b16 %v3030
        %v3117 = vunpack.c.h.b16 %v3030
        %v3118 = vunpack.c.l.b16 %v3031
        %v3119 = vunpack.c.h.b16 %v3031
        %v3120 = vunpack.c.l.b16 %v3032
        %v3121 = vunpack.c.h.b16 %v3032
        %v3122 = vunpack.c.l.b16 %v3033
        %v3123 = vunpack.c.h.b16 %v3033
        %v3124 = vunpack.c.l.b16 %v3034
        %v3125 = vunpack.c.h.b16 %v3034
        %v3126 = vunpack.c.l.b16 %v3035
        %v3127 = vunpack.c.h.b16 %v3035
        %v3128 = vunpack.c.l.b16 %v3036
        %v3129 = vunpack.c.h.b16 %v3036
        %v3130 = vunpack.c.l.b16 %v3037
        %v3131 = vunpack.c.h.b16 %v3037
        %v3132 = vunpack.c.l.b16 %v3038
        %v3133 = vunpack.c.h.b16 %v3038
        %v3134 = vunpack.c.l.b16 %v3039
        %v3135 = vunpack.c.h.b16 %v3039
        %v3136 = vpack.c.b16 %v3076, %v3072
        %v3137 = vpack.c.b16 %v3077, %v3073
        %v3138 = vpack.c.b16 %v3078, %v3074
        %v3139 = vpack.c.b16 %v3079, %v3075
        %v3140 = vpack.c.b16 %v3084, %v3080
        %v3141 = vpack.c.b16 %v3085, %v3081
        %v3142 = vpack.c.b16 %v3086, %v3082
        %v3143 = vpack.c.b16 %v3087, %v3083
        %v3144 = vpack.c.b16 %v3092, %v3088
        %v3145 = vpack.c.b16 %v3093, %v3089
        %v3146 = vpack.c.b16 %v3094, %v3090
        %v3147 = vpack.c.b16 %v3095, %v3091
        %v3148 = vpack.c.b16 %v3100, %v3096
        %v3149 = vpack.c.b16 %v3101, %v3097
        %v3150 = vpack.c.b16 %v3102, %v3098
        %v3151 = vpack.c.b16 %v3103, %v3099
        %v3152 = vpack.c.b16 %v3108, %v3104
        %v3153 = vpack.c.b16 %v3109, %v3105
        %v3154 = vpack.c.b16 %v3110, %v3106
        %v3155 = vpack.c.b16 %v3111, %v3107
        %v3156 = vpack.c.b16 %v3116, %v3112
        %v3157 = vpack.c.b16 %v3117, %v3113
        %v3158 = vpack.c.b16 %v3118, %v3114
        %v3159 = vpack.c.b16 %v3119, %v3115
        %v3160 = vpack.c.b16 %v3124, %v3120
        %v3161 = vpack.c.b16 %v3125, %v3121
        %v3162 = vpack.c.b16 %v3126, %v3122
        %v3163 = vpack.c.b16 %v3127, %v3123
        %v3164 = vpack.c.b16 %v3132, %v3128
        %v3165 = vpack.c.b16 %v3133, %v3129
        %v3166 = vpack.c.b16 %v3134, %v3130
        %v3167 = vpack.c.b16 %v3135, %v3131
        %3200 = vmatprep.subr.bf16.mxu0 %v3137
        %3201 = vmatpush1.bf16.msra.mxu0 %v3136
        %3202 = vmatprep.subr.bf16.mxu0 %v3141
        %3203 = vmatpush1.bf16.msra.mxu0 %v3140
        %3204 = vmatprep.subr.bf16.mxu0 %v3145
        %3205 = vmatpush1.bf16.msra.mxu0 %v3144
        %3206 = vmatprep.subr.bf16.mxu0 %v3149
        %3207 = vmatpush1.bf16.msra.mxu0 %v3148
        %3208 = vmatprep.subr.bf16.mxu0 %v3153
        %3209 = vmatpush1.bf16.msra.mxu0 %v3152
        %3210 = vmatprep.subr.bf16.mxu0 %v3157
        %3211 = vmatpush1.bf16.msra.mxu0 %v3156
        %3212 = vmatprep.subr.bf16.mxu0 %v3161
        %3213 = vmatpush1.bf16.msra.mxu0 %v3160
        %3214 = vmatprep.subr.bf16.mxu0 %v3165
        %3215 = vmatpush1.bf16.msra.mxu0 %v3164
        %3216 = vmatprep.subr.bf16.mxu0 0
        %3217 = vmatpush1.bf16.msra.mxu0 0
        %3218 = vmatprep.subr.bf16.mxu0 0
        %3219 = vmatpush1.bf16.msra.mxu0 0
        %3220 = vmatprep.subr.bf16.mxu0 0
        %3221 = vmatpush1.bf16.msra.mxu0 0
        %3222 = vmatprep.subr.bf16.mxu0 0
        %3223 = vmatpush1.bf16.msra.mxu0 0
        %3224 = vmatprep.subr.bf16.mxu0 0
        %3225 = vmatpush1.bf16.msra.mxu0 0
        %3226 = vmatprep.subr.bf16.mxu0 0
        %3227 = vmatpush1.bf16.msra.mxu0 0
        %3228 = vmatprep.subr.bf16.mxu0 0
        %3229 = vmatpush1.bf16.msra.mxu0 0
        %3230 = vmatprep.subr.bf16.mxu0 0
        %3231 = vmatpush1.bf16.msra.mxu0 0
        %3232 = vmatprep.mubr.bf16.mxu0 0
        %3233 = vmatmul.mubr.bf16.gmra.mrb[0].mxu0 %v3007
        %v3234 = vpop.f32.mrb[0].mxu0
        %v3235 = vadd.f32 0.0, %v3234
        %v3236 = vpop.f32.mrb[0].mxu0
        %v3237 = vadd.f32 0.0, %v3236
        %v3238 = vpop.f32.mrb[0].mxu0
        %v3239 = vpop.f32.mrb[0].mxu0
        %3240 = vdwg.mxu0
        %3241 = vmatprep.subr.bf16.mxu0 %v3139
        %3242 = vmatpush1.bf16.msra.mxu0 %v3138
        %3243 = vmatprep.subr.bf16.mxu0 %v3143
        %3244 = vmatpush1.bf16.msra.mxu0 %v3142
        %3245 = vmatprep.subr.bf16.mxu0 %v3147
        %3246 = vmatpush1.bf16.msra.mxu0 %v3146
        %3247 = vmatprep.subr.bf16.mxu0 %v3151
        %3248 = vmatpush1.bf16.msra.mxu0 %v3150
        %3249 = vmatprep.subr.bf16.mxu0 %v3155
        %3250 = vmatpush1.bf16.msra.mxu0 %v3154
        %3251 = vmatprep.subr.bf16.mxu0 %v3159
        %3252 = vmatpush1.bf16.msra.mxu0 %v3158
        %3253 = vmatprep.subr.bf16.mxu0 %v3163
        %3254 = vmatpush1.bf16.msra.mxu0 %v3162
        %3255 = vmatprep.subr.bf16.mxu0 %v3167
        %3256 = vmatpush1.bf16.msra.mxu0 %v3166
        %3257 = vmatprep.subr.bf16.mxu0 0
        %3258 = vmatpush1.bf16.msra.mxu0 0
        %3259 = vmatprep.subr.bf16.mxu0 0
        %3260 = vmatpush1.bf16.msra.mxu0 0
        %3261 = vmatprep.subr.bf16.mxu0 0
        %3262 = vmatpush1.bf16.msra.mxu0 0
        %3263 = vmatprep.subr.bf16.mxu0 0
        %3264 = vmatpush1.bf16.msra.mxu0 0
        %3265 = vmatprep.subr.bf16.mxu0 0
        %3266 = vmatpush1.bf16.msra.mxu0 0
        %3267 = vmatprep.subr.bf16.mxu0 0
        %3268 = vmatpush1.bf16.msra.mxu0 0
        %3269 = vmatprep.subr.bf16.mxu0 0
        %3270 = vmatpush1.bf16.msra.mxu0 0
        %3271 = vmatprep.subr.bf16.mxu0 0
        %3272 = vmatpush1.bf16.msra.mxu0 0
        %3273 = vmatprep.mubr.bf16.mxu0 0
        %3274 = vmatmul.mubr.bf16.gmra.mrb[0].mxu0 %v3007
        %v3275 = vpop.f32.mrb[0].mxu0
        %v3276 = vadd.f32 0.0, %v3275
        %v3277 = vpop.f32.mrb[0].mxu0
        %v3278 = vadd.f32 0.0, %v3277
        %v3279 = vpop.f32.mrb[0].mxu0
        %v3280 = vpop.f32.mrb[0].mxu0
        %3281 = vdwg.mxu0
        %v3282 = vadd.f32 %v3003, %v3235
        %v3283 = vadd.f32 %v3004, %v3237
        %v3284 = vadd.f32 %v3005, %v3276
        %v3285 = vadd.f32 %v3006, %v3278
        %v3286 = vxor.u32 %v3282, 2147483648
        %v3287 = vmul.f32 %v3286, 1.442695
        %v3288 = vpow.pop %v3287
        %v3289 = vadd.f32 %v3288, 1.0
        %v3290 = vrcp.pop %v3289
        %v3291 = vmul.f32 1.0, %v3290
        %v3292 = vxor.u32 %v3283, 2147483648
        %v3293 = vmul.f32 %v3292, 1.442695
        %v3294 = vpow.pop %v3293
        %v3295 = vadd.f32 %v3294, 1.0
        %v3296 = vrcp.pop %v3295
        %v3297 = vmul.f32 1.0, %v3296
        %v3298 = vtanh.pop %v3284
        %v3299 = vxor.u32 %v3285, 2147483648
        %v3300 = vmul.f32 %v3299, 1.442695
        %v3301 = vpow.pop %v3300
        %v3302 = vadd.f32 %v3301, 1.0
        %v3303 = vrcp.pop %v3302
        %v3304 = vmul.f32 1.0, %v3303
        %v3305 = vmul.f32 %v3297, %v2997
        %v3306 = vmul.f32 %v3291, %v3298
        %v3307 = vadd.f32 %v3305, %v3306
        %v3308 = vtanh.pop %v3307
        %v3309 = vmul.f32 %v3304, %v3308
        %s3310 = scalar_lea.vmem %s290, 56 [#allocation9]
        %3311 = vst [vmem:[%s3310] sm:$0xff] %v3309
        %s3312 = scalar_lea.vmem [#allocation2], 256
        %v3313 = vld [vmem:[%s3312] sm:$0xff]
        %v3314 = vld [vmem:[%s3312 + $0x8] sm:$0xff]
        %v3315 = vld [vmem:[%s3312 + $0x10] sm:$0xff]
        %v3316 = vld [vmem:[%s3312 + $0x18] sm:$0xff]
        %v3317 = vpack.c.bf16 %v3309, %v3309
        %v3318 = vld [vmem:[#allocation8] sm:$0xff]
        %v3319 = vld [vmem:[#allocation8 + $0x8] sm:$0xff]
        %v3320 = vld [vmem:[#allocation8 + $0x10] sm:$0xff]
        %v3321 = vld [vmem:[#allocation8 + $0x18] sm:$0xff]
        %v3322 = vld [vmem:[#allocation8 + $0x20] sm:$0xff]
        %v3323 = vld [vmem:[#allocation8 + $0x28] sm:$0xff]
        %v3324 = vld [vmem:[#allocation8 + $0x30] sm:$0xff]
        %v3325 = vld [vmem:[#allocation8 + $0x38] sm:$0xff]
        %v3326 = vld [vmem:[#allocation8 + $0x40] sm:$0xff]
        %v3327 = vld [vmem:[#allocation8 + $0x48] sm:$0xff]
        %v3328 = vld [vmem:[#allocation8 + $0x50] sm:$0xff]
        %v3329 = vld [vmem:[#allocation8 + $0x58] sm:$0xff]
        %v3330 = vld [vmem:[#allocation8 + $0x60] sm:$0xff]
        %v3331 = vld [vmem:[#allocation8 + $0x68] sm:$0xff]
        %v3332 = vld [vmem:[#allocation8 + $0x70] sm:$0xff]
        %v3333 = vld [vmem:[#allocation8 + $0x78] sm:$0xff]
        %v3334 = vld [vmem:[#allocation8 + $0x80] sm:$0xff]
        %v3335 = vld [vmem:[#allocation8 + $0x88] sm:$0xff]
        %v3336 = vld [vmem:[#allocation8 + $0x90] sm:$0xff]
        %v3337 = vld [vmem:[#allocation8 + $0x98] sm:$0xff]
        %v3338 = vld [vmem:[#allocation8 + $0xa0] sm:$0xff]
        %v3339 = vld [vmem:[#allocation8 + $0xa8] sm:$0xff]
        %v3340 = vld [vmem:[#allocation8 + $0xb0] sm:$0xff]
        %v3341 = vld [vmem:[#allocation8 + $0xb8] sm:$0xff]
        %v3342 = vld [vmem:[#allocation8 + $0xc0] sm:$0xff]
        %v3343 = vld [vmem:[#allocation8 + $0xc8] sm:$0xff]
        %v3344 = vld [vmem:[#allocation8 + $0xd0] sm:$0xff]
        %v3345 = vld [vmem:[#allocation8 + $0xd8] sm:$0xff]
        %v3346 = vld [vmem:[#allocation8 + $0xe0] sm:$0xff]
        %v3347 = vld [vmem:[#allocation8 + $0xe8] sm:$0xff]
        %v3348 = vld [vmem:[#allocation8 + $0xf0] sm:$0xff]
        %v3349 = vld [vmem:[#allocation8 + $0xf8] sm:$0xff]
        %v3382 = vunpack.c.l.b16 %v3318
        %v3383 = vunpack.c.h.b16 %v3318
        %v3384 = vunpack.c.l.b16 %v3319
        %v3385 = vunpack.c.h.b16 %v3319
        %v3386 = vunpack.c.l.b16 %v3320
        %v3387 = vunpack.c.h.b16 %v3320
        %v3388 = vunpack.c.l.b16 %v3321
        %v3389 = vunpack.c.h.b16 %v3321
        %v3390 = vunpack.c.l.b16 %v3322
        %v3391 = vunpack.c.h.b16 %v3322
        %v3392 = vunpack.c.l.b16 %v3323
        %v3393 = vunpack.c.h.b16 %v3323
        %v3394 = vunpack.c.l.b16 %v3324
        %v3395 = vunpack.c.h.b16 %v3324
        %v3396 = vunpack.c.l.b16 %v3325
        %v3397 = vunpack.c.h.b16 %v3325
        %v3398 = vunpack.c.l.b16 %v3326
        %v3399 = vunpack.c.h.b16 %v3326
        %v3400 = vunpack.c.l.b16 %v3327
        %v3401 = vunpack.c.h.b16 %v3327
        %v3402 = vunpack.c.l.b16 %v3328
        %v3403 = vunpack.c.h.b16 %v3328
        %v3404 = vunpack.c.l.b16 %v3329
        %v3405 = vunpack.c.h.b16 %v3329
        %v3406 = vunpack.c.l.b16 %v3330
        %v3407 = vunpack.c.h.b16 %v3330
        %v3408 = vunpack.c.l.b16 %v3331
        %v3409 = vunpack.c.h.b16 %v3331
        %v3410 = vunpack.c.l.b16 %v3332
        %v3411 = vunpack.c.h.b16 %v3332
        %v3412 = vunpack.c.l.b16 %v3333
        %v3413 = vunpack.c.h.b16 %v3333
        %v3414 = vunpack.c.l.b16 %v3334
        %v3415 = vunpack.c.h.b16 %v3334
        %v3416 = vunpack.c.l.b16 %v3335
        %v3417 = vunpack.c.h.b16 %v3335
        %v3418 = vunpack.c.l.b16 %v3336
        %v3419 = vunpack.c.h.b16 %v3336
        %v3420 = vunpack.c.l.b16 %v3337
        %v3421 = vunpack.c.h.b16 %v3337
        %v3422 = vunpack.c.l.b16 %v3338
        %v3423 = vunpack.c.h.b16 %v3338
        %v3424 = vunpack.c.l.b16 %v3339
        %v3425 = vunpack.c.h.b16 %v3339
        %v3426 = vunpack.c.l.b16 %v3340
        %v3427 = vunpack.c.h.b16 %v3340
        %v3428 = vunpack.c.l.b16 %v3341
        %v3429 = vunpack.c.h.b16 %v3341
        %v3430 = vunpack.c.l.b16 %v3342
        %v3431 = vunpack.c.h.b16 %v3342
        %v3432 = vunpack.c.l.b16 %v3343
        %v3433 = vunpack.c.h.b16 %v3343
        %v3434 = vunpack.c.l.b16 %v3344
        %v3435 = vunpack.c.h.b16 %v3344
        %v3436 = vunpack.c.l.b16 %v3345
        %v3437 = vunpack.c.h.b16 %v3345
        %v3438 = vunpack.c.l.b16 %v3346
        %v3439 = vunpack.c.h.b16 %v3346
        %v3440 = vunpack.c.l.b16 %v3347
        %v3441 = vunpack.c.h.b16 %v3347
        %v3442 = vunpack.c.l.b16 %v3348
        %v3443 = vunpack.c.h.b16 %v3348
        %v3444 = vunpack.c.l.b16 %v3349
        %v3445 = vunpack.c.h.b16 %v3349
        %v3446 = vpack.c.b16 %v3386, %v3382
        %v3447 = vpack.c.b16 %v3387, %v3383
        %v3448 = vpack.c.b16 %v3388, %v3384
        %v3449 = vpack.c.b16 %v3389, %v3385
        %v3450 = vpack.c.b16 %v3394, %v3390
        %v3451 = vpack.c.b16 %v3395, %v3391
        %v3452 = vpack.c.b16 %v3396, %v3392
        %v3453 = vpack.c.b16 %v3397, %v3393
        %v3454 = vpack.c.b16 %v3402, %v3398
        %v3455 = vpack.c.b16 %v3403, %v3399
        %v3456 = vpack.c.b16 %v3404, %v3400
        %v3457 = vpack.c.b16 %v3405, %v3401
        %v3458 = vpack.c.b16 %v3410, %v3406
        %v3459 = vpack.c.b16 %v3411, %v3407
        %v3460 = vpack.c.b16 %v3412, %v3408
        %v3461 = vpack.c.b16 %v3413, %v3409
        %v3462 = vpack.c.b16 %v3418, %v3414
        %v3463 = vpack.c.b16 %v3419, %v3415
        %v3464 = vpack.c.b16 %v3420, %v3416
        %v3465 = vpack.c.b16 %v3421, %v3417
        %v3466 = vpack.c.b16 %v3426, %v3422
        %v3467 = vpack.c.b16 %v3427, %v3423
        %v3468 = vpack.c.b16 %v3428, %v3424
        %v3469 = vpack.c.b16 %v3429, %v3425
        %v3470 = vpack.c.b16 %v3434, %v3430
        %v3471 = vpack.c.b16 %v3435, %v3431
        %v3472 = vpack.c.b16 %v3436, %v3432
        %v3473 = vpack.c.b16 %v3437, %v3433
        %v3474 = vpack.c.b16 %v3442, %v3438
        %v3475 = vpack.c.b16 %v3443, %v3439
        %v3476 = vpack.c.b16 %v3444, %v3440
        %v3477 = vpack.c.b16 %v3445, %v3441
        %3510 = vmatprep.subr.bf16.mxu0 %v3447
        %3511 = vmatpush1.bf16.msra.mxu0 %v3446
        %3512 = vmatprep.subr.bf16.mxu0 %v3451
        %3513 = vmatpush1.bf16.msra.mxu0 %v3450
        %3514 = vmatprep.subr.bf16.mxu0 %v3455
        %3515 = vmatpush1.bf16.msra.mxu0 %v3454
        %3516 = vmatprep.subr.bf16.mxu0 %v3459
        %3517 = vmatpush1.bf16.msra.mxu0 %v3458
        %3518 = vmatprep.subr.bf16.mxu0 %v3463
        %3519 = vmatpush1.bf16.msra.mxu0 %v3462
        %3520 = vmatprep.subr.bf16.mxu0 %v3467
        %3521 = vmatpush1.bf16.msra.mxu0 %v3466
        %3522 = vmatprep.subr.bf16.mxu0 %v3471
        %3523 = vmatpush1.bf16.msra.mxu0 %v3470
        %3524 = vmatprep.subr.bf16.mxu0 %v3475
        %3525 = vmatpush1.bf16.msra.mxu0 %v3474
        %3526 = vmatprep.subr.bf16.mxu0 0
        %3527 = vmatpush1.bf16.msra.mxu0 0
        %3528 = vmatprep.subr.bf16.mxu0 0
        %3529 = vmatpush1.bf16.msra.mxu0 0
        %3530 = vmatprep.subr.bf16.mxu0 0
        %3531 = vmatpush1.bf16.msra.mxu0 0
        %3532 = vmatprep.subr.bf16.mxu0 0
        %3533 = vmatpush1.bf16.msra.mxu0 0
        %3534 = vmatprep.subr.bf16.mxu0 0
        %3535 = vmatpush1.bf16.msra.mxu0 0
        %3536 = vmatprep.subr.bf16.mxu0 0
        %3537 = vmatpush1.bf16.msra.mxu0 0
        %3538 = vmatprep.subr.bf16.mxu0 0
        %3539 = vmatpush1.bf16.msra.mxu0 0
        %3540 = vmatprep.subr.bf16.mxu0 0
        %3541 = vmatpush1.bf16.msra.mxu0 0
        %3542 = vmatprep.mubr.bf16.mxu0 0
        %3543 = vmatmul.mubr.bf16.gmra.mrb[0].mxu0 %v3317
        %v3544 = vpop.f32.mrb[0].mxu0
        %v3545 = vadd.f32 0.0, %v3544
        %v3546 = vpop.f32.mrb[0].mxu0
        %v3547 = vadd.f32 0.0, %v3546
        %v3548 = vpop.f32.mrb[0].mxu0
        %v3549 = vpop.f32.mrb[0].mxu0
        %3550 = vdwg.mxu0
        %3551 = vmatprep.subr.bf16.mxu0 %v3449
        %3552 = vmatpush1.bf16.msra.mxu0 %v3448
        %3553 = vmatprep.subr.bf16.mxu0 %v3453
        %3554 = vmatpush1.bf16.msra.mxu0 %v3452
        %3555 = vmatprep.subr.bf16.mxu0 %v3457
        %3556 = vmatpush1.bf16.msra.mxu0 %v3456
        %3557 = vmatprep.subr.bf16.mxu0 %v3461
        %3558 = vmatpush1.bf16.msra.mxu0 %v3460
        %3559 = vmatprep.subr.bf16.mxu0 %v3465
        %3560 = vmatpush1.bf16.msra.mxu0 %v3464
        %3561 = vmatprep.subr.bf16.mxu0 %v3469
        %3562 = vmatpush1.bf16.msra.mxu0 %v3468
        %3563 = vmatprep.subr.bf16.mxu0 %v3473
        %3564 = vmatpush1.bf16.msra.mxu0 %v3472
        %3565 = vmatprep.subr.bf16.mxu0 %v3477
        %3566 = vmatpush1.bf16.msra.mxu0 %v3476
        %3567 = vmatprep.subr.bf16.mxu0 0
        %3568 = vmatpush1.bf16.msra.mxu0 0
        %3569 = vmatprep.subr.bf16.mxu0 0
        %3570 = vmatpush1.bf16.msra.mxu0 0
        %3571 = vmatprep.subr.bf16.mxu0 0
        %3572 = vmatpush1.bf16.msra.mxu0 0
        %3573 = vmatprep.subr.bf16.mxu0 0
        %3574 = vmatpush1.bf16.msra.mxu0 0
        %3575 = vmatprep.subr.bf16.mxu0 0
        %3576 = vmatpush1.bf16.msra.mxu0 0
        %3577 = vmatprep.subr.bf16.mxu0 0
        %3578 = vmatpush1.bf16.msra.mxu0 0
        %3579 = vmatprep.subr.bf16.mxu0 0
        %3580 = vmatpush1.bf16.msra.mxu0 0
        %3581 = vmatprep.subr.bf16.mxu0 0
        %3582 = vmatpush1.bf16.msra.mxu0 0
        %3583 = vmatprep.mubr.bf16.mxu0 0
        %3584 = vmatmul.mubr.bf16.gmra.mrb[0].mxu0 %v3317
        %v3585 = vpop.f32.mrb[0].mxu0
        %v3586 = vadd.f32 0.0, %v3585
        %v3587 = vpop.f32.mrb[0].mxu0
        %v3588 = vadd.f32 0.0, %v3587
        %v3589 = vpop.f32.mrb[0].mxu0
        %v3590 = vpop.f32.mrb[0].mxu0
        %3591 = vdwg.mxu0
        %v3592 = vadd.f32 %v3313, %v3545
        %v3593 = vadd.f32 %v3314, %v3547
        %v3594 = vadd.f32 %v3315, %v3586
        %v3595 = vadd.f32 %v3316, %v3588
        %v3596 = vxor.u32 %v3592, 2147483648
        %v3597 = vmul.f32 %v3596, 1.442695
        %v3598 = vpow.pop %v3597
        %v3599 = vadd.f32 %v3598, 1.0
        %v3600 = vrcp.pop %v3599
        %v3601 = vmul.f32 1.0, %v3600
        %v3602 = vxor.u32 %v3593, 2147483648
        %v3603 = vmul.f32 %v3602, 1.442695
        %v3604 = vpow.pop %v3603
        %v3605 = vadd.f32 %v3604, 1.0
        %v3606 = vrcp.pop %v3605
        %v3607 = vmul.f32 1.0, %v3606
        %v3608 = vtanh.pop %v3594
        %v3609 = vxor.u32 %v3595, 2147483648
        %v3610 = vmul.f32 %v3609, 1.442695
        %v3611 = vpow.pop %v3610
        %v3612 = vadd.f32 %v3611, 1.0
        %v3613 = vrcp.pop %v3612
        %v3614 = vmul.f32 1.0, %v3613
        %v3615 = vmul.f32 %v3607, %v3307
        %v3616 = vmul.f32 %v3601, %v3608
        %v3617 = vadd.f32 %v3615, %v3616
        %v3618 = vtanh.pop %v3617
        %v3619 = vmul.f32 %v3614, %v3618
        %s3620 = scalar_lea.vmem %s290, 64 [#allocation9]
        %3621 = vst [vmem:[%s3620] sm:$0xff] %v3619
        %s3622 = scalar_lea.vmem [#allocation2], 288
        %v3623 = vld [vmem:[%s3622] sm:$0xff]
        %v3624 = vld [vmem:[%s3622 + $0x8] sm:$0xff]
        %v3625 = vld [vmem:[%s3622 + $0x10] sm:$0xff]
        %v3626 = vld [vmem:[%s3622 + $0x18] sm:$0xff]
        %v3627 = vpack.c.bf16 %v3619, %v3619
        %v3628 = vld [vmem:[#allocation8] sm:$0xff]
        %v3629 = vld [vmem:[#allocation8 + $0x8] sm:$0xff]
        %v3630 = vld [vmem:[#allocation8 + $0x10] sm:$0xff]
        %v3631 = vld [vmem:[#allocation8 + $0x18] sm:$0xff]
        %v3632 = vld [vmem:[#allocation8 + $0x20] sm:$0xff]
        %v3633 = vld [vmem:[#allocation8 + $0x28] sm:$0xff]
        %v3634 = vld [vmem:[#allocation8 + $0x30] sm:$0xff]
        %v3635 = vld [vmem:[#allocation8 + $0x38] sm:$0xff]
        %v3636 = vld [vmem:[#allocation8 + $0x40] sm:$0xff]
        %v3637 = vld [vmem:[#allocation8 + $0x48] sm:$0xff]
        %v3638 = vld [vmem:[#allocation8 + $0x50] sm:$0xff]
        %v3639 = vld [vmem:[#allocation8 + $0x58] sm:$0xff]
        %v3640 = vld [vmem:[#allocation8 + $0x60] sm:$0xff]
        %v3641 = vld [vmem:[#allocation8 + $0x68] sm:$0xff]
        %v3642 = vld [vmem:[#allocation8 + $0x70] sm:$0xff]
        %v3643 = vld [vmem:[#allocation8 + $0x78] sm:$0xff]
        %v3644 = vld [vmem:[#allocation8 + $0x80] sm:$0xff]
        %v3645 = vld [vmem:[#allocation8 + $0x88] sm:$0xff]
        %v3646 = vld [vmem:[#allocation8 + $0x90] sm:$0xff]
        %v3647 = vld [vmem:[#allocation8 + $0x98] sm:$0xff]
        %v3648 = vld [vmem:[#allocation8 + $0xa0] sm:$0xff]
        %v3649 = vld [vmem:[#allocation8 + $0xa8] sm:$0xff]
        %v3650 = vld [vmem:[#allocation8 + $0xb0] sm:$0xff]
        %v3651 = vld [vmem:[#allocation8 + $0xb8] sm:$0xff]
        %v3652 = vld [vmem:[#allocation8 + $0xc0] sm:$0xff]
        %v3653 = vld [vmem:[#allocation8 + $0xc8] sm:$0xff]
        %v3654 = vld [vmem:[#allocation8 + $0xd0] sm:$0xff]
        %v3655 = vld [vmem:[#allocation8 + $0xd8] sm:$0xff]
        %v3656 = vld [vmem:[#allocation8 + $0xe0] sm:$0xff]
        %v3657 = vld [vmem:[#allocation8 + $0xe8] sm:$0xff]
        %v3658 = vld [vmem:[#allocation8 + $0xf0] sm:$0xff]
        %v3659 = vld [vmem:[#allocation8 + $0xf8] sm:$0xff]
        %v3692 = vunpack.c.l.b16 %v3628
        %v3693 = vunpack.c.h.b16 %v3628
        %v3694 = vunpack.c.l.b16 %v3629
        %v3695 = vunpack.c.h.b16 %v3629
        %v3696 = vunpack.c.l.b16 %v3630
        %v3697 = vunpack.c.h.b16 %v3630
        %v3698 = vunpack.c.l.b16 %v3631
        %v3699 = vunpack.c.h.b16 %v3631
        %v3700 = vunpack.c.l.b16 %v3632
        %v3701 = vunpack.c.h.b16 %v3632
        %v3702 = vunpack.c.l.b16 %v3633
        %v3703 = vunpack.c.h.b16 %v3633
        %v3704 = vunpack.c.l.b16 %v3634
        %v3705 = vunpack.c.h.b16 %v3634
        %v3706 = vunpack.c.l.b16 %v3635
        %v3707 = vunpack.c.h.b16 %v3635
        %v3708 = vunpack.c.l.b16 %v3636
        %v3709 = vunpack.c.h.b16 %v3636
        %v3710 = vunpack.c.l.b16 %v3637
        %v3711 = vunpack.c.h.b16 %v3637
        %v3712 = vunpack.c.l.b16 %v3638
        %v3713 = vunpack.c.h.b16 %v3638
        %v3714 = vunpack.c.l.b16 %v3639
        %v3715 = vunpack.c.h.b16 %v3639
        %v3716 = vunpack.c.l.b16 %v3640
        %v3717 = vunpack.c.h.b16 %v3640
        %v3718 = vunpack.c.l.b16 %v3641
        %v3719 = vunpack.c.h.b16 %v3641
        %v3720 = vunpack.c.l.b16 %v3642
        %v3721 = vunpack.c.h.b16 %v3642
        %v3722 = vunpack.c.l.b16 %v3643
        %v3723 = vunpack.c.h.b16 %v3643
        %v3724 = vunpack.c.l.b16 %v3644
        %v3725 = vunpack.c.h.b16 %v3644
        %v3726 = vunpack.c.l.b16 %v3645
        %v3727 = vunpack.c.h.b16 %v3645
        %v3728 = vunpack.c.l.b16 %v3646
        %v3729 = vunpack.c.h.b16 %v3646
        %v3730 = vunpack.c.l.b16 %v3647
        %v3731 = vunpack.c.h.b16 %v3647
        %v3732 = vunpack.c.l.b16 %v3648
        %v3733 = vunpack.c.h.b16 %v3648
        %v3734 = vunpack.c.l.b16 %v3649
        %v3735 = vunpack.c.h.b16 %v3649
        %v3736 = vunpack.c.l.b16 %v3650
        %v3737 = vunpack.c.h.b16 %v3650
        %v3738 = vunpack.c.l.b16 %v3651
        %v3739 = vunpack.c.h.b16 %v3651
        %v3740 = vunpack.c.l.b16 %v3652
        %v3741 = vunpack.c.h.b16 %v3652
        %v3742 = vunpack.c.l.b16 %v3653
        %v3743 = vunpack.c.h.b16 %v3653
        %v3744 = vunpack.c.l.b16 %v3654
        %v3745 = vunpack.c.h.b16 %v3654
        %v3746 = vunpack.c.l.b16 %v3655
        %v3747 = vunpack.c.h.b16 %v3655
        %v3748 = vunpack.c.l.b16 %v3656
        %v3749 = vunpack.c.h.b16 %v3656
        %v3750 = vunpack.c.l.b16 %v3657
        %v3751 = vunpack.c.h.b16 %v3657
        %v3752 = vunpack.c.l.b16 %v3658
        %v3753 = vunpack.c.h.b16 %v3658
        %v3754 = vunpack.c.l.b16 %v3659
        %v3755 = vunpack.c.h.b16 %v3659
        %v3756 = vpack.c.b16 %v3696, %v3692
        %v3757 = vpack.c.b16 %v3697, %v3693
        %v3758 = vpack.c.b16 %v3698, %v3694
        %v3759 = vpack.c.b16 %v3699, %v3695
        %v3760 = vpack.c.b16 %v3704, %v3700
        %v3761 = vpack.c.b16 %v3705, %v3701
        %v3762 = vpack.c.b16 %v3706, %v3702
        %v3763 = vpack.c.b16 %v3707, %v3703
        %v3764 = vpack.c.b16 %v3712, %v3708
        %v3765 = vpack.c.b16 %v3713, %v3709
        %v3766 = vpack.c.b16 %v3714, %v3710
        %v3767 = vpack.c.b16 %v3715, %v3711
        %v3768 = vpack.c.b16 %v3720, %v3716
        %v3769 = vpack.c.b16 %v3721, %v3717
        %v3770 = vpack.c.b16 %v3722, %v3718
        %v3771 = vpack.c.b16 %v3723, %v3719
        %v3772 = vpack.c.b16 %v3728, %v3724
        %v3773 = vpack.c.b16 %v3729, %v3725
        %v3774 = vpack.c.b16 %v3730, %v3726
        %v3775 = vpack.c.b16 %v3731, %v3727
        %v3776 = vpack.c.b16 %v3736, %v3732
        %v3777 = vpack.c.b16 %v3737, %v3733
        %v3778 = vpack.c.b16 %v3738, %v3734
        %v3779 = vpack.c.b16 %v3739, %v3735
        %v3780 = vpack.c.b16 %v3744, %v3740
        %v3781 = vpack.c.b16 %v3745, %v3741
        %v3782 = vpack.c.b16 %v3746, %v3742
        %v3783 = vpack.c.b16 %v3747, %v3743
        %v3784 = vpack.c.b16 %v3752, %v3748
        %v3785 = vpack.c.b16 %v3753, %v3749
        %v3786 = vpack.c.b16 %v3754, %v3750
        %v3787 = vpack.c.b16 %v3755, %v3751
        %3820 = vmatprep.subr.bf16.mxu0 %v3757
        %3821 = vmatpush1.bf16.msra.mxu0 %v3756
        %3822 = vmatprep.subr.bf16.mxu0 %v3761
        %3823 = vmatpush1.bf16.msra.mxu0 %v3760
        %3824 = vmatprep.subr.bf16.mxu0 %v3765
        %3825 = vmatpush1.bf16.msra.mxu0 %v3764
        %3826 = vmatprep.subr.bf16.mxu0 %v3769
        %3827 = vmatpush1.bf16.msra.mxu0 %v3768
        %3828 = vmatprep.subr.bf16.mxu0 %v3773
        %3829 = vmatpush1.bf16.msra.mxu0 %v3772
        %3830 = vmatprep.subr.bf16.mxu0 %v3777
        %3831 = vmatpush1.bf16.msra.mxu0 %v3776
        %3832 = vmatprep.subr.bf16.mxu0 %v3781
        %3833 = vmatpush1.bf16.msra.mxu0 %v3780
        %3834 = vmatprep.subr.bf16.mxu0 %v3785
        %3835 = vmatpush1.bf16.msra.mxu0 %v3784
        %3836 = vmatprep.subr.bf16.mxu0 0
        %3837 = vmatpush1.bf16.msra.mxu0 0
        %3838 = vmatprep.subr.bf16.mxu0 0
        %3839 = vmatpush1.bf16.msra.mxu0 0
        %3840 = vmatprep.subr.bf16.mxu0 0
        %3841 = vmatpush1.bf16.msra.mxu0 0
        %3842 = vmatprep.subr.bf16.mxu0 0
        %3843 = vmatpush1.bf16.msra.mxu0 0
        %3844 = vmatprep.subr.bf16.mxu0 0
        %3845 = vmatpush1.bf16.msra.mxu0 0
        %3846 = vmatprep.subr.bf16.mxu0 0
        %3847 = vmatpush1.bf16.msra.mxu0 0
        %3848 = vmatprep.subr.bf16.mxu0 0
        %3849 = vmatpush1.bf16.msra.mxu0 0
        %3850 = vmatprep.subr.bf16.mxu0 0
        %3851 = vmatpush1.bf16.msra.mxu0 0
        %3852 = vmatprep.mubr.bf16.mxu0 0
        %3853 = vmatmul.mubr.bf16.gmra.mrb[0].mxu0 %v3627
        %v3854 = vpop.f32.mrb[0].mxu0
        %v3855 = vadd.f32 0.0, %v3854
        %v3856 = vpop.f32.mrb[0].mxu0
        %v3857 = vadd.f32 0.0, %v3856
        %v3858 = vpop.f32.mrb[0].mxu0
        %v3859 = vpop.f32.mrb[0].mxu0
        %3860 = vdwg.mxu0
        %3861 = vmatprep.subr.bf16.mxu0 %v3759
        %3862 = vmatpush1.bf16.msra.mxu0 %v3758
        %3863 = vmatprep.subr.bf16.mxu0 %v3763
        %3864 = vmatpush1.bf16.msra.mxu0 %v3762
        %3865 = vmatprep.subr.bf16.mxu0 %v3767
        %3866 = vmatpush1.bf16.msra.mxu0 %v3766
        %3867 = vmatprep.subr.bf16.mxu0 %v3771
        %3868 = vmatpush1.bf16.msra.mxu0 %v3770
        %3869 = vmatprep.subr.bf16.mxu0 %v3775
        %3870 = vmatpush1.bf16.msra.mxu0 %v3774
        %3871 = vmatprep.subr.bf16.mxu0 %v3779
        %3872 = vmatpush1.bf16.msra.mxu0 %v3778
        %3873 = vmatprep.subr.bf16.mxu0 %v3783
        %3874 = vmatpush1.bf16.msra.mxu0 %v3782
        %3875 = vmatprep.subr.bf16.mxu0 %v3787
        %3876 = vmatpush1.bf16.msra.mxu0 %v3786
        %3877 = vmatprep.subr.bf16.mxu0 0
        %3878 = vmatpush1.bf16.msra.mxu0 0
        %3879 = vmatprep.subr.bf16.mxu0 0
        %3880 = vmatpush1.bf16.msra.mxu0 0
        %3881 = vmatprep.subr.bf16.mxu0 0
        %3882 = vmatpush1.bf16.msra.mxu0 0
        %3883 = vmatprep.subr.bf16.mxu0 0
        %3884 = vmatpush1.bf16.msra.mxu0 0
        %3885 = vmatprep.subr.bf16.mxu0 0
        %3886 = vmatpush1.bf16.msra.mxu0 0
        %3887 = vmatprep.subr.bf16.mxu0 0
        %3888 = vmatpush1.bf16.msra.mxu0 0
        %3889 = vmatprep.subr.bf16.mxu0 0
        %3890 = vmatpush1.bf16.msra.mxu0 0
        %3891 = vmatprep.subr.bf16.mxu0 0
        %3892 = vmatpush1.bf16.msra.mxu0 0
        %3893 = vmatprep.mubr.bf16.mxu0 0
        %3894 = vmatmul.mubr.bf16.gmra.mrb[0].mxu0 %v3627
        %v3895 = vpop.f32.mrb[0].mxu0
        %v3896 = vadd.f32 0.0, %v3895
        %v3897 = vpop.f32.mrb[0].mxu0
        %v3898 = vadd.f32 0.0, %v3897
        %v3899 = vpop.f32.mrb[0].mxu0
        %v3900 = vpop.f32.mrb[0].mxu0
        %3901 = vdwg.mxu0
        %v3902 = vadd.f32 %v3623, %v3855
        %v3903 = vadd.f32 %v3624, %v3857
        %v3904 = vadd.f32 %v3625, %v3896
        %v3905 = vadd.f32 %v3626, %v3898
        %v3906 = vxor.u32 %v3902, 2147483648
        %v3907 = vmul.f32 %v3906, 1.442695
        %v3908 = vpow.pop %v3907
        %v3909 = vadd.f32 %v3908, 1.0
        %v3910 = vrcp.pop %v3909
        %v3911 = vmul.f32 1.0, %v3910
        %v3912 = vxor.u32 %v3903, 2147483648
        %v3913 = vmul.f32 %v3912, 1.442695
        %v3914 = vpow.pop %v3913
        %v3915 = vadd.f32 %v3914, 1.0
        %v3916 = vrcp.pop %v3915
        %v3917 = vmul.f32 1.0, %v3916
        %v3918 = vtanh.pop %v3904
        %v3919 = vxor.u32 %v3905, 2147483648
        %v3920 = vmul.f32 %v3919, 1.442695
        %v3921 = vpow.pop %v3920
        %v3922 = vadd.f32 %v3921, 1.0
        %v3923 = vrcp.pop %v3922
        %v3924 = vmul.f32 1.0, %v3923
        %v3925 = vmul.f32 %v3917, %v3617
        %v3926 = vmul.f32 %v3911, %v3918
        %v3927 = vadd.f32 %v3925, %v3926
        %v3928 = vtanh.pop %v3927
        %v3929 = vmul.f32 %v3924, %v3928
        %s3930 = scalar_lea.vmem %s290, 72 [#allocation9]
        %3931 = vst [vmem:[%s3930] sm:$0xff] %v3929
        %s3932 = scalar_lea.vmem [#allocation2], 320
        %v3933 = vld [vmem:[%s3932] sm:$0xff]
        %v3934 = vld [vmem:[%s3932 + $0x8] sm:$0xff]
        %v3935 = vld [vmem:[%s3932 + $0x10] sm:$0xff]
        %v3936 = vld [vmem:[%s3932 + $0x18] sm:$0xff]
        %v3937 = vpack.c.bf16 %v3929, %v3929
        %v3938 = vld [vmem:[#allocation8] sm:$0xff]
        %v3939 = vld [vmem:[#allocation8 + $0x8] sm:$0xff]
        %v3940 = vld [vmem:[#allocation8 + $0x10] sm:$0xff]
        %v3941 = vld [vmem:[#allocation8 + $0x18] sm:$0xff]
        %v3942 = vld [vmem:[#allocation8 + $0x20] sm:$0xff]
        %v3943 = vld [vmem:[#allocation8 + $0x28] sm:$0xff]
        %v3944 = vld [vmem:[#allocation8 + $0x30] sm:$0xff]
        %v3945 = vld [vmem:[#allocation8 + $0x38] sm:$0xff]
        %v3946 = vld [vmem:[#allocation8 + $0x40] sm:$0xff]
        %v3947 = vld [vmem:[#allocation8 + $0x48] sm:$0xff]
        %v3948 = vld [vmem:[#allocation8 + $0x50] sm:$0xff]
        %v3949 = vld [vmem:[#allocation8 + $0x58] sm:$0xff]
        %v3950 = vld [vmem:[#allocation8 + $0x60] sm:$0xff]
        %v3951 = vld [vmem:[#allocation8 + $0x68] sm:$0xff]
        %v3952 = vld [vmem:[#allocation8 + $0x70] sm:$0xff]
        %v3953 = vld [vmem:[#allocation8 + $0x78] sm:$0xff]
        %v3954 = vld [vmem:[#allocation8 + $0x80] sm:$0xff]
        %v3955 = vld [vmem:[#allocation8 + $0x88] sm:$0xff]
        %v3956 = vld [vmem:[#allocation8 + $0x90] sm:$0xff]
        %v3957 = vld [vmem:[#allocation8 + $0x98] sm:$0xff]
        %v3958 = vld [vmem:[#allocation8 + $0xa0] sm:$0xff]
        %v3959 = vld [vmem:[#allocation8 + $0xa8] sm:$0xff]
        %v3960 = vld [vmem:[#allocation8 + $0xb0] sm:$0xff]
        %v3961 = vld [vmem:[#allocation8 + $0xb8] sm:$0xff]
        %v3962 = vld [vmem:[#allocation8 + $0xc0] sm:$0xff]
        %v3963 = vld [vmem:[#allocation8 + $0xc8] sm:$0xff]
        %v3964 = vld [vmem:[#allocation8 + $0xd0] sm:$0xff]
        %v3965 = vld [vmem:[#allocation8 + $0xd8] sm:$0xff]
        %v3966 = vld [vmem:[#allocation8 + $0xe0] sm:$0xff]
        %v3967 = vld [vmem:[#allocation8 + $0xe8] sm:$0xff]
        %v3968 = vld [vmem:[#allocation8 + $0xf0] sm:$0xff]
        %v3969 = vld [vmem:[#allocation8 + $0xf8] sm:$0xff]
        %v4002 = vunpack.c.l.b16 %v3938
        %v4003 = vunpack.c.h.b16 %v3938
        %v4004 = vunpack.c.l.b16 %v3939
        %v4005 = vunpack.c.h.b16 %v3939
        %v4006 = vunpack.c.l.b16 %v3940
        %v4007 = vunpack.c.h.b16 %v3940
        %v4008 = vunpack.c.l.b16 %v3941
        %v4009 = vunpack.c.h.b16 %v3941
        %v4010 = vunpack.c.l.b16 %v3942
        %v4011 = vunpack.c.h.b16 %v3942
        %v4012 = vunpack.c.l.b16 %v3943
        %v4013 = vunpack.c.h.b16 %v3943
        %v4014 = vunpack.c.l.b16 %v3944
        %v4015 = vunpack.c.h.b16 %v3944
        %v4016 = vunpack.c.l.b16 %v3945
        %v4017 = vunpack.c.h.b16 %v3945
        %v4018 = vunpack.c.l.b16 %v3946
        %v4019 = vunpack.c.h.b16 %v3946
        %v4020 = vunpack.c.l.b16 %v3947
        %v4021 = vunpack.c.h.b16 %v3947
        %v4022 = vunpack.c.l.b16 %v3948
        %v4023 = vunpack.c.h.b16 %v3948
        %v4024 = vunpack.c.l.b16 %v3949
        %v4025 = vunpack.c.h.b16 %v3949
        %v4026 = vunpack.c.l.b16 %v3950
        %v4027 = vunpack.c.h.b16 %v3950
        %v4028 = vunpack.c.l.b16 %v3951
        %v4029 = vunpack.c.h.b16 %v3951
        %v4030 = vunpack.c.l.b16 %v3952
        %v4031 = vunpack.c.h.b16 %v3952
        %v4032 = vunpack.c.l.b16 %v3953
        %v4033 = vunpack.c.h.b16 %v3953
        %v4034 = vunpack.c.l.b16 %v3954
        %v4035 = vunpack.c.h.b16 %v3954
        %v4036 = vunpack.c.l.b16 %v3955
        %v4037 = vunpack.c.h.b16 %v3955
        %v4038 = vunpack.c.l.b16 %v3956
        %v4039 = vunpack.c.h.b16 %v3956
        %v4040 = vunpack.c.l.b16 %v3957
        %v4041 = vunpack.c.h.b16 %v3957
        %v4042 = vunpack.c.l.b16 %v3958
        %v4043 = vunpack.c.h.b16 %v3958
        %v4044 = vunpack.c.l.b16 %v3959
        %v4045 = vunpack.c.h.b16 %v3959
        %v4046 = vunpack.c.l.b16 %v3960
        %v4047 = vunpack.c.h.b16 %v3960
        %v4048 = vunpack.c.l.b16 %v3961
        %v4049 = vunpack.c.h.b16 %v3961
        %v4050 = vunpack.c.l.b16 %v3962
        %v4051 = vunpack.c.h.b16 %v3962
        %v4052 = vunpack.c.l.b16 %v3963
        %v4053 = vunpack.c.h.b16 %v3963
        %v4054 = vunpack.c.l.b16 %v3964
        %v4055 = vunpack.c.h.b16 %v3964
        %v4056 = vunpack.c.l.b16 %v3965
        %v4057 = vunpack.c.h.b16 %v3965
        %v4058 = vunpack.c.l.b16 %v3966
        %v4059 = vunpack.c.h.b16 %v3966
        %v4060 = vunpack.c.l.b16 %v3967
        %v4061 = vunpack.c.h.b16 %v3967
        %v4062 = vunpack.c.l.b16 %v3968
        %v4063 = vunpack.c.h.b16 %v3968
        %v4064 = vunpack.c.l.b16 %v3969
        %v4065 = vunpack.c.h.b16 %v3969
        %v4066 = vpack.c.b16 %v4006, %v4002
        %v4067 = vpack.c.b16 %v4007, %v4003
        %v4068 = vpack.c.b16 %v4008, %v4004
        %v4069 = vpack.c.b16 %v4009, %v4005
        %v4070 = vpack.c.b16 %v4014, %v4010
        %v4071 = vpack.c.b16 %v4015, %v4011
        %v4072 = vpack.c.b16 %v4016, %v4012
        %v4073 = vpack.c.b16 %v4017, %v4013
        %v4074 = vpack.c.b16 %v4022, %v4018
        %v4075 = vpack.c.b16 %v4023, %v4019
        %v4076 = vpack.c.b16 %v4024, %v4020
        %v4077 = vpack.c.b16 %v4025, %v4021
        %v4078 = vpack.c.b16 %v4030, %v4026
        %v4079 = vpack.c.b16 %v4031, %v4027
        %v4080 = vpack.c.b16 %v4032, %v4028
        %v4081 = vpack.c.b16 %v4033, %v4029
        %v4082 = vpack.c.b16 %v4038, %v4034
        %v4083 = vpack.c.b16 %v4039, %v4035
        %v4084 = vpack.c.b16 %v4040, %v4036
        %v4085 = vpack.c.b16 %v4041, %v4037
        %v4086 = vpack.c.b16 %v4046, %v4042
        %v4087 = vpack.c.b16 %v4047, %v4043
        %v4088 = vpack.c.b16 %v4048, %v4044
        %v4089 = vpack.c.b16 %v4049, %v4045
        %v4090 = vpack.c.b16 %v4054, %v4050
        %v4091 = vpack.c.b16 %v4055, %v4051
        %v4092 = vpack.c.b16 %v4056, %v4052
        %v4093 = vpack.c.b16 %v4057, %v4053
        %v4094 = vpack.c.b16 %v4062, %v4058
        %v4095 = vpack.c.b16 %v4063, %v4059
        %v4096 = vpack.c.b16 %v4064, %v4060
        %v4097 = vpack.c.b16 %v4065, %v4061
        %4130 = vmatprep.subr.bf16.mxu0 %v4067
        %4131 = vmatpush1.bf16.msra.mxu0 %v4066
        %4132 = vmatprep.subr.bf16.mxu0 %v4071
        %4133 = vmatpush1.bf16.msra.mxu0 %v4070
        %4134 = vmatprep.subr.bf16.mxu0 %v4075
        %4135 = vmatpush1.bf16.msra.mxu0 %v4074
        %4136 = vmatprep.subr.bf16.mxu0 %v4079
        %4137 = vmatpush1.bf16.msra.mxu0 %v4078
        %4138 = vmatprep.subr.bf16.mxu0 %v4083
        %4139 = vmatpush1.bf16.msra.mxu0 %v4082
        %4140 = vmatprep.subr.bf16.mxu0 %v4087
        %4141 = vmatpush1.bf16.msra.mxu0 %v4086
        %4142 = vmatprep.subr.bf16.mxu0 %v4091
        %4143 = vmatpush1.bf16.msra.mxu0 %v4090
        %4144 = vmatprep.subr.bf16.mxu0 %v4095
        %4145 = vmatpush1.bf16.msra.mxu0 %v4094
        %4146 = vmatprep.subr.bf16.mxu0 0
        %4147 = vmatpush1.bf16.msra.mxu0 0
        %4148 = vmatprep.subr.bf16.mxu0 0
        %4149 = vmatpush1.bf16.msra.mxu0 0
        %4150 = vmatprep.subr.bf16.mxu0 0
        %4151 = vmatpush1.bf16.msra.mxu0 0
        %4152 = vmatprep.subr.bf16.mxu0 0
        %4153 = vmatpush1.bf16.msra.mxu0 0
        %4154 = vmatprep.subr.bf16.mxu0 0
        %4155 = vmatpush1.bf16.msra.mxu0 0
        %4156 = vmatprep.subr.bf16.mxu0 0
        %4157 = vmatpush1.bf16.msra.mxu0 0
        %4158 = vmatprep.subr.bf16.mxu0 0
        %4159 = vmatpush1.bf16.msra.mxu0 0
        %4160 = vmatprep.subr.bf16.mxu0 0
        %4161 = vmatpush1.bf16.msra.mxu0 0
        %4162 = vmatprep.mubr.bf16.mxu0 0
        %4163 = vmatmul.mubr.bf16.gmra.mrb[0].mxu0 %v3937
        %v4164 = vpop.f32.mrb[0].mxu0
        %v4165 = vadd.f32 0.0, %v4164
        %v4166 = vpop.f32.mrb[0].mxu0
        %v4167 = vadd.f32 0.0, %v4166
        %v4168 = vpop.f32.mrb[0].mxu0
        %v4169 = vpop.f32.mrb[0].mxu0
        %4170 = vdwg.mxu0
        %4171 = vmatprep.subr.bf16.mxu0 %v4069
        %4172 = vmatpush1.bf16.msra.mxu0 %v4068
        %4173 = vmatprep.subr.bf16.mxu0 %v4073
        %4174 = vmatpush1.bf16.msra.mxu0 %v4072
        %4175 = vmatprep.subr.bf16.mxu0 %v4077
        %4176 = vmatpush1.bf16.msra.mxu0 %v4076
        %4177 = vmatprep.subr.bf16.mxu0 %v4081
        %4178 = vmatpush1.bf16.msra.mxu0 %v4080
        %4179 = vmatprep.subr.bf16.mxu0 %v4085
        %4180 = vmatpush1.bf16.msra.mxu0 %v4084
        %4181 = vmatprep.subr.bf16.mxu0 %v4089
        %4182 = vmatpush1.bf16.msra.mxu0 %v4088
        %4183 = vmatprep.subr.bf16.mxu0 %v4093
        %4184 = vmatpush1.bf16.msra.mxu0 %v4092
        %4185 = vmatprep.subr.bf16.mxu0 %v4097
        %4186 = vmatpush1.bf16.msra.mxu0 %v4096
        %4187 = vmatprep.subr.bf16.mxu0 0
        %4188 = vmatpush1.bf16.msra.mxu0 0
        %4189 = vmatprep.subr.bf16.mxu0 0
        %4190 = vmatpush1.bf16.msra.mxu0 0
        %4191 = vmatprep.subr.bf16.mxu0 0
        %4192 = vmatpush1.bf16.msra.mxu0 0
        %4193 = vmatprep.subr.bf16.mxu0 0
        %4194 = vmatpush1.bf16.msra.mxu0 0
        %4195 = vmatprep.subr.bf16.mxu0 0
        %4196 = vmatpush1.bf16.msra.mxu0 0
        %4197 = vmatprep.subr.bf16.mxu0 0
        %4198 = vmatpush1.bf16.msra.mxu0 0
        %4199 = vmatprep.subr.bf16.mxu0 0
        %4200 = vmatpush1.bf16.msra.mxu0 0
        %4201 = vmatprep.subr.bf16.mxu0 0
        %4202 = vmatpush1.bf16.msra.mxu0 0
        %4203 = vmatprep.mubr.bf16.mxu0 0
        %4204 = vmatmul.mubr.bf16.gmra.mrb[0].mxu0 %v3937
        %v4205 = vpop.f32.mrb[0].mxu0
        %v4206 = vadd.f32 0.0, %v4205
        %v4207 = vpop.f32.mrb[0].mxu0
        %v4208 = vadd.f32 0.0, %v4207
        %v4209 = vpop.f32.mrb[0].mxu0
        %v4210 = vpop.f32.mrb[0].mxu0
        %4211 = vdwg.mxu0
        %v4212 = vadd.f32 %v3933, %v4165
        %v4213 = vadd.f32 %v3934, %v4167
        %v4214 = vadd.f32 %v3935, %v4206
        %v4215 = vadd.f32 %v3936, %v4208
        %v4216 = vxor.u32 %v4212, 2147483648
        %v4217 = vmul.f32 %v4216, 1.442695
        %v4218 = vpow.pop %v4217
        %v4219 = vadd.f32 %v4218, 1.0
        %v4220 = vrcp.pop %v4219
        %v4221 = vmul.f32 1.0, %v4220
        %v4222 = vxor.u32 %v4213, 2147483648
        %v4223 = vmul.f32 %v4222, 1.442695
        %v4224 = vpow.pop %v4223
        %v4225 = vadd.f32 %v4224, 1.0
        %v4226 = vrcp.pop %v4225
        %v4227 = vmul.f32 1.0, %v4226
        %v4228 = vtanh.pop %v4214
        %v4229 = vxor.u32 %v4215, 2147483648
        %v4230 = vmul.f32 %v4229, 1.442695
        %v4231 = vpow.pop %v4230
        %v4232 = vadd.f32 %v4231, 1.0
        %v4233 = vrcp.pop %v4232
        %v4234 = vmul.f32 1.0, %v4233
        %v4235 = vmul.f32 %v4227, %v3927
        %v4236 = vmul.f32 %v4221, %v4228
        %v4237 = vadd.f32 %v4235, %v4236
        %v4238 = vtanh.pop %v4237
        %v4239 = vmul.f32 %v4234, %v4238
        %s4240 = scalar_lea.vmem %s290, 80 [#allocation9]
        %4241 = vst [vmem:[%s4240] sm:$0xff] %v4239
        %s4242 = scalar_lea.vmem [#allocation2], 352
        %v4243 = vld [vmem:[%s4242] sm:$0xff]
        %v4244 = vld [vmem:[%s4242 + $0x8] sm:$0xff]
        %v4245 = vld [vmem:[%s4242 + $0x10] sm:$0xff]
        %v4246 = vld [vmem:[%s4242 + $0x18] sm:$0xff]
        %v4247 = vpack.c.bf16 %v4239, %v4239
        %v4248 = vld [vmem:[#allocation8] sm:$0xff]
        %v4249 = vld [vmem:[#allocation8 + $0x8] sm:$0xff]
        %v4250 = vld [vmem:[#allocation8 + $0x10] sm:$0xff]
        %v4251 = vld [vmem:[#allocation8 + $0x18] sm:$0xff]
        %v4252 = vld [vmem:[#allocation8 + $0x20] sm:$0xff]
        %v4253 = vld [vmem:[#allocation8 + $0x28] sm:$0xff]
        %v4254 = vld [vmem:[#allocation8 + $0x30] sm:$0xff]
        %v4255 = vld [vmem:[#allocation8 + $0x38] sm:$0xff]
        %v4256 = vld [vmem:[#allocation8 + $0x40] sm:$0xff]
        %v4257 = vld [vmem:[#allocation8 + $0x48] sm:$0xff]
        %v4258 = vld [vmem:[#allocation8 + $0x50] sm:$0xff]
        %v4259 = vld [vmem:[#allocation8 + $0x58] sm:$0xff]
        %v4260 = vld [vmem:[#allocation8 + $0x60] sm:$0xff]
        %v4261 = vld [vmem:[#allocation8 + $0x68] sm:$0xff]
        %v4262 = vld [vmem:[#allocation8 + $0x70] sm:$0xff]
        %v4263 = vld [vmem:[#allocation8 + $0x78] sm:$0xff]
        %v4264 = vld [vmem:[#allocation8 + $0x80] sm:$0xff]
        %v4265 = vld [vmem:[#allocation8 + $0x88] sm:$0xff]
        %v4266 = vld [vmem:[#allocation8 + $0x90] sm:$0xff]
        %v4267 = vld [vmem:[#allocation8 + $0x98] sm:$0xff]
        %v4268 = vld [vmem:[#allocation8 + $0xa0] sm:$0xff]
        %v4269 = vld [vmem:[#allocation8 + $0xa8] sm:$0xff]
        %v4270 = vld [vmem:[#allocation8 + $0xb0] sm:$0xff]
        %v4271 = vld [vmem:[#allocation8 + $0xb8] sm:$0xff]
        %v4272 = vld [vmem:[#allocation8 + $0xc0] sm:$0xff]
        %v4273 = vld [vmem:[#allocation8 + $0xc8] sm:$0xff]
        %v4274 = vld [vmem:[#allocation8 + $0xd0] sm:$0xff]
        %v4275 = vld [vmem:[#allocation8 + $0xd8] sm:$0xff]
        %v4276 = vld [vmem:[#allocation8 + $0xe0] sm:$0xff]
        %v4277 = vld [vmem:[#allocation8 + $0xe8] sm:$0xff]
        %v4278 = vld [vmem:[#allocation8 + $0xf0] sm:$0xff]
        %v4279 = vld [vmem:[#allocation8 + $0xf8] sm:$0xff]
        %v4312 = vunpack.c.l.b16 %v4248
        %v4313 = vunpack.c.h.b16 %v4248
        %v4314 = vunpack.c.l.b16 %v4249
        %v4315 = vunpack.c.h.b16 %v4249
        %v4316 = vunpack.c.l.b16 %v4250
        %v4317 = vunpack.c.h.b16 %v4250
        %v4318 = vunpack.c.l.b16 %v4251
        %v4319 = vunpack.c.h.b16 %v4251
        %v4320 = vunpack.c.l.b16 %v4252
        %v4321 = vunpack.c.h.b16 %v4252
        %v4322 = vunpack.c.l.b16 %v4253
        %v4323 = vunpack.c.h.b16 %v4253
        %v4324 = vunpack.c.l.b16 %v4254
        %v4325 = vunpack.c.h.b16 %v4254
        %v4326 = vunpack.c.l.b16 %v4255
        %v4327 = vunpack.c.h.b16 %v4255
        %v4328 = vunpack.c.l.b16 %v4256
        %v4329 = vunpack.c.h.b16 %v4256
        %v4330 = vunpack.c.l.b16 %v4257
        %v4331 = vunpack.c.h.b16 %v4257
        %v4332 = vunpack.c.l.b16 %v4258
        %v4333 = vunpack.c.h.b16 %v4258
        %v4334 = vunpack.c.l.b16 %v4259
        %v4335 = vunpack.c.h.b16 %v4259
        %v4336 = vunpack.c.l.b16 %v4260
        %v4337 = vunpack.c.h.b16 %v4260
        %v4338 = vunpack.c.l.b16 %v4261
        %v4339 = vunpack.c.h.b16 %v4261
        %v4340 = vunpack.c.l.b16 %v4262
        %v4341 = vunpack.c.h.b16 %v4262
        %v4342 = vunpack.c.l.b16 %v4263
        %v4343 = vunpack.c.h.b16 %v4263
        %v4344 = vunpack.c.l.b16 %v4264
        %v4345 = vunpack.c.h.b16 %v4264
        %v4346 = vunpack.c.l.b16 %v4265
        %v4347 = vunpack.c.h.b16 %v4265
        %v4348 = vunpack.c.l.b16 %v4266
        %v4349 = vunpack.c.h.b16 %v4266
        %v4350 = vunpack.c.l.b16 %v4267
        %v4351 = vunpack.c.h.b16 %v4267
        %v4352 = vunpack.c.l.b16 %v4268
        %v4353 = vunpack.c.h.b16 %v4268
        %v4354 = vunpack.c.l.b16 %v4269
        %v4355 = vunpack.c.h.b16 %v4269
        %v4356 = vunpack.c.l.b16 %v4270
        %v4357 = vunpack.c.h.b16 %v4270
        %v4358 = vunpack.c.l.b16 %v4271
        %v4359 = vunpack.c.h.b16 %v4271
        %v4360 = vunpack.c.l.b16 %v4272
        %v4361 = vunpack.c.h.b16 %v4272
        %v4362 = vunpack.c.l.b16 %v4273
        %v4363 = vunpack.c.h.b16 %v4273
        %v4364 = vunpack.c.l.b16 %v4274
        %v4365 = vunpack.c.h.b16 %v4274
        %v4366 = vunpack.c.l.b16 %v4275
        %v4367 = vunpack.c.h.b16 %v4275
        %v4368 = vunpack.c.l.b16 %v4276
        %v4369 = vunpack.c.h.b16 %v4276
        %v4370 = vunpack.c.l.b16 %v4277
        %v4371 = vunpack.c.h.b16 %v4277
        %v4372 = vunpack.c.l.b16 %v4278
        %v4373 = vunpack.c.h.b16 %v4278
        %v4374 = vunpack.c.l.b16 %v4279
        %v4375 = vunpack.c.h.b16 %v4279
        %v4376 = vpack.c.b16 %v4316, %v4312
        %v4377 = vpack.c.b16 %v4317, %v4313
        %v4378 = vpack.c.b16 %v4318, %v4314
        %v4379 = vpack.c.b16 %v4319, %v4315
        %v4380 = vpack.c.b16 %v4324, %v4320
        %v4381 = vpack.c.b16 %v4325, %v4321
        %v4382 = vpack.c.b16 %v4326, %v4322
        %v4383 = vpack.c.b16 %v4327, %v4323
        %v4384 = vpack.c.b16 %v4332, %v4328
        %v4385 = vpack.c.b16 %v4333, %v4329
        %v4386 = vpack.c.b16 %v4334, %v4330
        %v4387 = vpack.c.b16 %v4335, %v4331
        %v4388 = vpack.c.b16 %v4340, %v4336
        %v4389 = vpack.c.b16 %v4341, %v4337
        %v4390 = vpack.c.b16 %v4342, %v4338
        %v4391 = vpack.c.b16 %v4343, %v4339
        %v4392 = vpack.c.b16 %v4348, %v4344
        %v4393 = vpack.c.b16 %v4349, %v4345
        %v4394 = vpack.c.b16 %v4350, %v4346
        %v4395 = vpack.c.b16 %v4351, %v4347
        %v4396 = vpack.c.b16 %v4356, %v4352
        %v4397 = vpack.c.b16 %v4357, %v4353
        %v4398 = vpack.c.b16 %v4358, %v4354
        %v4399 = vpack.c.b16 %v4359, %v4355
        %v4400 = vpack.c.b16 %v4364, %v4360
        %v4401 = vpack.c.b16 %v4365, %v4361
        %v4402 = vpack.c.b16 %v4366, %v4362
        %v4403 = vpack.c.b16 %v4367, %v4363
        %v4404 = vpack.c.b16 %v4372, %v4368
        %v4405 = vpack.c.b16 %v4373, %v4369
        %v4406 = vpack.c.b16 %v4374, %v4370
        %v4407 = vpack.c.b16 %v4375, %v4371
        %4440 = vmatprep.subr.bf16.mxu0 %v4377
        %4441 = vmatpush1.bf16.msra.mxu0 %v4376
        %4442 = vmatprep.subr.bf16.mxu0 %v4381
        %4443 = vmatpush1.bf16.msra.mxu0 %v4380
        %4444 = vmatprep.subr.bf16.mxu0 %v4385
        %4445 = vmatpush1.bf16.msra.mxu0 %v4384
        %4446 = vmatprep.subr.bf16.mxu0 %v4389
        %4447 = vmatpush1.bf16.msra.mxu0 %v4388
        %4448 = vmatprep.subr.bf16.mxu0 %v4393
        %4449 = vmatpush1.bf16.msra.mxu0 %v4392
        %4450 = vmatprep.subr.bf16.mxu0 %v4397
        %4451 = vmatpush1.bf16.msra.mxu0 %v4396
        %4452 = vmatprep.subr.bf16.mxu0 %v4401
        %4453 = vmatpush1.bf16.msra.mxu0 %v4400
        %4454 = vmatprep.subr.bf16.mxu0 %v4405
        %4455 = vmatpush1.bf16.msra.mxu0 %v4404
        %4456 = vmatprep.subr.bf16.mxu0 0
        %4457 = vmatpush1.bf16.msra.mxu0 0
        %4458 = vmatprep.subr.bf16.mxu0 0
        %4459 = vmatpush1.bf16.msra.mxu0 0
        %4460 = vmatprep.subr.bf16.mxu0 0
        %4461 = vmatpush1.bf16.msra.mxu0 0
        %4462 = vmatprep.subr.bf16.mxu0 0
        %4463 = vmatpush1.bf16.msra.mxu0 0
        %4464 = vmatprep.subr.bf16.mxu0 0
        %4465 = vmatpush1.bf16.msra.mxu0 0
        %4466 = vmatprep.subr.bf16.mxu0 0
        %4467 = vmatpush1.bf16.msra.mxu0 0
        %4468 = vmatprep.subr.bf16.mxu0 0
        %4469 = vmatpush1.bf16.msra.mxu0 0
        %4470 = vmatprep.subr.bf16.mxu0 0
        %4471 = vmatpush1.bf16.msra.mxu0 0
        %4472 = vmatprep.mubr.bf16.mxu0 0
        %4473 = vmatmul.mubr.bf16.gmra.mrb[0].mxu0 %v4247
        %v4474 = vpop.f32.mrb[0].mxu0
        %v4475 = vadd.f32 0.0, %v4474
        %v4476 = vpop.f32.mrb[0].mxu0
        %v4477 = vadd.f32 0.0, %v4476
        %v4478 = vpop.f32.mrb[0].mxu0
        %v4479 = vpop.f32.mrb[0].mxu0
        %4480 = vdwg.mxu0
        %4481 = vmatprep.subr.bf16.mxu0 %v4379
        %4482 = vmatpush1.bf16.msra.mxu0 %v4378
        %4483 = vmatprep.subr.bf16.mxu0 %v4383
        %4484 = vmatpush1.bf16.msra.mxu0 %v4382
        %4485 = vmatprep.subr.bf16.mxu0 %v4387
        %4486 = vmatpush1.bf16.msra.mxu0 %v4386
        %4487 = vmatprep.subr.bf16.mxu0 %v4391
        %4488 = vmatpush1.bf16.msra.mxu0 %v4390
        %4489 = vmatprep.subr.bf16.mxu0 %v4395
        %4490 = vmatpush1.bf16.msra.mxu0 %v4394
        %4491 = vmatprep.subr.bf16.mxu0 %v4399
        %4492 = vmatpush1.bf16.msra.mxu0 %v4398
        %4493 = vmatprep.subr.bf16.mxu0 %v4403
        %4494 = vmatpush1.bf16.msra.mxu0 %v4402
        %4495 = vmatprep.subr.bf16.mxu0 %v4407
        %4496 = vmatpush1.bf16.msra.mxu0 %v4406
        %4497 = vmatprep.subr.bf16.mxu0 0
        %4498 = vmatpush1.bf16.msra.mxu0 0
        %4499 = vmatprep.subr.bf16.mxu0 0
        %4500 = vmatpush1.bf16.msra.mxu0 0
        %4501 = vmatprep.subr.bf16.mxu0 0
        %4502 = vmatpush1.bf16.msra.mxu0 0
        %4503 = vmatprep.subr.bf16.mxu0 0
        %4504 = vmatpush1.bf16.msra.mxu0 0
        %4505 = vmatprep.subr.bf16.mxu0 0
        %4506 = vmatpush1.bf16.msra.mxu0 0
        %4507 = vmatprep.subr.bf16.mxu0 0
        %4508 = vmatpush1.bf16.msra.mxu0 0
        %4509 = vmatprep.subr.bf16.mxu0 0
        %4510 = vmatpush1.bf16.msra.mxu0 0
        %4511 = vmatprep.subr.bf16.mxu0 0
        %4512 = vmatpush1.bf16.msra.mxu0 0
        %4513 = vmatprep.mubr.bf16.mxu0 0
        %4514 = vmatmul.mubr.bf16.gmra.mrb[0].mxu0 %v4247
        %v4515 = vpop.f32.mrb[0].mxu0
        %v4516 = vadd.f32 0.0, %v4515
        %v4517 = vpop.f32.mrb[0].mxu0
        %v4518 = vadd.f32 0.0, %v4517
        %v4519 = vpop.f32.mrb[0].mxu0
        %v4520 = vpop.f32.mrb[0].mxu0
        %4521 = vdwg.mxu0
        %v4522 = vadd.f32 %v4243, %v4475
        %v4523 = vadd.f32 %v4244, %v4477
        %v4524 = vadd.f32 %v4245, %v4516
        %v4525 = vadd.f32 %v4246, %v4518
        %v4526 = vxor.u32 %v4522, 2147483648
        %v4527 = vmul.f32 %v4526, 1.442695
        %v4528 = vpow.pop %v4527
        %v4529 = vadd.f32 %v4528, 1.0
        %v4530 = vrcp.pop %v4529
        %v4531 = vmul.f32 1.0, %v4530
        %v4532 = vxor.u32 %v4523, 2147483648
        %v4533 = vmul.f32 %v4532, 1.442695
        %v4534 = vpow.pop %v4533
        %v4535 = vadd.f32 %v4534, 1.0
        %v4536 = vrcp.pop %v4535
        %v4537 = vmul.f32 1.0, %v4536
        %v4538 = vtanh.pop %v4524
        %v4539 = vxor.u32 %v4525, 2147483648
        %v4540 = vmul.f32 %v4539, 1.442695
        %v4541 = vpow.pop %v4540
        %v4542 = vadd.f32 %v4541, 1.0
        %v4543 = vrcp.pop %v4542
        %v4544 = vmul.f32 1.0, %v4543
        %v4545 = vmul.f32 %v4537, %v4237
        %v4546 = vmul.f32 %v4531, %v4538
        %v4547 = vadd.f32 %v4545, %v4546
        %v4548 = vtanh.pop %v4547
        %v4549 = vmul.f32 %v4544, %v4548
        %s4550 = scalar_lea.vmem %s290, 88 [#allocation9]
        %4551 = vst [vmem:[%s4550] sm:$0xff] %v4549
        %s4552 = scalar_lea.vmem [#allocation2], 384
        %v4553 = vld [vmem:[%s4552] sm:$0xff]
        %v4554 = vld [vmem:[%s4552 + $0x8] sm:$0xff]
        %v4555 = vld [vmem:[%s4552 + $0x10] sm:$0xff]
        %v4556 = vld [vmem:[%s4552 + $0x18] sm:$0xff]
        %v4557 = vpack.c.bf16 %v4549, %v4549
        %v4558 = vld [vmem:[#allocation8] sm:$0xff]
        %v4559 = vld [vmem:[#allocation8 + $0x8] sm:$0xff]
        %v4560 = vld [vmem:[#allocation8 + $0x10] sm:$0xff]
        %v4561 = vld [vmem:[#allocation8 + $0x18] sm:$0xff]
        %v4562 = vld [vmem:[#allocation8 + $0x20] sm:$0xff]
        %v4563 = vld [vmem:[#allocation8 + $0x28] sm:$0xff]
        %v4564 = vld [vmem:[#allocation8 + $0x30] sm:$0xff]
        %v4565 = vld [vmem:[#allocation8 + $0x38] sm:$0xff]
        %v4566 = vld [vmem:[#allocation8 + $0x40] sm:$0xff]
        %v4567 = vld [vmem:[#allocation8 + $0x48] sm:$0xff]
        %v4568 = vld [vmem:[#allocation8 + $0x50] sm:$0xff]
        %v4569 = vld [vmem:[#allocation8 + $0x58] sm:$0xff]
        %v4570 = vld [vmem:[#allocation8 + $0x60] sm:$0xff]
        %v4571 = vld [vmem:[#allocation8 + $0x68] sm:$0xff]
        %v4572 = vld [vmem:[#allocation8 + $0x70] sm:$0xff]
        %v4573 = vld [vmem:[#allocation8 + $0x78] sm:$0xff]
        %v4574 = vld [vmem:[#allocation8 + $0x80] sm:$0xff]
        %v4575 = vld [vmem:[#allocation8 + $0x88] sm:$0xff]
        %v4576 = vld [vmem:[#allocation8 + $0x90] sm:$0xff]
        %v4577 = vld [vmem:[#allocation8 + $0x98] sm:$0xff]
        %v4578 = vld [vmem:[#allocation8 + $0xa0] sm:$0xff]
        %v4579 = vld [vmem:[#allocation8 + $0xa8] sm:$0xff]
        %v4580 = vld [vmem:[#allocation8 + $0xb0] sm:$0xff]
        %v4581 = vld [vmem:[#allocation8 + $0xb8] sm:$0xff]
        %v4582 = vld [vmem:[#allocation8 + $0xc0] sm:$0xff]
        %v4583 = vld [vmem:[#allocation8 + $0xc8] sm:$0xff]
        %v4584 = vld [vmem:[#allocation8 + $0xd0] sm:$0xff]
        %v4585 = vld [vmem:[#allocation8 + $0xd8] sm:$0xff]
        %v4586 = vld [vmem:[#allocation8 + $0xe0] sm:$0xff]
        %v4587 = vld [vmem:[#allocation8 + $0xe8] sm:$0xff]
        %v4588 = vld [vmem:[#allocation8 + $0xf0] sm:$0xff]
        %v4589 = vld [vmem:[#allocation8 + $0xf8] sm:$0xff]
        %v4622 = vunpack.c.l.b16 %v4558
        %v4623 = vunpack.c.h.b16 %v4558
        %v4624 = vunpack.c.l.b16 %v4559
        %v4625 = vunpack.c.h.b16 %v4559
        %v4626 = vunpack.c.l.b16 %v4560
        %v4627 = vunpack.c.h.b16 %v4560
        %v4628 = vunpack.c.l.b16 %v4561
        %v4629 = vunpack.c.h.b16 %v4561
        %v4630 = vunpack.c.l.b16 %v4562
        %v4631 = vunpack.c.h.b16 %v4562
        %v4632 = vunpack.c.l.b16 %v4563
        %v4633 = vunpack.c.h.b16 %v4563
        %v4634 = vunpack.c.l.b16 %v4564
        %v4635 = vunpack.c.h.b16 %v4564
        %v4636 = vunpack.c.l.b16 %v4565
        %v4637 = vunpack.c.h.b16 %v4565
        %v4638 = vunpack.c.l.b16 %v4566
        %v4639 = vunpack.c.h.b16 %v4566
        %v4640 = vunpack.c.l.b16 %v4567
        %v4641 = vunpack.c.h.b16 %v4567
        %v4642 = vunpack.c.l.b16 %v4568
        %v4643 = vunpack.c.h.b16 %v4568
        %v4644 = vunpack.c.l.b16 %v4569
        %v4645 = vunpack.c.h.b16 %v4569
        %v4646 = vunpack.c.l.b16 %v4570
        %v4647 = vunpack.c.h.b16 %v4570
        %v4648 = vunpack.c.l.b16 %v4571
        %v4649 = vunpack.c.h.b16 %v4571
        %v4650 = vunpack.c.l.b16 %v4572
        %v4651 = vunpack.c.h.b16 %v4572
        %v4652 = vunpack.c.l.b16 %v4573
        %v4653 = vunpack.c.h.b16 %v4573
        %v4654 = vunpack.c.l.b16 %v4574
        %v4655 = vunpack.c.h.b16 %v4574
        %v4656 = vunpack.c.l.b16 %v4575
        %v4657 = vunpack.c.h.b16 %v4575
        %v4658 = vunpack.c.l.b16 %v4576
        %v4659 = vunpack.c.h.b16 %v4576
        %v4660 = vunpack.c.l.b16 %v4577
        %v4661 = vunpack.c.h.b16 %v4577
        %v4662 = vunpack.c.l.b16 %v4578
        %v4663 = vunpack.c.h.b16 %v4578
        %v4664 = vunpack.c.l.b16 %v4579
        %v4665 = vunpack.c.h.b16 %v4579
        %v4666 = vunpack.c.l.b16 %v4580
        %v4667 = vunpack.c.h.b16 %v4580
        %v4668 = vunpack.c.l.b16 %v4581
        %v4669 = vunpack.c.h.b16 %v4581
        %v4670 = vunpack.c.l.b16 %v4582
        %v4671 = vunpack.c.h.b16 %v4582
        %v4672 = vunpack.c.l.b16 %v4583
        %v4673 = vunpack.c.h.b16 %v4583
        %v4674 = vunpack.c.l.b16 %v4584
        %v4675 = vunpack.c.h.b16 %v4584
        %v4676 = vunpack.c.l.b16 %v4585
        %v4677 = vunpack.c.h.b16 %v4585
        %v4678 = vunpack.c.l.b16 %v4586
        %v4679 = vunpack.c.h.b16 %v4586
        %v4680 = vunpack.c.l.b16 %v4587
        %v4681 = vunpack.c.h.b16 %v4587
        %v4682 = vunpack.c.l.b16 %v4588
        %v4683 = vunpack.c.h.b16 %v4588
        %v4684 = vunpack.c.l.b16 %v4589
        %v4685 = vunpack.c.h.b16 %v4589
        %v4686 = vpack.c.b16 %v4626, %v4622
        %v4687 = vpack.c.b16 %v4627, %v4623
        %v4688 = vpack.c.b16 %v4628, %v4624
        %v4689 = vpack.c.b16 %v4629, %v4625
        %v4690 = vpack.c.b16 %v4634, %v4630
        %v4691 = vpack.c.b16 %v4635, %v4631
        %v4692 = vpack.c.b16 %v4636, %v4632
        %v4693 = vpack.c.b16 %v4637, %v4633
        %v4694 = vpack.c.b16 %v4642, %v4638
        %v4695 = vpack.c.b16 %v4643, %v4639
        %v4696 = vpack.c.b16 %v4644, %v4640
        %v4697 = vpack.c.b16 %v4645, %v4641
        %v4698 = vpack.c.b16 %v4650, %v4646
        %v4699 = vpack.c.b16 %v4651, %v4647
        %v4700 = vpack.c.b16 %v4652, %v4648
        %v4701 = vpack.c.b16 %v4653, %v4649
        %v4702 = vpack.c.b16 %v4658, %v4654
        %v4703 = vpack.c.b16 %v4659, %v4655
        %v4704 = vpack.c.b16 %v4660, %v4656
        %v4705 = vpack.c.b16 %v4661, %v4657
        %v4706 = vpack.c.b16 %v4666, %v4662
        %v4707 = vpack.c.b16 %v4667, %v4663
        %v4708 = vpack.c.b16 %v4668, %v4664
        %v4709 = vpack.c.b16 %v4669, %v4665
        %v4710 = vpack.c.b16 %v4674, %v4670
        %v4711 = vpack.c.b16 %v4675, %v4671
        %v4712 = vpack.c.b16 %v4676, %v4672
        %v4713 = vpack.c.b16 %v4677, %v4673
        %v4714 = vpack.c.b16 %v4682, %v4678
        %v4715 = vpack.c.b16 %v4683, %v4679
        %v4716 = vpack.c.b16 %v4684, %v4680
        %v4717 = vpack.c.b16 %v4685, %v4681
        %4750 = vmatprep.subr.bf16.mxu0 %v4687
        %4751 = vmatpush1.bf16.msra.mxu0 %v4686
        %4752 = vmatprep.subr.bf16.mxu0 %v4691
        %4753 = vmatpush1.bf16.msra.mxu0 %v4690
        %4754 = vmatprep.subr.bf16.mxu0 %v4695
        %4755 = vmatpush1.bf16.msra.mxu0 %v4694
        %4756 = vmatprep.subr.bf16.mxu0 %v4699
        %4757 = vmatpush1.bf16.msra.mxu0 %v4698
        %4758 = vmatprep.subr.bf16.mxu0 %v4703
        %4759 = vmatpush1.bf16.msra.mxu0 %v4702
        %4760 = vmatprep.subr.bf16.mxu0 %v4707
        %4761 = vmatpush1.bf16.msra.mxu0 %v4706
        %4762 = vmatprep.subr.bf16.mxu0 %v4711
        %4763 = vmatpush1.bf16.msra.mxu0 %v4710
        %4764 = vmatprep.subr.bf16.mxu0 %v4715
        %4765 = vmatpush1.bf16.msra.mxu0 %v4714
        %4766 = vmatprep.subr.bf16.mxu0 0
        %4767 = vmatpush1.bf16.msra.mxu0 0
        %4768 = vmatprep.subr.bf16.mxu0 0
        %4769 = vmatpush1.bf16.msra.mxu0 0
        %4770 = vmatprep.subr.bf16.mxu0 0
        %4771 = vmatpush1.bf16.msra.mxu0 0
        %4772 = vmatprep.subr.bf16.mxu0 0
        %4773 = vmatpush1.bf16.msra.mxu0 0
        %4774 = vmatprep.subr.bf16.mxu0 0
        %4775 = vmatpush1.bf16.msra.mxu0 0
        %4776 = vmatprep.subr.bf16.mxu0 0
        %4777 = vmatpush1.bf16.msra.mxu0 0
        %4778 = vmatprep.subr.bf16.mxu0 0
        %4779 = vmatpush1.bf16.msra.mxu0 0
        %4780 = vmatprep.subr.bf16.mxu0 0
        %4781 = vmatpush1.bf16.msra.mxu0 0
        %4782 = vmatprep.mubr.bf16.mxu0 0
        %4783 = vmatmul.mubr.bf16.gmra.mrb[0].mxu0 %v4557
        %v4784 = vpop.f32.mrb[0].mxu0
        %v4785 = vadd.f32 0.0, %v4784
        %v4786 = vpop.f32.mrb[0].mxu0
        %v4787 = vadd.f32 0.0, %v4786
        %v4788 = vpop.f32.mrb[0].mxu0
        %v4789 = vpop.f32.mrb[0].mxu0
        %4790 = vdwg.mxu0
        %4791 = vmatprep.subr.bf16.mxu0 %v4689
        %4792 = vmatpush1.bf16.msra.mxu0 %v4688
        %4793 = vmatprep.subr.bf16.mxu0 %v4693
        %4794 = vmatpush1.bf16.msra.mxu0 %v4692
        %4795 = vmatprep.subr.bf16.mxu0 %v4697
        %4796 = vmatpush1.bf16.msra.mxu0 %v4696
        %4797 = vmatprep.subr.bf16.mxu0 %v4701
        %4798 = vmatpush1.bf16.msra.mxu0 %v4700
        %4799 = vmatprep.subr.bf16.mxu0 %v4705
        %4800 = vmatpush1.bf16.msra.mxu0 %v4704
        %4801 = vmatprep.subr.bf16.mxu0 %v4709
        %4802 = vmatpush1.bf16.msra.mxu0 %v4708
        %4803 = vmatprep.subr.bf16.mxu0 %v4713
        %4804 = vmatpush1.bf16.msra.mxu0 %v4712
        %4805 = vmatprep.subr.bf16.mxu0 %v4717
        %4806 = vmatpush1.bf16.msra.mxu0 %v4716
        %4807 = vmatprep.subr.bf16.mxu0 0
        %4808 = vmatpush1.bf16.msra.mxu0 0
        %4809 = vmatprep.subr.bf16.mxu0 0
        %4810 = vmatpush1.bf16.msra.mxu0 0
        %4811 = vmatprep.subr.bf16.mxu0 0
        %4812 = vmatpush1.bf16.msra.mxu0 0
        %4813 = vmatprep.subr.bf16.mxu0 0
        %4814 = vmatpush1.bf16.msra.mxu0 0
        %4815 = vmatprep.subr.bf16.mxu0 0
        %4816 = vmatpush1.bf16.msra.mxu0 0
        %4817 = vmatprep.subr.bf16.mxu0 0
        %4818 = vmatpush1.bf16.msra.mxu0 0
        %4819 = vmatprep.subr.bf16.mxu0 0
        %4820 = vmatpush1.bf16.msra.mxu0 0
        %4821 = vmatprep.subr.bf16.mxu0 0
        %4822 = vmatpush1.bf16.msra.mxu0 0
        %4823 = vmatprep.mubr.bf16.mxu0 0
        %4824 = vmatmul.mubr.bf16.gmra.mrb[0].mxu0 %v4557
        %v4825 = vpop.f32.mrb[0].mxu0
        %v4826 = vadd.f32 0.0, %v4825
        %v4827 = vpop.f32.mrb[0].mxu0
        %v4828 = vadd.f32 0.0, %v4827
        %v4829 = vpop.f32.mrb[0].mxu0
        %v4830 = vpop.f32.mrb[0].mxu0
        %4831 = vdwg.mxu0
        %v4832 = vadd.f32 %v4553, %v4785
        %v4833 = vadd.f32 %v4554, %v4787
        %v4834 = vadd.f32 %v4555, %v4826
        %v4835 = vadd.f32 %v4556, %v4828
        %v4836 = vxor.u32 %v4832, 2147483648
        %v4837 = vmul.f32 %v4836, 1.442695
        %v4838 = vpow.pop %v4837
        %v4839 = vadd.f32 %v4838, 1.0
        %v4840 = vrcp.pop %v4839
        %v4841 = vmul.f32 1.0, %v4840
        %v4842 = vxor.u32 %v4833, 2147483648
        %v4843 = vmul.f32 %v4842, 1.442695
        %v4844 = vpow.pop %v4843
        %v4845 = vadd.f32 %v4844, 1.0
        %v4846 = vrcp.pop %v4845
        %v4847 = vmul.f32 1.0, %v4846
        %v4848 = vtanh.pop %v4834
        %v4849 = vxor.u32 %v4835, 2147483648
        %v4850 = vmul.f32 %v4849, 1.442695
        %v4851 = vpow.pop %v4850
        %v4852 = vadd.f32 %v4851, 1.0
        %v4853 = vrcp.pop %v4852
        %v4854 = vmul.f32 1.0, %v4853
        %v4855 = vmul.f32 %v4847, %v4547
        %v4856 = vmul.f32 %v4841, %v4848
        %v4857 = vadd.f32 %v4855, %v4856
        %v4858 = vtanh.pop %v4857
        %v4859 = vmul.f32 %v4854, %v4858
        %s4860 = scalar_lea.vmem %s290, 96 [#allocation9]
        %4861 = vst [vmem:[%s4860] sm:$0xff] %v4859
        %s4862 = scalar_lea.vmem [#allocation2], 416
        %v4863 = vld [vmem:[%s4862] sm:$0xff]
        %v4864 = vld [vmem:[%s4862 + $0x8] sm:$0xff]
        %v4865 = vld [vmem:[%s4862 + $0x10] sm:$0xff]
        %v4866 = vld [vmem:[%s4862 + $0x18] sm:$0xff]
        %v4867 = vpack.c.bf16 %v4859, %v4859
        %v4868 = vld [vmem:[#allocation8] sm:$0xff]
        %v4869 = vld [vmem:[#allocation8 + $0x8] sm:$0xff]
        %v4870 = vld [vmem:[#allocation8 + $0x10] sm:$0xff]
        %v4871 = vld [vmem:[#allocation8 + $0x18] sm:$0xff]
        %v4872 = vld [vmem:[#allocation8 + $0x20] sm:$0xff]
        %v4873 = vld [vmem:[#allocation8 + $0x28] sm:$0xff]
        %v4874 = vld [vmem:[#allocation8 + $0x30] sm:$0xff]
        %v4875 = vld [vmem:[#allocation8 + $0x38] sm:$0xff]
        %v4876 = vld [vmem:[#allocation8 + $0x40] sm:$0xff]
        %v4877 = vld [vmem:[#allocation8 + $0x48] sm:$0xff]
        %v4878 = vld [vmem:[#allocation8 + $0x50] sm:$0xff]
        %v4879 = vld [vmem:[#allocation8 + $0x58] sm:$0xff]
        %v4880 = vld [vmem:[#allocation8 + $0x60] sm:$0xff]
        %v4881 = vld [vmem:[#allocation8 + $0x68] sm:$0xff]
        %v4882 = vld [vmem:[#allocation8 + $0x70] sm:$0xff]
        %v4883 = vld [vmem:[#allocation8 + $0x78] sm:$0xff]
        %v4884 = vld [vmem:[#allocation8 + $0x80] sm:$0xff]
        %v4885 = vld [vmem:[#allocation8 + $0x88] sm:$0xff]
        %v4886 = vld [vmem:[#allocation8 + $0x90] sm:$0xff]
        %v4887 = vld [vmem:[#allocation8 + $0x98] sm:$0xff]
        %v4888 = vld [vmem:[#allocation8 + $0xa0] sm:$0xff]
        %v4889 = vld [vmem:[#allocation8 + $0xa8] sm:$0xff]
        %v4890 = vld [vmem:[#allocation8 + $0xb0] sm:$0xff]
        %v4891 = vld [vmem:[#allocation8 + $0xb8] sm:$0xff]
        %v4892 = vld [vmem:[#allocation8 + $0xc0] sm:$0xff]
        %v4893 = vld [vmem:[#allocation8 + $0xc8] sm:$0xff]
        %v4894 = vld [vmem:[#allocation8 + $0xd0] sm:$0xff]
        %v4895 = vld [vmem:[#allocation8 + $0xd8] sm:$0xff]
        %v4896 = vld [vmem:[#allocation8 + $0xe0] sm:$0xff]
        %v4897 = vld [vmem:[#allocation8 + $0xe8] sm:$0xff]
        %v4898 = vld [vmem:[#allocation8 + $0xf0] sm:$0xff]
        %v4899 = vld [vmem:[#allocation8 + $0xf8] sm:$0xff]
        %v4932 = vunpack.c.l.b16 %v4868
        %v4933 = vunpack.c.h.b16 %v4868
        %v4934 = vunpack.c.l.b16 %v4869
        %v4935 = vunpack.c.h.b16 %v4869
        %v4936 = vunpack.c.l.b16 %v4870
        %v4937 = vunpack.c.h.b16 %v4870
        %v4938 = vunpack.c.l.b16 %v4871
        %v4939 = vunpack.c.h.b16 %v4871
        %v4940 = vunpack.c.l.b16 %v4872
        %v4941 = vunpack.c.h.b16 %v4872
        %v4942 = vunpack.c.l.b16 %v4873
        %v4943 = vunpack.c.h.b16 %v4873
        %v4944 = vunpack.c.l.b16 %v4874
        %v4945 = vunpack.c.h.b16 %v4874
        %v4946 = vunpack.c.l.b16 %v4875
        %v4947 = vunpack.c.h.b16 %v4875
        %v4948 = vunpack.c.l.b16 %v4876
        %v4949 = vunpack.c.h.b16 %v4876
        %v4950 = vunpack.c.l.b16 %v4877
        %v4951 = vunpack.c.h.b16 %v4877
        %v4952 = vunpack.c.l.b16 %v4878
        %v4953 = vunpack.c.h.b16 %v4878
        %v4954 = vunpack.c.l.b16 %v4879
        %v4955 = vunpack.c.h.b16 %v4879
        %v4956 = vunpack.c.l.b16 %v4880
        %v4957 = vunpack.c.h.b16 %v4880
        %v4958 = vunpack.c.l.b16 %v4881
        %v4959 = vunpack.c.h.b16 %v4881
        %v4960 = vunpack.c.l.b16 %v4882
        %v4961 = vunpack.c.h.b16 %v4882
        %v4962 = vunpack.c.l.b16 %v4883
        %v4963 = vunpack.c.h.b16 %v4883
        %v4964 = vunpack.c.l.b16 %v4884
        %v4965 = vunpack.c.h.b16 %v4884
        %v4966 = vunpack.c.l.b16 %v4885
        %v4967 = vunpack.c.h.b16 %v4885
        %v4968 = vunpack.c.l.b16 %v4886
        %v4969 = vunpack.c.h.b16 %v4886
        %v4970 = vunpack.c.l.b16 %v4887
        %v4971 = vunpack.c.h.b16 %v4887
        %v4972 = vunpack.c.l.b16 %v4888
        %v4973 = vunpack.c.h.b16 %v4888
        %v4974 = vunpack.c.l.b16 %v4889
        %v4975 = vunpack.c.h.b16 %v4889
        %v4976 = vunpack.c.l.b16 %v4890
        %v4977 = vunpack.c.h.b16 %v4890
        %v4978 = vunpack.c.l.b16 %v4891
        %v4979 = vunpack.c.h.b16 %v4891
        %v4980 = vunpack.c.l.b16 %v4892
        %v4981 = vunpack.c.h.b16 %v4892
        %v4982 = vunpack.c.l.b16 %v4893
        %v4983 = vunpack.c.h.b16 %v4893
        %v4984 = vunpack.c.l.b16 %v4894
        %v4985 = vunpack.c.h.b16 %v4894
        %v4986 = vunpack.c.l.b16 %v4895
        %v4987 = vunpack.c.h.b16 %v4895
        %v4988 = vunpack.c.l.b16 %v4896
        %v4989 = vunpack.c.h.b16 %v4896
        %v4990 = vunpack.c.l.b16 %v4897
        %v4991 = vunpack.c.h.b16 %v4897
        %v4992 = vunpack.c.l.b16 %v4898
        %v4993 = vunpack.c.h.b16 %v4898
        %v4994 = vunpack.c.l.b16 %v4899
        %v4995 = vunpack.c.h.b16 %v4899
        %v4996 = vpack.c.b16 %v4936, %v4932
        %v4997 = vpack.c.b16 %v4937, %v4933
        %v4998 = vpack.c.b16 %v4938, %v4934
        %v4999 = vpack.c.b16 %v4939, %v4935
        %v5000 = vpack.c.b16 %v4944, %v4940
        %v5001 = vpack.c.b16 %v4945, %v4941
        %v5002 = vpack.c.b16 %v4946, %v4942
        %v5003 = vpack.c.b16 %v4947, %v4943
        %v5004 = vpack.c.b16 %v4952, %v4948
        %v5005 = vpack.c.b16 %v4953, %v4949
        %v5006 = vpack.c.b16 %v4954, %v4950
        %v5007 = vpack.c.b16 %v4955, %v4951
        %v5008 = vpack.c.b16 %v4960, %v4956
        %v5009 = vpack.c.b16 %v4961, %v4957
        %v5010 = vpack.c.b16 %v4962, %v4958
        %v5011 = vpack.c.b16 %v4963, %v4959
        %v5012 = vpack.c.b16 %v4968, %v4964
        %v5013 = vpack.c.b16 %v4969, %v4965
        %v5014 = vpack.c.b16 %v4970, %v4966
        %v5015 = vpack.c.b16 %v4971, %v4967
        %v5016 = vpack.c.b16 %v4976, %v4972
        %v5017 = vpack.c.b16 %v4977, %v4973
        %v5018 = vpack.c.b16 %v4978, %v4974
        %v5019 = vpack.c.b16 %v4979, %v4975
        %v5020 = vpack.c.b16 %v4984, %v4980
        %v5021 = vpack.c.b16 %v4985, %v4981
        %v5022 = vpack.c.b16 %v4986, %v4982
        %v5023 = vpack.c.b16 %v4987, %v4983
        %v5024 = vpack.c.b16 %v4992, %v4988
        %v5025 = vpack.c.b16 %v4993, %v4989
        %v5026 = vpack.c.b16 %v4994, %v4990
        %v5027 = vpack.c.b16 %v4995, %v4991
        %5060 = vmatprep.subr.bf16.mxu0 %v4997
        %5061 = vmatpush1.bf16.msra.mxu0 %v4996
        %5062 = vmatprep.subr.bf16.mxu0 %v5001
        %5063 = vmatpush1.bf16.msra.mxu0 %v5000
        %5064 = vmatprep.subr.bf16.mxu0 %v5005
        %5065 = vmatpush1.bf16.msra.mxu0 %v5004
        %5066 = vmatprep.subr.bf16.mxu0 %v5009
        %5067 = vmatpush1.bf16.msra.mxu0 %v5008
        %5068 = vmatprep.subr.bf16.mxu0 %v5013
        %5069 = vmatpush1.bf16.msra.mxu0 %v5012
        %5070 = vmatprep.subr.bf16.mxu0 %v5017
        %5071 = vmatpush1.bf16.msra.mxu0 %v5016
        %5072 = vmatprep.subr.bf16.mxu0 %v5021
        %5073 = vmatpush1.bf16.msra.mxu0 %v5020
        %5074 = vmatprep.subr.bf16.mxu0 %v5025
        %5075 = vmatpush1.bf16.msra.mxu0 %v5024
        %5076 = vmatprep.subr.bf16.mxu0 0
        %5077 = vmatpush1.bf16.msra.mxu0 0
        %5078 = vmatprep.subr.bf16.mxu0 0
        %5079 = vmatpush1.bf16.msra.mxu0 0
        %5080 = vmatprep.subr.bf16.mxu0 0
        %5081 = vmatpush1.bf16.msra.mxu0 0
        %5082 = vmatprep.subr.bf16.mxu0 0
        %5083 = vmatpush1.bf16.msra.mxu0 0
        %5084 = vmatprep.subr.bf16.mxu0 0
        %5085 = vmatpush1.bf16.msra.mxu0 0
        %5086 = vmatprep.subr.bf16.mxu0 0
        %5087 = vmatpush1.bf16.msra.mxu0 0
        %5088 = vmatprep.subr.bf16.mxu0 0
        %5089 = vmatpush1.bf16.msra.mxu0 0
        %5090 = vmatprep.subr.bf16.mxu0 0
        %5091 = vmatpush1.bf16.msra.mxu0 0
        %5092 = vmatprep.mubr.bf16.mxu0 0
        %5093 = vmatmul.mubr.bf16.gmra.mrb[0].mxu0 %v4867
        %v5094 = vpop.f32.mrb[0].mxu0
        %v5095 = vadd.f32 0.0, %v5094
        %v5096 = vpop.f32.mrb[0].mxu0
        %v5097 = vadd.f32 0.0, %v5096
        %v5098 = vpop.f32.mrb[0].mxu0
        %v5099 = vpop.f32.mrb[0].mxu0
        %5100 = vdwg.mxu0
        %5101 = vmatprep.subr.bf16.mxu0 %v4999
        %5102 = vmatpush1.bf16.msra.mxu0 %v4998
        %5103 = vmatprep.subr.bf16.mxu0 %v5003
        %5104 = vmatpush1.bf16.msra.mxu0 %v5002
        %5105 = vmatprep.subr.bf16.mxu0 %v5007
        %5106 = vmatpush1.bf16.msra.mxu0 %v5006
        %5107 = vmatprep.subr.bf16.mxu0 %v5011
        %5108 = vmatpush1.bf16.msra.mxu0 %v5010
        %5109 = vmatprep.subr.bf16.mxu0 %v5015
        %5110 = vmatpush1.bf16.msra.mxu0 %v5014
        %5111 = vmatprep.subr.bf16.mxu0 %v5019
        %5112 = vmatpush1.bf16.msra.mxu0 %v5018
        %5113 = vmatprep.subr.bf16.mxu0 %v5023
        %5114 = vmatpush1.bf16.msra.mxu0 %v5022
        %5115 = vmatprep.subr.bf16.mxu0 %v5027
        %5116 = vmatpush1.bf16.msra.mxu0 %v5026
        %5117 = vmatprep.subr.bf16.mxu0 0
        %5118 = vmatpush1.bf16.msra.mxu0 0
        %5119 = vmatprep.subr.bf16.mxu0 0
        %5120 = vmatpush1.bf16.msra.mxu0 0
        %5121 = vmatprep.subr.bf16.mxu0 0
        %5122 = vmatpush1.bf16.msra.mxu0 0
        %5123 = vmatprep.subr.bf16.mxu0 0
        %5124 = vmatpush1.bf16.msra.mxu0 0
        %5125 = vmatprep.subr.bf16.mxu0 0
        %5126 = vmatpush1.bf16.msra.mxu0 0
        %5127 = vmatprep.subr.bf16.mxu0 0
        %5128 = vmatpush1.bf16.msra.mxu0 0
        %5129 = vmatprep.subr.bf16.mxu0 0
        %5130 = vmatpush1.bf16.msra.mxu0 0
        %5131 = vmatprep.subr.bf16.mxu0 0
        %5132 = vmatpush1.bf16.msra.mxu0 0
        %5133 = vmatprep.mubr.bf16.mxu0 0
        %5134 = vmatmul.mubr.bf16.gmra.mrb[0].mxu0 %v4867
        %v5135 = vpop.f32.mrb[0].mxu0
        %v5136 = vadd.f32 0.0, %v5135
        %v5137 = vpop.f32.mrb[0].mxu0
        %v5138 = vadd.f32 0.0, %v5137
        %v5139 = vpop.f32.mrb[0].mxu0
        %v5140 = vpop.f32.mrb[0].mxu0
        %5141 = vdwg.mxu0
        %v5142 = vadd.f32 %v4863, %v5095
        %v5143 = vadd.f32 %v4864, %v5097
        %v5144 = vadd.f32 %v4865, %v5136
        %v5145 = vadd.f32 %v4866, %v5138
        %v5146 = vxor.u32 %v5142, 2147483648
        %v5147 = vmul.f32 %v5146, 1.442695
        %v5148 = vpow.pop %v5147
        %v5149 = vadd.f32 %v5148, 1.0
        %v5150 = vrcp.pop %v5149
        %v5151 = vmul.f32 1.0, %v5150
        %v5152 = vxor.u32 %v5143, 2147483648
        %v5153 = vmul.f32 %v5152, 1.442695
        %v5154 = vpow.pop %v5153
        %v5155 = vadd.f32 %v5154, 1.0
        %v5156 = vrcp.pop %v5155
        %v5157 = vmul.f32 1.0, %v5156
        %v5158 = vtanh.pop %v5144
        %v5159 = vxor.u32 %v5145, 2147483648
        %v5160 = vmul.f32 %v5159, 1.442695
        %v5161 = vpow.pop %v5160
        %v5162 = vadd.f32 %v5161, 1.0
        %v5163 = vrcp.pop %v5162
        %v5164 = vmul.f32 1.0, %v5163
        %v5165 = vmul.f32 %v5157, %v4857
        %v5166 = vmul.f32 %v5151, %v5158
        %v5167 = vadd.f32 %v5165, %v5166
        %v5168 = vtanh.pop %v5167
        %v5169 = vmul.f32 %v5164, %v5168
        %s5170 = scalar_lea.vmem %s290, 104 [#allocation9]
        %5171 = vst [vmem:[%s5170] sm:$0xff] %v5169
        %s5172 = scalar_lea.vmem [#allocation2], 448
        %v5173 = vld [vmem:[%s5172] sm:$0xff]
        %v5174 = vld [vmem:[%s5172 + $0x8] sm:$0xff]
        %v5175 = vld [vmem:[%s5172 + $0x10] sm:$0xff]
        %v5176 = vld [vmem:[%s5172 + $0x18] sm:$0xff]
        %v5177 = vpack.c.bf16 %v5169, %v5169
        %v5178 = vld [vmem:[#allocation8] sm:$0xff]
        %v5179 = vld [vmem:[#allocation8 + $0x8] sm:$0xff]
        %v5180 = vld [vmem:[#allocation8 + $0x10] sm:$0xff]
        %v5181 = vld [vmem:[#allocation8 + $0x18] sm:$0xff]
        %v5182 = vld [vmem:[#allocation8 + $0x20] sm:$0xff]
        %v5183 = vld [vmem:[#allocation8 + $0x28] sm:$0xff]
        %v5184 = vld [vmem:[#allocation8 + $0x30] sm:$0xff]
        %v5185 = vld [vmem:[#allocation8 + $0x38] sm:$0xff]
        %v5186 = vld [vmem:[#allocation8 + $0x40] sm:$0xff]
        %v5187 = vld [vmem:[#allocation8 + $0x48] sm:$0xff]
        %v5188 = vld [vmem:[#allocation8 + $0x50] sm:$0xff]
        %v5189 = vld [vmem:[#allocation8 + $0x58] sm:$0xff]
        %v5190 = vld [vmem:[#allocation8 + $0x60] sm:$0xff]
        %v5191 = vld [vmem:[#allocation8 + $0x68] sm:$0xff]
        %v5192 = vld [vmem:[#allocation8 + $0x70] sm:$0xff]
        %v5193 = vld [vmem:[#allocation8 + $0x78] sm:$0xff]
        %v5194 = vld [vmem:[#allocation8 + $0x80] sm:$0xff]
        %v5195 = vld [vmem:[#allocation8 + $0x88] sm:$0xff]
        %v5196 = vld [vmem:[#allocation8 + $0x90] sm:$0xff]
        %v5197 = vld [vmem:[#allocation8 + $0x98] sm:$0xff]
        %v5198 = vld [vmem:[#allocation8 + $0xa0] sm:$0xff]
        %v5199 = vld [vmem:[#allocation8 + $0xa8] sm:$0xff]
        %v5200 = vld [vmem:[#allocation8 + $0xb0] sm:$0xff]
        %v5201 = vld [vmem:[#allocation8 + $0xb8] sm:$0xff]
        %v5202 = vld [vmem:[#allocation8 + $0xc0] sm:$0xff]
        %v5203 = vld [vmem:[#allocation8 + $0xc8] sm:$0xff]
        %v5204 = vld [vmem:[#allocation8 + $0xd0] sm:$0xff]
        %v5205 = vld [vmem:[#allocation8 + $0xd8] sm:$0xff]
        %v5206 = vld [vmem:[#allocation8 + $0xe0] sm:$0xff]
        %v5207 = vld [vmem:[#allocation8 + $0xe8] sm:$0xff]
        %v5208 = vld [vmem:[#allocation8 + $0xf0] sm:$0xff]
        %v5209 = vld [vmem:[#allocation8 + $0xf8] sm:$0xff]
        %v5242 = vunpack.c.l.b16 %v5178
        %v5243 = vunpack.c.h.b16 %v5178
        %v5244 = vunpack.c.l.b16 %v5179
        %v5245 = vunpack.c.h.b16 %v5179
        %v5246 = vunpack.c.l.b16 %v5180
        %v5247 = vunpack.c.h.b16 %v5180
        %v5248 = vunpack.c.l.b16 %v5181
        %v5249 = vunpack.c.h.b16 %v5181
        %v5250 = vunpack.c.l.b16 %v5182
        %v5251 = vunpack.c.h.b16 %v5182
        %v5252 = vunpack.c.l.b16 %v5183
        %v5253 = vunpack.c.h.b16 %v5183
        %v5254 = vunpack.c.l.b16 %v5184
        %v5255 = vunpack.c.h.b16 %v5184
        %v5256 = vunpack.c.l.b16 %v5185
        %v5257 = vunpack.c.h.b16 %v5185
        %v5258 = vunpack.c.l.b16 %v5186
        %v5259 = vunpack.c.h.b16 %v5186
        %v5260 = vunpack.c.l.b16 %v5187
        %v5261 = vunpack.c.h.b16 %v5187
        %v5262 = vunpack.c.l.b16 %v5188
        %v5263 = vunpack.c.h.b16 %v5188
        %v5264 = vunpack.c.l.b16 %v5189
        %v5265 = vunpack.c.h.b16 %v5189
        %v5266 = vunpack.c.l.b16 %v5190
        %v5267 = vunpack.c.h.b16 %v5190
        %v5268 = vunpack.c.l.b16 %v5191
        %v5269 = vunpack.c.h.b16 %v5191
        %v5270 = vunpack.c.l.b16 %v5192
        %v5271 = vunpack.c.h.b16 %v5192
        %v5272 = vunpack.c.l.b16 %v5193
        %v5273 = vunpack.c.h.b16 %v5193
        %v5274 = vunpack.c.l.b16 %v5194
        %v5275 = vunpack.c.h.b16 %v5194
        %v5276 = vunpack.c.l.b16 %v5195
        %v5277 = vunpack.c.h.b16 %v5195
        %v5278 = vunpack.c.l.b16 %v5196
        %v5279 = vunpack.c.h.b16 %v5196
        %v5280 = vunpack.c.l.b16 %v5197
        %v5281 = vunpack.c.h.b16 %v5197
        %v5282 = vunpack.c.l.b16 %v5198
        %v5283 = vunpack.c.h.b16 %v5198
        %v5284 = vunpack.c.l.b16 %v5199
        %v5285 = vunpack.c.h.b16 %v5199
        %v5286 = vunpack.c.l.b16 %v5200
        %v5287 = vunpack.c.h.b16 %v5200
        %v5288 = vunpack.c.l.b16 %v5201
        %v5289 = vunpack.c.h.b16 %v5201
        %v5290 = vunpack.c.l.b16 %v5202
        %v5291 = vunpack.c.h.b16 %v5202
        %v5292 = vunpack.c.l.b16 %v5203
        %v5293 = vunpack.c.h.b16 %v5203
        %v5294 = vunpack.c.l.b16 %v5204
        %v5295 = vunpack.c.h.b16 %v5204
        %v5296 = vunpack.c.l.b16 %v5205
        %v5297 = vunpack.c.h.b16 %v5205
        %v5298 = vunpack.c.l.b16 %v5206
        %v5299 = vunpack.c.h.b16 %v5206
        %v5300 = vunpack.c.l.b16 %v5207
        %v5301 = vunpack.c.h.b16 %v5207
        %v5302 = vunpack.c.l.b16 %v5208
        %v5303 = vunpack.c.h.b16 %v5208
        %v5304 = vunpack.c.l.b16 %v5209
        %v5305 = vunpack.c.h.b16 %v5209
        %v5306 = vpack.c.b16 %v5246, %v5242
        %v5307 = vpack.c.b16 %v5247, %v5243
        %v5308 = vpack.c.b16 %v5248, %v5244
        %v5309 = vpack.c.b16 %v5249, %v5245
        %v5310 = vpack.c.b16 %v5254, %v5250
        %v5311 = vpack.c.b16 %v5255, %v5251
        %v5312 = vpack.c.b16 %v5256, %v5252
        %v5313 = vpack.c.b16 %v5257, %v5253
        %v5314 = vpack.c.b16 %v5262, %v5258
        %v5315 = vpack.c.b16 %v5263, %v5259
        %v5316 = vpack.c.b16 %v5264, %v5260
        %v5317 = vpack.c.b16 %v5265, %v5261
        %v5318 = vpack.c.b16 %v5270, %v5266
        %v5319 = vpack.c.b16 %v5271, %v5267
        %v5320 = vpack.c.b16 %v5272, %v5268
        %v5321 = vpack.c.b16 %v5273, %v5269
        %v5322 = vpack.c.b16 %v5278, %v5274
        %v5323 = vpack.c.b16 %v5279, %v5275
        %v5324 = vpack.c.b16 %v5280, %v5276
        %v5325 = vpack.c.b16 %v5281, %v5277
        %v5326 = vpack.c.b16 %v5286, %v5282
        %v5327 = vpack.c.b16 %v5287, %v5283
        %v5328 = vpack.c.b16 %v5288, %v5284
        %v5329 = vpack.c.b16 %v5289, %v5285
        %v5330 = vpack.c.b16 %v5294, %v5290
        %v5331 = vpack.c.b16 %v5295, %v5291
        %v5332 = vpack.c.b16 %v5296, %v5292
        %v5333 = vpack.c.b16 %v5297, %v5293
        %v5334 = vpack.c.b16 %v5302, %v5298
        %v5335 = vpack.c.b16 %v5303, %v5299
        %v5336 = vpack.c.b16 %v5304, %v5300
        %v5337 = vpack.c.b16 %v5305, %v5301
        %5370 = vmatprep.subr.bf16.mxu0 %v5307
        %5371 = vmatpush1.bf16.msra.mxu0 %v5306
        %5372 = vmatprep.subr.bf16.mxu0 %v5311
        %5373 = vmatpush1.bf16.msra.mxu0 %v5310
        %5374 = vmatprep.subr.bf16.mxu0 %v5315
        %5375 = vmatpush1.bf16.msra.mxu0 %v5314
        %5376 = vmatprep.subr.bf16.mxu0 %v5319
        %5377 = vmatpush1.bf16.msra.mxu0 %v5318
        %5378 = vmatprep.subr.bf16.mxu0 %v5323
        %5379 = vmatpush1.bf16.msra.mxu0 %v5322
        %5380 = vmatprep.subr.bf16.mxu0 %v5327
        %5381 = vmatpush1.bf16.msra.mxu0 %v5326
        %5382 = vmatprep.subr.bf16.mxu0 %v5331
        %5383 = vmatpush1.bf16.msra.mxu0 %v5330
        %5384 = vmatprep.subr.bf16.mxu0 %v5335
        %5385 = vmatpush1.bf16.msra.mxu0 %v5334
        %5386 = vmatprep.subr.bf16.mxu0 0
        %5387 = vmatpush1.bf16.msra.mxu0 0
        %5388 = vmatprep.subr.bf16.mxu0 0
        %5389 = vmatpush1.bf16.msra.mxu0 0
        %5390 = vmatprep.subr.bf16.mxu0 0
        %5391 = vmatpush1.bf16.msra.mxu0 0
        %5392 = vmatprep.subr.bf16.mxu0 0
        %5393 = vmatpush1.bf16.msra.mxu0 0
        %5394 = vmatprep.subr.bf16.mxu0 0
        %5395 = vmatpush1.bf16.msra.mxu0 0
        %5396 = vmatprep.subr.bf16.mxu0 0
        %5397 = vmatpush1.bf16.msra.mxu0 0
        %5398 = vmatprep.subr.bf16.mxu0 0
        %5399 = vmatpush1.bf16.msra.mxu0 0
        %5400 = vmatprep.subr.bf16.mxu0 0
        %5401 = vmatpush1.bf16.msra.mxu0 0
        %5402 = vmatprep.mubr.bf16.mxu0 0
        %5403 = vmatmul.mubr.bf16.gmra.mrb[0].mxu0 %v5177
        %v5404 = vpop.f32.mrb[0].mxu0
        %v5405 = vadd.f32 0.0, %v5404
        %v5406 = vpop.f32.mrb[0].mxu0
        %v5407 = vadd.f32 0.0, %v5406
        %v5408 = vpop.f32.mrb[0].mxu0
        %v5409 = vpop.f32.mrb[0].mxu0
        %5410 = vdwg.mxu0
        %5411 = vmatprep.subr.bf16.mxu0 %v5309
        %5412 = vmatpush1.bf16.msra.mxu0 %v5308
        %5413 = vmatprep.subr.bf16.mxu0 %v5313
        %5414 = vmatpush1.bf16.msra.mxu0 %v5312
        %5415 = vmatprep.subr.bf16.mxu0 %v5317
        %5416 = vmatpush1.bf16.msra.mxu0 %v5316
        %5417 = vmatprep.subr.bf16.mxu0 %v5321
        %5418 = vmatpush1.bf16.msra.mxu0 %v5320
        %5419 = vmatprep.subr.bf16.mxu0 %v5325
        %5420 = vmatpush1.bf16.msra.mxu0 %v5324
        %5421 = vmatprep.subr.bf16.mxu0 %v5329
        %5422 = vmatpush1.bf16.msra.mxu0 %v5328
        %5423 = vmatprep.subr.bf16.mxu0 %v5333
        %5424 = vmatpush1.bf16.msra.mxu0 %v5332
        %5425 = vmatprep.subr.bf16.mxu0 %v5337
        %5426 = vmatpush1.bf16.msra.mxu0 %v5336
        %5427 = vmatprep.subr.bf16.mxu0 0
        %5428 = vmatpush1.bf16.msra.mxu0 0
        %5429 = vmatprep.subr.bf16.mxu0 0
        %5430 = vmatpush1.bf16.msra.mxu0 0
        %5431 = vmatprep.subr.bf16.mxu0 0
        %5432 = vmatpush1.bf16.msra.mxu0 0
        %5433 = vmatprep.subr.bf16.mxu0 0
        %5434 = vmatpush1.bf16.msra.mxu0 0
        %5435 = vmatprep.subr.bf16.mxu0 0
        %5436 = vmatpush1.bf16.msra.mxu0 0
        %5437 = vmatprep.subr.bf16.mxu0 0
        %5438 = vmatpush1.bf16.msra.mxu0 0
        %5439 = vmatprep.subr.bf16.mxu0 0
        %5440 = vmatpush1.bf16.msra.mxu0 0
        %5441 = vmatprep.subr.bf16.mxu0 0
        %5442 = vmatpush1.bf16.msra.mxu0 0
        %5443 = vmatprep.mubr.bf16.mxu0 0
        %5444 = vmatmul.mubr.bf16.gmra.mrb[0].mxu0 %v5177
        %v5445 = vpop.f32.mrb[0].mxu0
        %v5446 = vadd.f32 0.0, %v5445
        %v5447 = vpop.f32.mrb[0].mxu0
        %v5448 = vadd.f32 0.0, %v5447
        %v5449 = vpop.f32.mrb[0].mxu0
        %v5450 = vpop.f32.mrb[0].mxu0
        %5451 = vdwg.mxu0
        %v5452 = vadd.f32 %v5173, %v5405
        %v5453 = vadd.f32 %v5174, %v5407
        %v5454 = vadd.f32 %v5175, %v5446
        %v5455 = vadd.f32 %v5176, %v5448
        %v5456 = vxor.u32 %v5452, 2147483648
        %v5457 = vmul.f32 %v5456, 1.442695
        %v5458 = vpow.pop %v5457
        %v5459 = vadd.f32 %v5458, 1.0
        %v5460 = vrcp.pop %v5459
        %v5461 = vmul.f32 1.0, %v5460
        %v5462 = vxor.u32 %v5453, 2147483648
        %v5463 = vmul.f32 %v5462, 1.442695
        %v5464 = vpow.pop %v5463
        %v5465 = vadd.f32 %v5464, 1.0
        %v5466 = vrcp.pop %v5465
        %v5467 = vmul.f32 1.0, %v5466
        %v5468 = vtanh.pop %v5454
        %v5469 = vxor.u32 %v5455, 2147483648
        %v5470 = vmul.f32 %v5469, 1.442695
        %v5471 = vpow.pop %v5470
        %v5472 = vadd.f32 %v5471, 1.0
        %v5473 = vrcp.pop %v5472
        %v5474 = vmul.f32 1.0, %v5473
        %v5475 = vmul.f32 %v5467, %v5167
        %v5476 = vmul.f32 %v5461, %v5468
        %v5477 = vadd.f32 %v5475, %v5476
        %v5478 = vtanh.pop %v5477
        %v5479 = vmul.f32 %v5474, %v5478
        %s5480 = scalar_lea.vmem %s290, 112 [#allocation9]
        %5481 = vst [vmem:[%s5480] sm:$0xff] %v5479
        %s5482 = scalar_lea.vmem [#allocation2], 480
        %v5483 = vld [vmem:[%s5482] sm:$0xff]
        %v5484 = vld [vmem:[%s5482 + $0x8] sm:$0xff]
        %v5485 = vld [vmem:[%s5482 + $0x10] sm:$0xff]
        %v5486 = vld [vmem:[%s5482 + $0x18] sm:$0xff]
        %v5487 = vpack.c.bf16 %v5479, %v5479
        %v5488 = vld [vmem:[#allocation8] sm:$0xff]
        %v5489 = vld [vmem:[#allocation8 + $0x8] sm:$0xff]
        %v5490 = vld [vmem:[#allocation8 + $0x10] sm:$0xff]
        %v5491 = vld [vmem:[#allocation8 + $0x18] sm:$0xff]
        %v5492 = vld [vmem:[#allocation8 + $0x20] sm:$0xff]
        %v5493 = vld [vmem:[#allocation8 + $0x28] sm:$0xff]
        %v5494 = vld [vmem:[#allocation8 + $0x30] sm:$0xff]
        %v5495 = vld [vmem:[#allocation8 + $0x38] sm:$0xff]
        %v5496 = vld [vmem:[#allocation8 + $0x40] sm:$0xff]
        %v5497 = vld [vmem:[#allocation8 + $0x48] sm:$0xff]
        %v5498 = vld [vmem:[#allocation8 + $0x50] sm:$0xff]
        %v5499 = vld [vmem:[#allocation8 + $0x58] sm:$0xff]
        %v5500 = vld [vmem:[#allocation8 + $0x60] sm:$0xff]
        %v5501 = vld [vmem:[#allocation8 + $0x68] sm:$0xff]
        %v5502 = vld [vmem:[#allocation8 + $0x70] sm:$0xff]
        %v5503 = vld [vmem:[#allocation8 + $0x78] sm:$0xff]
        %v5504 = vld [vmem:[#allocation8 + $0x80] sm:$0xff]
        %v5505 = vld [vmem:[#allocation8 + $0x88] sm:$0xff]
        %v5506 = vld [vmem:[#allocation8 + $0x90] sm:$0xff]
        %v5507 = vld [vmem:[#allocation8 + $0x98] sm:$0xff]
        %v5508 = vld [vmem:[#allocation8 + $0xa0] sm:$0xff]
        %v5509 = vld [vmem:[#allocation8 + $0xa8] sm:$0xff]
        %v5510 = vld [vmem:[#allocation8 + $0xb0] sm:$0xff]
        %v5511 = vld [vmem:[#allocation8 + $0xb8] sm:$0xff]
        %v5512 = vld [vmem:[#allocation8 + $0xc0] sm:$0xff]
        %v5513 = vld [vmem:[#allocation8 + $0xc8] sm:$0xff]
        %v5514 = vld [vmem:[#allocation8 + $0xd0] sm:$0xff]
        %v5515 = vld [vmem:[#allocation8 + $0xd8] sm:$0xff]
        %v5516 = vld [vmem:[#allocation8 + $0xe0] sm:$0xff]
        %v5517 = vld [vmem:[#allocation8 + $0xe8] sm:$0xff]
        %v5518 = vld [vmem:[#allocation8 + $0xf0] sm:$0xff]
        %v5519 = vld [vmem:[#allocation8 + $0xf8] sm:$0xff]
        %v5552 = vunpack.c.l.b16 %v5488
        %v5553 = vunpack.c.h.b16 %v5488
        %v5554 = vunpack.c.l.b16 %v5489
        %v5555 = vunpack.c.h.b16 %v5489
        %v5556 = vunpack.c.l.b16 %v5490
        %v5557 = vunpack.c.h.b16 %v5490
        %v5558 = vunpack.c.l.b16 %v5491
        %v5559 = vunpack.c.h.b16 %v5491
        %v5560 = vunpack.c.l.b16 %v5492
        %v5561 = vunpack.c.h.b16 %v5492
        %v5562 = vunpack.c.l.b16 %v5493
        %v5563 = vunpack.c.h.b16 %v5493
        %v5564 = vunpack.c.l.b16 %v5494
        %v5565 = vunpack.c.h.b16 %v5494
        %v5566 = vunpack.c.l.b16 %v5495
        %v5567 = vunpack.c.h.b16 %v5495
        %v5568 = vunpack.c.l.b16 %v5496
        %v5569 = vunpack.c.h.b16 %v5496
        %v5570 = vunpack.c.l.b16 %v5497
        %v5571 = vunpack.c.h.b16 %v5497
        %v5572 = vunpack.c.l.b16 %v5498
        %v5573 = vunpack.c.h.b16 %v5498
        %v5574 = vunpack.c.l.b16 %v5499
        %v5575 = vunpack.c.h.b16 %v5499
        %v5576 = vunpack.c.l.b16 %v5500
        %v5577 = vunpack.c.h.b16 %v5500
        %v5578 = vunpack.c.l.b16 %v5501
        %v5579 = vunpack.c.h.b16 %v5501
        %v5580 = vunpack.c.l.b16 %v5502
        %v5581 = vunpack.c.h.b16 %v5502
        %v5582 = vunpack.c.l.b16 %v5503
        %v5583 = vunpack.c.h.b16 %v5503
        %v5584 = vunpack.c.l.b16 %v5504
        %v5585 = vunpack.c.h.b16 %v5504
        %v5586 = vunpack.c.l.b16 %v5505
        %v5587 = vunpack.c.h.b16 %v5505
        %v5588 = vunpack.c.l.b16 %v5506
        %v5589 = vunpack.c.h.b16 %v5506
        %v5590 = vunpack.c.l.b16 %v5507
        %v5591 = vunpack.c.h.b16 %v5507
        %v5592 = vunpack.c.l.b16 %v5508
        %v5593 = vunpack.c.h.b16 %v5508
        %v5594 = vunpack.c.l.b16 %v5509
        %v5595 = vunpack.c.h.b16 %v5509
        %v5596 = vunpack.c.l.b16 %v5510
        %v5597 = vunpack.c.h.b16 %v5510
        %v5598 = vunpack.c.l.b16 %v5511
        %v5599 = vunpack.c.h.b16 %v5511
        %v5600 = vunpack.c.l.b16 %v5512
        %v5601 = vunpack.c.h.b16 %v5512
        %v5602 = vunpack.c.l.b16 %v5513
        %v5603 = vunpack.c.h.b16 %v5513
        %v5604 = vunpack.c.l.b16 %v5514
        %v5605 = vunpack.c.h.b16 %v5514
        %v5606 = vunpack.c.l.b16 %v5515
        %v5607 = vunpack.c.h.b16 %v5515
        %v5608 = vunpack.c.l.b16 %v5516
        %v5609 = vunpack.c.h.b16 %v5516
        %v5610 = vunpack.c.l.b16 %v5517
        %v5611 = vunpack.c.h.b16 %v5517
        %v5612 = vunpack.c.l.b16 %v5518
        %v5613 = vunpack.c.h.b16 %v5518
        %v5614 = vunpack.c.l.b16 %v5519
        %v5615 = vunpack.c.h.b16 %v5519
        %v5616 = vpack.c.b16 %v5556, %v5552
        %v5617 = vpack.c.b16 %v5557, %v5553
        %v5618 = vpack.c.b16 %v5558, %v5554
        %v5619 = vpack.c.b16 %v5559, %v5555
        %v5620 = vpack.c.b16 %v5564, %v5560
        %v5621 = vpack.c.b16 %v5565, %v5561
        %v5622 = vpack.c.b16 %v5566, %v5562
        %v5623 = vpack.c.b16 %v5567, %v5563
        %v5624 = vpack.c.b16 %v5572, %v5568
        %v5625 = vpack.c.b16 %v5573, %v5569
        %v5626 = vpack.c.b16 %v5574, %v5570
        %v5627 = vpack.c.b16 %v5575, %v5571
        %v5628 = vpack.c.b16 %v5580, %v5576
        %v5629 = vpack.c.b16 %v5581, %v5577
        %v5630 = vpack.c.b16 %v5582, %v5578
        %v5631 = vpack.c.b16 %v5583, %v5579
        %v5632 = vpack.c.b16 %v5588, %v5584
        %v5633 = vpack.c.b16 %v5589, %v5585
        %v5634 = vpack.c.b16 %v5590, %v5586
        %v5635 = vpack.c.b16 %v5591, %v5587
        %v5636 = vpack.c.b16 %v5596, %v5592
        %v5637 = vpack.c.b16 %v5597, %v5593
        %v5638 = vpack.c.b16 %v5598, %v5594
        %v5639 = vpack.c.b16 %v5599, %v5595
        %v5640 = vpack.c.b16 %v5604, %v5600
        %v5641 = vpack.c.b16 %v5605, %v5601
        %v5642 = vpack.c.b16 %v5606, %v5602
        %v5643 = vpack.c.b16 %v5607, %v5603
        %v5644 = vpack.c.b16 %v5612, %v5608
        %v5645 = vpack.c.b16 %v5613, %v5609
        %v5646 = vpack.c.b16 %v5614, %v5610
        %v5647 = vpack.c.b16 %v5615, %v5611
        %5680 = vmatprep.subr.bf16.mxu0 %v5617
        %5681 = vmatpush1.bf16.msra.mxu0 %v5616
        %5682 = vmatprep.subr.bf16.mxu0 %v5621
        %5683 = vmatpush1.bf16.msra.mxu0 %v5620
        %5684 = vmatprep.subr.bf16.mxu0 %v5625
        %5685 = vmatpush1.bf16.msra.mxu0 %v5624
        %5686 = vmatprep.subr.bf16.mxu0 %v5629
        %5687 = vmatpush1.bf16.msra.mxu0 %v5628
        %5688 = vmatprep.subr.bf16.mxu0 %v5633
        %5689 = vmatpush1.bf16.msra.mxu0 %v5632
        %5690 = vmatprep.subr.bf16.mxu0 %v5637
        %5691 = vmatpush1.bf16.msra.mxu0 %v5636
        %5692 = vmatprep.subr.bf16.mxu0 %v5641
        %5693 = vmatpush1.bf16.msra.mxu0 %v5640
        %5694 = vmatprep.subr.bf16.mxu0 %v5645
        %5695 = vmatpush1.bf16.msra.mxu0 %v5644
        %5696 = vmatprep.subr.bf16.mxu0 0
        %5697 = vmatpush1.bf16.msra.mxu0 0
        %5698 = vmatprep.subr.bf16.mxu0 0
        %5699 = vmatpush1.bf16.msra.mxu0 0
        %5700 = vmatprep.subr.bf16.mxu0 0
        %5701 = vmatpush1.bf16.msra.mxu0 0
        %5702 = vmatprep.subr.bf16.mxu0 0
        %5703 = vmatpush1.bf16.msra.mxu0 0
        %5704 = vmatprep.subr.bf16.mxu0 0
        %5705 = vmatpush1.bf16.msra.mxu0 0
        %5706 = vmatprep.subr.bf16.mxu0 0
        %5707 = vmatpush1.bf16.msra.mxu0 0
        %5708 = vmatprep.subr.bf16.mxu0 0
        %5709 = vmatpush1.bf16.msra.mxu0 0
        %5710 = vmatprep.subr.bf16.mxu0 0
        %5711 = vmatpush1.bf16.msra.mxu0 0
        %5712 = vmatprep.mubr.bf16.mxu0 0
        %5713 = vmatmul.mubr.bf16.gmra.mrb[0].mxu0 %v5487
        %v5714 = vpop.f32.mrb[0].mxu0
        %v5715 = vadd.f32 0.0, %v5714
        %v5716 = vpop.f32.mrb[0].mxu0
        %v5717 = vadd.f32 0.0, %v5716
        %v5718 = vpop.f32.mrb[0].mxu0
        %v5719 = vpop.f32.mrb[0].mxu0
        %5720 = vdwg.mxu0
        %5721 = vmatprep.subr.bf16.mxu0 %v5619
        %5722 = vmatpush1.bf16.msra.mxu0 %v5618
        %5723 = vmatprep.subr.bf16.mxu0 %v5623
        %5724 = vmatpush1.bf16.msra.mxu0 %v5622
        %5725 = vmatprep.subr.bf16.mxu0 %v5627
        %5726 = vmatpush1.bf16.msra.mxu0 %v5626
        %5727 = vmatprep.subr.bf16.mxu0 %v5631
        %5728 = vmatpush1.bf16.msra.mxu0 %v5630
        %5729 = vmatprep.subr.bf16.mxu0 %v5635
        %5730 = vmatpush1.bf16.msra.mxu0 %v5634
        %5731 = vmatprep.subr.bf16.mxu0 %v5639
        %5732 = vmatpush1.bf16.msra.mxu0 %v5638
        %5733 = vmatprep.subr.bf16.mxu0 %v5643
        %5734 = vmatpush1.bf16.msra.mxu0 %v5642
        %5735 = vmatprep.subr.bf16.mxu0 %v5647
        %5736 = vmatpush1.bf16.msra.mxu0 %v5646
        %5737 = vmatprep.subr.bf16.mxu0 0
        %5738 = vmatpush1.bf16.msra.mxu0 0
        %5739 = vmatprep.subr.bf16.mxu0 0
        %5740 = vmatpush1.bf16.msra.mxu0 0
        %5741 = vmatprep.subr.bf16.mxu0 0
        %5742 = vmatpush1.bf16.msra.mxu0 0
        %5743 = vmatprep.subr.bf16.mxu0 0
        %5744 = vmatpush1.bf16.msra.mxu0 0
        %5745 = vmatprep.subr.bf16.mxu0 0
        %5746 = vmatpush1.bf16.msra.mxu0 0
        %5747 = vmatprep.subr.bf16.mxu0 0
        %5748 = vmatpush1.bf16.msra.mxu0 0
        %5749 = vmatprep.subr.bf16.mxu0 0
        %5750 = vmatpush1.bf16.msra.mxu0 0
        %5751 = vmatprep.subr.bf16.mxu0 0
        %5752 = vmatpush1.bf16.msra.mxu0 0
        %5753 = vmatprep.mubr.bf16.mxu0 0
        %5754 = vmatmul.mubr.bf16.gmra.mrb[0].mxu0 %v5487
        %v5755 = vpop.f32.mrb[0].mxu0
        %v5756 = vadd.f32 0.0, %v5755
        %v5757 = vpop.f32.mrb[0].mxu0
        %v5758 = vadd.f32 0.0, %v5757
        %v5759 = vpop.f32.mrb[0].mxu0
        %v5760 = vpop.f32.mrb[0].mxu0
        %5761 = vdwg.mxu0
        %v5762 = vadd.f32 %v5483, %v5715
        %v5763 = vadd.f32 %v5484, %v5717
        %v5764 = vadd.f32 %v5485, %v5756
        %v5765 = vadd.f32 %v5486, %v5758
        %v5766 = vxor.u32 %v5762, 2147483648
        %v5767 = vmul.f32 %v5766, 1.442695
        %v5768 = vpow.pop %v5767
        %v5769 = vadd.f32 %v5768, 1.0
        %v5770 = vrcp.pop %v5769
        %v5771 = vmul.f32 1.0, %v5770
        %v5772 = vxor.u32 %v5763, 2147483648
        %v5773 = vmul.f32 %v5772, 1.442695
        %v5774 = vpow.pop %v5773
        %v5775 = vadd.f32 %v5774, 1.0
        %v5776 = vrcp.pop %v5775
        %v5777 = vmul.f32 1.0, %v5776
        %v5778 = vtanh.pop %v5764
        %v5779 = vxor.u32 %v5765, 2147483648
        %v5780 = vmul.f32 %v5779, 1.442695
        %v5781 = vpow.pop %v5780
        %v5782 = vadd.f32 %v5781, 1.0
        %v5783 = vrcp.pop %v5782
        %v5784 = vmul.f32 1.0, %v5783
        %v5785 = vmul.f32 %v5777, %v5477
        %v5786 = vmul.f32 %v5771, %v5778
        %v5787 = vadd.f32 %v5785, %v5786
        %v5788 = vtanh.pop %v5787
        %v5789 = vmul.f32 %v5784, %v5788
        %s5790 = scalar_lea.vmem %s290, 120 [#allocation9]
        %5791 = vst [vmem:[%s5790] sm:$0xff] %v5789
        %5792 = vst [vmem:[#allocation10] sm:$0xff] %v5789
        %5793 = vst [vmem:[#allocation12] sm:$0xff] %v5787
        %s5794 = sand.u32 %s123, 1
        %s5795 = scalar_lea.sflag [#allocation5], %s5794
        %s5796 = sand.u32 %s123, 1
        %s5797 = smul.addr %s5796, 128
        %s5798 = scalar_lea.vmem [#allocation9], %s5797
        // Predicated region
        $region53: #{tpu_custom_call.1} parent=35 // pred_check
          %p5799 = pneg %p133
        $region54: #{tpu_custom_call.1} parent=35 // pred_check_branch
          %5801 = sbr.rel (%p5799) target = $region56
        $region55: #{tpu_custom_call.1} parent=35 // pred_region
          %s5802 = smul.u32 16, %s26
          %s5804 = ssub.s32 2048, 2048
          %5805 = vsyncadd %s5795, %s5804
          %s5806 = smul.addr %s5802, 128
          %s5807 = scalar_lea.hbm %s4, %s5806
          %s5808 = sshll.u32 %s5798, 4
          %s5809 = int_to_ptr.vmem [resolvable:$true] %s5808
          %5814 = dma.vmem_to_hbm [thread:$0]  %s5809, 2048, %s5807, %s5795, 128, 128, 8
        $region56: #{tpu_custom_call.1} parent=35 // pred_fallthru
          _
        // Predicated region
        $region57: #{tpu_custom_call.1} parent=35 // pred_check
          %p5815 = pneg %p154
        $region58: #{tpu_custom_call.1} parent=35 // pred_check_branch
          %5817 = sbr.rel (%p5815) target = $region60
        $region59: #{tpu_custom_call.1} parent=35 // pred_region
          %s5819 = ssub.s32 128, 128
          %5820 = vsyncadd [#allocation11], %s5819
          %s5822 = sshll.u32 [#allocation10], 4
          %s5823 = int_to_ptr.vmem [resolvable:$true] %s5822
          %5825 = dma.vmem_to_hbm [thread:$0]  %s5823, 128, %s5, [#allocation11]
        $region60: #{tpu_custom_call.1} parent=35 // pred_fallthru
          _
        // Predicated region
        $region61: #{tpu_custom_call.1} parent=35 // pred_check
          %p5826 = pneg %p175
        $region62: #{tpu_custom_call.1} parent=35 // pred_check_branch
          %5828 = sbr.rel (%p5826) target = $region64
        $region63: #{tpu_custom_call.1} parent=35 // pred_region
          %s5830 = ssub.s32 128, 128
          %5831 = vsyncadd [#allocation11], %s5830
          %s5833 = sshll.u32 [#allocation12], 4
          %s5834 = int_to_ptr.vmem [resolvable:$true] %s5833
          %5836 = dma.vmem_to_hbm [thread:$0]  %s5834, 128, %s6, [#allocation11]
        $region64: #{tpu_custom_call.1} parent=35 // pred_fallthru
          _
        // Predicated region
        $region65: #{tpu_custom_call.1} parent=35 // pred_check
          %p5837 = pneg %p154
        $region66: #{tpu_custom_call.1} parent=35 // pred_check_branch
          %5839 = sbr.rel (%p5837) target = $region68
        $region67: #{tpu_custom_call.1} parent=35 // pred_region
          %5840 = dma.done [#allocation11], 128
        $region68: #{tpu_custom_call.1} parent=35 // pred_fallthru
          _
        // Predicated region
        $region69: #{tpu_custom_call.1} parent=35 // pred_check
          %p5841 = pneg %p175
        $region70: #{tpu_custom_call.1} parent=35 // pred_check_branch
          %5843 = sbr.rel (%p5841) target = $region72
        $region71: #{tpu_custom_call.1} parent=35 // pred_region
          %5844 = dma.done [#allocation11], 128
        $region72: #{tpu_custom_call.1} parent=35 // pred_fallthru
          _
      $region36: #{tpu_custom_call.1} parent=5 // pred_fallthru
        _
      %p5845 = scmp.le.s32.totalorder 2, %s21
      // Predicated region
      $region73: #{tpu_custom_call.1} parent=5 // pred_check
        %p5846 = pneg %p5845
      $region74: #{tpu_custom_call.1} parent=5 // pred_check_branch
        %5848 = sbr.rel (%p5846) target = $region76
      $region75: #{tpu_custom_call.1} parent=5 // pred_region
        %s5849 = ssub.s32 %s21, 2
        // Predicated region
        $region77: #{tpu_custom_call.1} parent=75 // pred_check
          %p5850 = pneg %p139
        $region78: #{tpu_custom_call.1} parent=75 // pred_check_branch
          %5852 = sbr.rel (%p5850) target = $region80
        $region79: #{tpu_custom_call.1} parent=75 // pred_region
          %s5853 = sand.u32 %s124, 1
          %s5854 = scalar_lea.sflag [#allocation5], %s5853
          %s5855 = sand.u32 %s124, 1
          %s5856 = smul.addr %s5855, 128
          %s5857 = scalar_lea.vmem [#allocation9], %s5856
          %5858 = dma.done %s5854, 2048
        $region80: #{tpu_custom_call.1} parent=75 // pred_fallthru
          _
      $region76: #{tpu_custom_call.1} parent=5 // pred_fallthru
        _
    $region6: #{tpu_custom_call.1} parent=1 // loop_footer
      %s25 = sadd.s32 1, %s21
    $region7: #{tpu_custom_call.1} parent=1 // loop_footer_branch
      %20 = sbr.rel target = $region3
    $region8: #{tpu_custom_call.1} parent=1 // loop_exit
      _
    %5859 = vsyncpa [#allocation4], 1
    %s5860 = scalar_lea.sflag [#allocation4], 1
    %5861 = vsyncpa %s5860, 1
    %5862 = vsyncpa [#allocation7], 1
    %5863 = vsyncpa [#allocation5], 1
    %s5864 = scalar_lea.sflag [#allocation5], 1
    %5865 = vsyncpa %s5864, 1
    %5866 = vsyncpa [#allocation11], 1

</llo_original>
